<compile_context>
chip_gen: v6e
topology: v6e:2x2x1
jax: 0.10.0
libtpu: 0.0.40
codegen_flags: <defaults>
</compile_context>

<pallas_src>
import functools

import numpy as np

import jax
import jax.numpy as jnp
from jax.experimental import pallas as pl
from jax.experimental.pallas import tpu as pltpu


def _attention_kernel(xq_ref, xkv_ref, gamma_ref, beta_ref,
                      wq_ref, wk_ref, wv_ref, wout_ref, bout_ref,
                      o_ref,
                      xnq_sc, xnkv_sc, k_cache, v_cache,
                      q_sc, m_sc, l_sc, acc_sc, y_sc,
                      *, scale, eps, tq, tk, group, dim_head):
    # Grid: (b, q_tile, head_group, kv_tile); (head_group, kv_tile) are reduction axes.
    qi = pl.program_id(1)
    hg = pl.program_id(2)
    kv = pl.program_id(3)
    num_hg = pl.num_programs(2)
    num_kv = pl.num_programs(3)
    G, dh = group, dim_head

    gamma = gamma_ref[...]                       # (1, D) f32
    beta = beta_ref[...]                         # (1, D) f32

    def layer_norm(x):                           # f32 LayerNorm (biased variance)
        x = x.astype(jnp.float32)
        mean = jnp.mean(x, axis=-1, keepdims=True)
        cen = x - mean
        var = jnp.mean(cen * cen, axis=-1, keepdims=True)
        return cen * jax.lax.rsqrt(var + eps) * gamma + beta

    kv_row0 = pl.multiple_of(kv * tk, tk)

    # ---- once per (b, q_tile): LayerNorm the q rows once, zero the out-proj accumulator ----
    @pl.when(jnp.logical_and(hg == 0, kv == 0))
    def _init_q_tile():
        xnq_sc[...] = layer_norm(xq_ref[0]).astype(jnp.bfloat16)
        y_sc[...] = jnp.zeros(y_sc.shape, y_sc.dtype)

    # ---- qi == 0 pass only: fill the LN / K / V caches reused by every later q tile ----
    @pl.when(qi == 0)
    def _fill_kv_cache():
        @pl.when(hg == 0)
        def _ln_fill():
            xnkv_sc[pl.ds(kv_row0, tk), :] = layer_norm(xkv_ref[0]).astype(jnp.bfloat16)

        xn = xnkv_sc[pl.ds(kv_row0, tk), :]                                  # (tk, D) bf16
        k_wide = jnp.dot(xn, wk_ref[hg],
                         preferred_element_type=jnp.float32).astype(jnp.bfloat16)   # (tk, G*dh)
        v_wide = jnp.dot(xn, wv_ref[hg],
                         preferred_element_type=jnp.float32).astype(jnp.bfloat16)
        for g in range(G):                       # static unroll; cold path (once per batch)
            head = hg * G + g
            k_cache[head, pl.ds(kv_row0, tk), :] = k_wide[:, g * dh:(g + 1) * dh]
            v_cache[head, pl.ds(kv_row0, tk), :] = v_wide[:, g * dh:(g + 1) * dh]

    # ---- once per (b, q_tile, head_group): wide Q projection, reset softmax state ----
    @pl.when(kv == 0)
    def _init_group():
        q_wide = jnp.dot(xnq_sc[...], wq_ref[hg],
                         preferred_element_type=jnp.float32) * scale        # (tq, G*dh) f32
        q_wide = q_wide.astype(jnp.bfloat16)     # scale folded into q, not into (tq,tk) scores
        for g in range(G):
            q_sc[g] = q_wide[:, g * dh:(g + 1) * dh]
        m_sc[...] = jnp.full(m_sc.shape, -jnp.inf, m_sc.dtype)
        l_sc[...] = jnp.zeros(l_sc.shape, l_sc.dtype)
        acc_sc[...] = jnp.zeros(acc_sc.shape, acc_sc.dtype)

    # ---- hot loop: batched online softmax over the cached K/V of this head group ----
    head0 = pl.multiple_of(hg * G, G)
    k_grp = k_cache[pl.ds(head0, G), pl.ds(kv_row0, tk), :]                  # (G, tk, dh) bf16
    v_grp = v_cache[pl.ds(head0, G), pl.ds(kv_row0, tk), :]

    s = jnp.einsum('gqd,gkd->gqk', q_sc[...], k_grp,
                   preferred_element_type=jnp.float32)                       # (G, tq, tk) f32
    m_prev = m_sc[...]
    m_new = jnp.maximum(m_prev, jnp.max(s, axis=-1, keepdims=True))          # (G, tq, 1)
    alpha = jnp.exp(m_prev - m_new)
    p = jnp.exp(s - m_new)                                                   # f32 (v5e-safe)
    l_sc[...] = alpha * l_sc[...] + jnp.sum(p, axis=-1, keepdims=True)
    acc_sc[...] = alpha * acc_sc[...] + jnp.einsum(
        'gqk,gkd->gqd', p.astype(jnp.bfloat16), v_grp,
        preferred_element_type=jnp.float32)
    m_sc[...] = m_new

    # ---- finalize head group: deferred normalization, fold through Wout[hg] (wide contraction) ----
    @pl.when(kv == num_kv - 1)
    def _finalize_group():
        out_grp = acc_sc[...] * pl.reciprocal(l_sc[...], approx=True)        # (G, tq, dh) f32
        out_wide = jnp.concatenate([out_grp[g] for g in range(G)], axis=-1)  # (tq, G*dh)
        y_sc[...] += jnp.dot(out_wide.astype(jnp.bfloat16), wout_ref[hg],
                             preferred_element_type=jnp.float32)             # (tq, D)

    # ---- once per (b, q_tile): add bias and write one lane-dense (tq, D) slab ----
    @pl.when(jnp.logical_and(hg == num_hg - 1, kv == num_kv - 1))
    def _write_output():
        o_ref[0] = (y_sc[...] + bout_ref[...]).astype(o_ref.dtype)


def _padded_vmem_bytes(shape, dtype):
    """Rough VMEM footprint of one buffer ((sublane, 128-lane) padding)."""
    itemsize = np.dtype(dtype).itemsize
    dims = list(shape)
    dims[-1] = -(-dims[-1] // 128) * 128
    if len(dims) >= 2:
        sublane = 8 * max(1, 4 // itemsize)
        dims[-2] = -(-dims[-2] // sublane) * sublane
    total = itemsize
    for d in dims:
        total *= d
    return total


def attention_forward(x, params, *, heads, dim_head, tq=128, tk=256, group_heads=None):
    B, N, D = x.shape
    inner = heads * dim_head
    gamma, beta, w_qkv, w_out, b_out = params

    tq = min(tq, N)
    tk = min(tk, N)
    assert N % tq == 0 and N % tk == 0, "sequence length must divide the tile sizes"
    # TODO(synk): pad N to a multiple of the tile size and D to a multiple of 128
    # (with LayerNorm masking) for shapes that do not divide evenly.
    # TODO(synk): for very long sequences where the (H, N, dh) K/V cache exceeds
    # VMEM, fall back to streaming kv tiles (un-cached) or shard the cache by group.

    # Head-group size: widen per-step matmuls to >=128 lanes (also right for v5e's MXU).
    if group_heads is None:
        group_heads = max(1, min(heads, -(-128 // dim_head)))
        while heads % group_heads:
            group_heads -= 1
    G = group_heads
    assert heads % G == 0
    num_hg = heads // G
    gdh = G * dim_head

    # ---- weight prep (one-time layout glue, not hot-path compute) ----
    # PyTorch Linear weights are (out, in); QKV rows are [q | k | v], head-major.
    def grouped(w_rows):                          # (inner, D) -> (num_hg, D, G*dh)
        return jnp.transpose(w_rows.reshape(num_hg, gdh, D), (0, 2, 1))

    wq = grouped(w_qkv[0 * inner:1 * inner]).astype(jnp.bfloat16)
    wk = grouped(w_qkv[1 * inner:2 * inner]).astype(jnp.bfloat16)
    wv = grouped(w_qkv[2 * inner:3 * inner]).astype(jnp.bfloat16)
    wout = w_out.T.reshape(num_hg, gdh, D).astype(jnp.bfloat16)      # (num_hg, G*dh, D)
    # TODO(synk): when heads == 1 and dim_head == dim the PyTorch module uses
    # Identity for to_out; pass w_out = I, b_out = 0 in that case.

    gamma2 = gamma.reshape(1, D).astype(jnp.float32)
    beta2 = beta.reshape(1, D).astype(jnp.float32)
    bout2 = b_out.reshape(1, D).astype(jnp.float32)

    num_kv = N // tk
    grid = (B, N // tq, num_hg, num_kv)

    def kv_index_map(b, qi, hg, kv):
        # x (kv rows) is only consumed while filling the K/V cache (qi==0, hg==0);
        # afterwards pin the block index so Pallas does not re-DMA the kv stream.
        fill = jnp.logical_and(qi == 0, hg == 0)
        return (b, jnp.where(fill, kv, num_kv - 1), 0)

    # ---- scratch (persists across the grid; caches are refilled when b changes) ----
    scratch_descr = [
        ((tq, D), jnp.bfloat16),                  # xnq_sc   LN(q rows), once per (b, qi)
        ((N, D), jnp.bfloat16),                   # xnkv_sc  LN(x) cache, once per batch
        ((heads, N, dim_head), jnp.bfloat16),     # k_cache  projected K, once per batch
        ((heads, N, dim_head), jnp.bfloat16),     # v_cache  projected V, once per batch
        ((G, tq, dim_head), jnp.bfloat16),        # q_sc     scaled Q of current head group
        ((G, tq, 1), jnp.float32),                # m_sc     online-softmax running max
        ((G, tq, 1), jnp.float32),                # l_sc     online-softmax running denom
        ((G, tq, dim_head), jnp.float32),         # acc_sc   unnormalized attn @ V
        ((tq, D), jnp.float32),                   # y_sc     output-projection accumulator
    ]
    scratch_shapes = [pltpu.VMEM(s, d) for s, d in scratch_descr]

    # ---- VMEM budget: scratch + resident weights + double-buffered streamed blocks ----
    need = sum(_padded_vmem_bytes(s, d) for s, d in scratch_descr)
    block_descr = [
        ((1, tq, D), x.dtype), ((1, tk, D), x.dtype), ((1, tq, D), x.dtype),   # xq, xkv, out
        ((1, D), jnp.float32), ((1, D), jnp.float32), ((1, D), jnp.float32),   # gamma, beta, bias
        ((num_hg, D, gdh), jnp.bfloat16), ((num_hg, D, gdh), jnp.bfloat16),
        ((num_hg, D, gdh), jnp.bfloat16), ((num_hg, gdh, D), jnp.bfloat16),
    ]
    need += 2 * sum(_padded_vmem_bytes(s, d) for s, d in block_descr)          # double buffers
    vmem_limit = int(min(max(need + (8 << 20), 32 << 20), 56 << 20))           # <=56 MiB (v7x)

    kernel = functools.partial(
        _attention_kernel, scale=float(dim_head) ** -0.5, eps=1e-5,
        tq=tq, tk=tk, group=G, dim_head=dim_head)

    return pl.pallas_call(
        kernel,
        out_shape=jax.ShapeDtypeStruct((B, N, D), x.dtype),
        grid_spec=pltpu.PrefetchScalarGridSpec(
            num_scalar_prefetch=0,
            grid=grid,
            in_specs=[
                pl.BlockSpec((1, tq, D), lambda b, qi, hg, kv: (b, qi, 0)),        # x (q rows)
                pl.BlockSpec((1, tk, D), kv_index_map),                            # x (kv rows)
                pl.BlockSpec((1, D), lambda b, qi, hg, kv: (0, 0)),                # LN gamma
                pl.BlockSpec((1, D), lambda b, qi, hg, kv: (0, 0)),                # LN beta
                pl.BlockSpec((num_hg, D, gdh), lambda b, qi, hg, kv: (0, 0, 0)),   # Wq (resident)
                pl.BlockSpec((num_hg, D, gdh), lambda b, qi, hg, kv: (0, 0, 0)),   # Wk (resident)
                pl.BlockSpec((num_hg, D, gdh), lambda b, qi, hg, kv: (0, 0, 0)),   # Wv (resident)
                pl.BlockSpec((num_hg, gdh, D), lambda b, qi, hg, kv: (0, 0, 0)),   # Wout (resident)
                pl.BlockSpec((1, D), lambda b, qi, hg, kv: (0, 0)),                # b_out
            ],
            out_specs=pl.BlockSpec((1, tq, D), lambda b, qi, hg, kv: (b, qi, 0)),
            scratch_shapes=scratch_shapes,
        ),
        compiler_params=pltpu.CompilerParams(
            # q-tile / head-group / kv axes must stay sequential: the K/V + LN caches
            # are filled at qi == 0 and all accumulators live across those axes.
            dimension_semantics=("parallel", "arbitrary", "arbitrary", "arbitrary"),
            vmem_limit_bytes=vmem_limit,
        ),
    )(x, x, gamma2, beta2, wq, wk, wv, wout, bout2)


def init_params(key, dim, heads, dim_head):
    inner = heads * dim_head
    k1, k2, k3, k4, k5 = jax.random.split(key, 5)
    gamma = 1.0 + 0.05 * jax.random.normal(k4, (dim,), jnp.float32)
    beta = 0.05 * jax.random.normal(k5, (dim,), jnp.float32)
    # PyTorch Linear shape convention: (out, in).
    w_qkv = jax.random.normal(k1, (inner * 3, dim), jnp.float32) * 0.1
    w_out = jax.random.normal(k2, (dim, inner), jnp.float32) * 0.1
    b_out = jax.random.normal(k3, (dim,), jnp.float32) * 0.1
    return gamma, beta, w_qkv, w_out, b_out


def reference_forward(x, params, *, heads, dim_head):
    """Pure-JAX f32 reference mirroring the PyTorch module."""
    gamma, beta, w_qkv, w_out, b_out = params
    mean = jnp.mean(x, axis=-1, keepdims=True)
    var = jnp.mean((x - mean) ** 2, axis=-1, keepdims=True)
    xn = (x - mean) / jnp.sqrt(var + 1e-5) * gamma + beta
    qkv = xn @ w_qkv.T
    q, k, v = jnp.split(qkv, 3, axis=-1)
    B, N, _ = x.shape

    def split_heads(t):
        return t.reshape(B, N, heads, dim_head).transpose(0, 2, 1, 3)
    q, k, v = map(split_heads, (q, k, v))
    dots = jnp.einsum("bhnd,bhmd->bhnm", q, k) * (dim_head ** -0.5)
    attn = jax.nn.softmax(dots, axis=-1)
    out = jnp.einsum("bhnm,bhmd->bhnd", attn, v)
    out = out.transpose(0, 2, 1, 3).reshape(B, N, heads * dim_head)
    return out @ w_out.T + b_out


if __name__ == "__main__":
    # Small but structure-exercising shapes: 2 batches x 2 q-tiles x 2 head groups
    # x 2 kv-tiles, D = 128 (lane-dense output), K/V-cache reuse at qi > 0.
    B, N, dim = 2, 128, 128
    heads, dim_head = 8, 32          # inner = 256 -> 2 head groups of 4 (G*dh = 128)

    key = jax.random.PRNGKey(0)
    kx, kp = jax.random.split(key)
    x = jax.random.normal(kx, (B, N, dim), jnp.float32)
    params = init_params(kp, dim, heads, dim_head)

    out = attention_forward(x, params, heads=heads, dim_head=dim_head, tq=64, tk=64)
    out = jax.block_until_ready(out)

    ref = reference_forward(x, params, heads=heads, dim_head=dim_head)
    assert out.shape == (B, N, dim)
    max_err = float(jnp.max(jnp.abs(out - ref)))
    # bf16 MXU operands + approx reciprocal => ~1e-2-level deviations vs the f32 reference.
    assert jnp.allclose(out, ref, atol=3e-2, rtol=3e-2), \
        f"mismatch vs reference (max |err| = {max_err})"

    print("KERNEL_OK")
</pallas_src>

<mosaic_0001>
module attributes {stable_mosaic.version = 11 : i64} {
  func.func @_attention_kernel(%arg0: i32, %arg1: i32, %arg2: i32, %arg3: i32, %arg4: memref<1x64x128xf32, #tpu.memory_space<vmem>>, %arg5: memref<1x64x128xf32, #tpu.memory_space<vmem>>, %arg6: memref<1x128xf32, #tpu.memory_space<vmem>>, %arg7: memref<1x128xf32, #tpu.memory_space<vmem>>, %arg8: memref<2x128x128xbf16, #tpu.memory_space<vmem>>, %arg9: memref<2x128x128xbf16, #tpu.memory_space<vmem>>, %arg10: memref<2x128x128xbf16, #tpu.memory_space<vmem>>, %arg11: memref<2x128x128xbf16, #tpu.memory_space<vmem>>, %arg12: memref<1x128xf32, #tpu.memory_space<vmem>>, %arg13: memref<1x64x128xf32, #tpu.memory_space<vmem>>, %arg14: memref<64x128xbf16, #tpu.memory_space<vmem>>, %arg15: memref<128x128xbf16, #tpu.memory_space<vmem>>, %arg16: memref<8x128x32xbf16, #tpu.memory_space<vmem>>, %arg17: memref<8x128x32xbf16, #tpu.memory_space<vmem>>, %arg18: memref<4x64x32xbf16, #tpu.memory_space<vmem>>, %arg19: memref<4x64x1xf32, #tpu.memory_space<vmem>>, %arg20: memref<4x64x1xf32, #tpu.memory_space<vmem>>, %arg21: memref<4x64x32xf32, #tpu.memory_space<vmem>>, %arg22: memref<64x128xf32, #tpu.memory_space<vmem>>) attributes {dimension_semantics = [#tpu.dimension_semantics<parallel>, #tpu.dimension_semantics<arbitrary>, #tpu.dimension_semantics<arbitrary>, #tpu.dimension_semantics<arbitrary>], iteration_bounds = array<i64: 2, 2, 2, 2>, scalar_prefetch = 0 : i64, scratch_operands = 9 : i64, tpu.core_type = #tpu.core_type<tc>, window_params = [{transform_indices = @transform_0, window_bounds = array<i64: 1, 64, 128>}, {transform_indices = @transform_1, window_bounds = array<i64: 1, 64, 128>}, {pipeline_mode = #tpu.pipeline_mode<synchronous>, transform_indices = @transform_2, window_bounds = array<i64: 1, 128>}, {pipeline_mode = #tpu.pipeline_mode<synchronous>, transform_indices = @transform_3, window_bounds = array<i64: 1, 128>}, {pipeline_mode = #tpu.pipeline_mode<synchronous>, transform_indices = @transform_4, window_bounds = array<i64: 2, 128, 128>}, {pipeline_mode = #tpu.pipeline_mode<synchronous>, transform_indices = @transform_5, window_bounds = array<i64: 2, 128, 128>}, {pipeline_mode = #tpu.pipeline_mode<synchronous>, transform_indices = @transform_6, window_bounds = array<i64: 2, 128, 128>}, {pipeline_mode = #tpu.pipeline_mode<synchronous>, transform_indices = @transform_7, window_bounds = array<i64: 2, 128, 128>}, {pipeline_mode = #tpu.pipeline_mode<synchronous>, transform_indices = @transform_8, window_bounds = array<i64: 1, 128>}, {transform_indices = @transform_9, window_bounds = array<i64: 1, 64, 128>}]} {
    %c0 = arith.constant 0 : index
    %c0_0 = arith.constant 0 : index
    %0 = vector.load %arg6[%c0, %c0_0] : memref<1x128xf32, #tpu.memory_space<vmem>>, vector<1x128xf32>
    %c0_1 = arith.constant 0 : index
    %c0_2 = arith.constant 0 : index
    %1 = vector.load %arg7[%c0_1, %c0_2] : memref<1x128xf32, #tpu.memory_space<vmem>>, vector<1x128xf32>
    %c64_i32 = arith.constant 64 : i32
    %2 = arith.muli %arg3, %c64_i32 : i32
    %3 = tpu.assume_multiple %2, 64 : i32
    %c0_i32 = arith.constant 0 : i32
    %4 = arith.cmpi eq, %arg2, %c0_i32 : i32
    %c0_i32_3 = arith.constant 0 : i32
    %5 = arith.cmpi eq, %arg3, %c0_i32_3 : i32
    %6 = arith.andi %4, %5 : i1
    %7 = arith.extui %6 : i1 to i32
    %c0_i32_4 = arith.constant 0 : i32
    %8 = arith.cmpi ne, %7, %c0_i32_4 : i32
    scf.if %8 {
      %c0_39 = arith.constant 0 : index
      %c0_40 = arith.constant 0 : index
      %c0_41 = arith.constant 0 : index
      %56 = vector.load %arg4[%c0_39, %c0_40, %c0_41] : memref<1x64x128xf32, #tpu.memory_space<vmem>>, vector<1x64x128xf32>
      %57 = vector.shape_cast %56 : vector<1x64x128xf32> to vector<64x128xf32>
      %cst_42 = arith.constant dense<0.000000e+00> : vector<64xf32>
      %58 = vector.multi_reduction <add>, %57, %cst_42 [1] : vector<64x128xf32> to vector<64xf32>
      %59 = vector.shape_cast %58 : vector<64xf32> to vector<64x1xf32>
      %cst_43 = arith.constant 1.280000e+02 : f32
      %60 = vector.broadcast %cst_43 : f32 to vector<64x1xf32>
      %61 = arith.divf %59, %60 : vector<64x1xf32>
      %62 = vector.broadcast %61 : vector<64x1xf32> to vector<64x128xf32>
      %63 = arith.subf %57, %62 : vector<64x128xf32>
      %64 = arith.mulf %63, %63 : vector<64x128xf32>
      %cst_44 = arith.constant dense<0.000000e+00> : vector<64xf32>
      %65 = vector.multi_reduction <add>, %64, %cst_44 [1] : vector<64x128xf32> to vector<64xf32>
      %66 = vector.shape_cast %65 : vector<64xf32> to vector<64x1xf32>
      %cst_45 = arith.constant 1.280000e+02 : f32
      %67 = vector.broadcast %cst_45 : f32 to vector<64x1xf32>
      %68 = arith.divf %66, %67 : vector<64x1xf32>
      %cst_46 = arith.constant 9.99999974E-6 : f32
      %69 = vector.broadcast %cst_46 : f32 to vector<64x1xf32>
      %70 = arith.addf %68, %69 : vector<64x1xf32>
      %71 = math.rsqrt %70 : vector<64x1xf32>
      %72 = vector.broadcast %71 : vector<64x1xf32> to vector<64x128xf32>
      %73 = arith.mulf %63, %72 : vector<64x128xf32>
      %74 = vector.broadcast %0 : vector<1x128xf32> to vector<64x128xf32>
      %75 = arith.mulf %73, %74 : vector<64x128xf32>
      %76 = vector.broadcast %1 : vector<1x128xf32> to vector<64x128xf32>
      %77 = arith.addf %75, %76 : vector<64x128xf32>
      %78 = arith.truncf %77 : vector<64x128xf32> to vector<64x128xbf16>
      %c0_47 = arith.constant 0 : index
      %c0_48 = arith.constant 0 : index
      %79 = vector.load %arg14[%c0_47, %c0_48] : memref<64x128xbf16, #tpu.memory_space<vmem>>, vector<64x128xbf16>
      tpu.vector_store %arg14[%c0_47, %c0_48], %78 {strides = array<i32>} : memref<64x128xbf16, #tpu.memory_space<vmem>>, vector<64x128xbf16>,
      %cst_49 = arith.constant 0.000000e+00 : f32
      %80 = vector.broadcast %cst_49 : f32 to vector<64x128xf32>
      %c0_50 = arith.constant 0 : index
      %c0_51 = arith.constant 0 : index
      %81 = vector.load %arg22[%c0_50, %c0_51] : memref<64x128xf32, #tpu.memory_space<vmem>>, vector<64x128xf32>
      tpu.vector_store %arg22[%c0_50, %c0_51], %80 {strides = array<i32>} : memref<64x128xf32, #tpu.memory_space<vmem>>, vector<64x128xf32>,
    } else {
    }
    %c0_i32_5 = arith.constant 0 : i32
    %9 = arith.cmpi eq, %arg1, %c0_i32_5 : i32
    %10 = arith.extui %9 : i1 to i32
    %c0_i32_6 = arith.constant 0 : i32
    %11 = arith.cmpi ne, %10, %c0_i32_6 : i32
    scf.if %11 {
      %c0_i32_39 = arith.constant 0 : i32
      %56 = arith.cmpi eq, %arg2, %c0_i32_39 : i32
      %57 = arith.extui %56 : i1 to i32
      %c0_i32_40 = arith.constant 0 : i32
      %58 = arith.cmpi ne, %57, %c0_i32_40 : i32
      scf.if %58 {
        %c0_62 = arith.constant 0 : index
        %c0_63 = arith.constant 0 : index
        %c0_64 = arith.constant 0 : index
        %127 = vector.load %arg5[%c0_62, %c0_63, %c0_64] : memref<1x64x128xf32, #tpu.memory_space<vmem>>, vector<1x64x128xf32>
        %128 = vector.shape_cast %127 : vector<1x64x128xf32> to vector<64x128xf32>
        %cst_65 = arith.constant dense<0.000000e+00> : vector<64xf32>
        %129 = vector.multi_reduction <add>, %128, %cst_65 [1] : vector<64x128xf32> to vector<64xf32>
        %130 = vector.shape_cast %129 : vector<64xf32> to vector<64x1xf32>
        %cst_66 = arith.constant 1.280000e+02 : f32
        %131 = vector.broadcast %cst_66 : f32 to vector<64x1xf32>
        %132 = arith.divf %130, %131 : vector<64x1xf32>
        %133 = vector.broadcast %132 : vector<64x1xf32> to vector<64x128xf32>
        %134 = arith.subf %128, %133 : vector<64x128xf32>
        %135 = arith.mulf %134, %134 : vector<64x128xf32>
        %cst_67 = arith.constant dense<0.000000e+00> : vector<64xf32>
        %136 = vector.multi_reduction <add>, %135, %cst_67 [1] : vector<64x128xf32> to vector<64xf32>
        %137 = vector.shape_cast %136 : vector<64xf32> to vector<64x1xf32>
        %cst_68 = arith.constant 1.280000e+02 : f32
        %138 = vector.broadcast %cst_68 : f32 to vector<64x1xf32>
        %139 = arith.divf %137, %138 : vector<64x1xf32>
        %cst_69 = arith.constant 9.99999974E-6 : f32
        %140 = vector.broadcast %cst_69 : f32 to vector<64x1xf32>
        %141 = arith.addf %139, %140 : vector<64x1xf32>
        %142 = math.rsqrt %141 : vector<64x1xf32>
        %143 = vector.broadcast %142 : vector<64x1xf32> to vector<64x128xf32>
        %144 = arith.mulf %134, %143 : vector<64x128xf32>
        %145 = vector.broadcast %0 : vector<1x128xf32> to vector<64x128xf32>
        %146 = arith.mulf %144, %145 : vector<64x128xf32>
        %147 = vector.broadcast %1 : vector<1x128xf32> to vector<64x128xf32>
        %148 = arith.addf %146, %147 : vector<64x128xf32>
        %149 = arith.truncf %148 : vector<64x128xf32> to vector<64x128xbf16>
        %150 = arith.index_cast %3 : i32 to index
        %c0_70 = arith.constant 0 : index
        %151 = vector.load %arg15[%150, %c0_70] : memref<128x128xbf16, #tpu.memory_space<vmem>>, vector<64x128xbf16>
        tpu.vector_store %arg15[%150, %c0_70], %149 {strides = array<i32>} : memref<128x128xbf16, #tpu.memory_space<vmem>>, vector<64x128xbf16>,
      } else {
      }
      %59 = arith.index_cast %3 : i32 to index
      %c0_41 = arith.constant 0 : index
      %60 = vector.load %arg15[%59, %c0_41] : memref<128x128xbf16, #tpu.memory_space<vmem>>, vector<64x128xbf16>
      %61 = arith.index_cast %arg2 : i32 to index
      %c0_42 = arith.constant 0 : index
      %c0_43 = arith.constant 0 : index
      %62 = vector.load %arg9[%61, %c0_42, %c0_43] : memref<2x128x128xbf16, #tpu.memory_space<vmem>>, vector<1x128x128xbf16>
      %63 = vector.shape_cast %62 : vector<1x128x128xbf16> to vector<128x128xbf16>
      %cst_44 = arith.constant dense<0.000000e+00> : vector<64x128xf32>
      %64 = tpu.matmul %60, %63, %cst_44 {dimension_numbers = #tpu.dot_dimension_numbers<[1], [0], [0], [1], [0, 0, 1, 1], [], []>} : vector<64x128xbf16>, vector<128x128xbf16>, vector<64x128xf32> -> vector<64x128xf32>
      %65 = arith.truncf %64 : vector<64x128xf32> to vector<64x128xbf16>
      %66 = arith.index_cast %arg2 : i32 to index
      %c0_45 = arith.constant 0 : index
      %c0_46 = arith.constant 0 : index
      %67 = vector.load %arg10[%66, %c0_45, %c0_46] : memref<2x128x128xbf16, #tpu.memory_space<vmem>>, vector<1x128x128xbf16>
      %68 = vector.shape_cast %67 : vector<1x128x128xbf16> to vector<128x128xbf16>
      %cst_47 = arith.constant dense<0.000000e+00> : vector<64x128xf32>
      %69 = tpu.matmul %60, %68, %cst_47 {dimension_numbers = #tpu.dot_dimension_numbers<[1], [0], [0], [1], [0, 0, 1, 1], [], []>} : vector<64x128xbf16>, vector<128x128xbf16>, vector<64x128xf32> -> vector<64x128xf32>
      %70 = arith.truncf %69 : vector<64x128xf32> to vector<64x128xbf16>
      %c4_i32_48 = arith.constant 4 : i32
      %71 = arith.muli %arg2, %c4_i32_48 : i32
      %c0_i32_49 = arith.constant 0 : i32
      %72 = arith.addi %71, %c0_i32_49 : i32
      %73 = vector.extract_strided_slice %65 {offsets = [0, 0], sizes = [64, 32], strides = [1, 1]} : vector<64x128xbf16> to vector<64x32xbf16>
      %74 = arith.index_cast %72 : i32 to index
      %75 = arith.index_cast %3 : i32 to index
      %c0_50 = arith.constant 0 : index
      %76 = vector.load %arg16[%74, %75, %c0_50] : memref<8x128x32xbf16, #tpu.memory_space<vmem>>, vector<1x64x32xbf16>
      %77 = vector.shape_cast %76 : vector<1x64x32xbf16> to vector<64x32xbf16>
      %78 = vector.shape_cast %73 : vector<64x32xbf16> to vector<1x64x32xbf16>
      tpu.vector_store %arg16[%74, %75, %c0_50], %78 {strides = array<i32>} : memref<8x128x32xbf16, #tpu.memory_space<vmem>>, vector<1x64x32xbf16>,
      %79 = vector.extract_strided_slice %70 {offsets = [0, 0], sizes = [64, 32], strides = [1, 1]} : vector<64x128xbf16> to vector<64x32xbf16>
      %80 = arith.index_cast %72 : i32 to index
      %81 = arith.index_cast %3 : i32 to index
      %c0_51 = arith.constant 0 : index
      %82 = vector.load %arg17[%80, %81, %c0_51] : memref<8x128x32xbf16, #tpu.memory_space<vmem>>, vector<1x64x32xbf16>
      %83 = vector.shape_cast %82 : vector<1x64x32xbf16> to vector<64x32xbf16>
      %84 = vector.shape_cast %79 : vector<64x32xbf16> to vector<1x64x32xbf16>
      tpu.vector_store %arg17[%80, %81, %c0_51], %84 {strides = array<i32>} : memref<8x128x32xbf16, #tpu.memory_space<vmem>>, vector<1x64x32xbf16>,
      %c4_i32_52 = arith.constant 4 : i32
      %85 = arith.muli %arg2, %c4_i32_52 : i32
      %c1_i32_53 = arith.constant 1 : i32
      %86 = arith.addi %85, %c1_i32_53 : i32
      %87 = vector.extract_strided_slice %65 {offsets = [0, 32], sizes = [64, 32], strides = [1, 1]} : vector<64x128xbf16> to vector<64x32xbf16>
      %88 = arith.index_cast %86 : i32 to index
      %89 = arith.index_cast %3 : i32 to index
      %c0_54 = arith.constant 0 : index
      %90 = vector.load %arg16[%88, %89, %c0_54] : memref<8x128x32xbf16, #tpu.memory_space<vmem>>, vector<1x64x32xbf16>
      %91 = vector.shape_cast %90 : vector<1x64x32xbf16> to vector<64x32xbf16>
      %92 = vector.shape_cast %87 : vector<64x32xbf16> to vector<1x64x32xbf16>
      tpu.vector_store %arg16[%88, %89, %c0_54], %92 {strides = array<i32>} : memref<8x128x32xbf16, #tpu.memory_space<vmem>>, vector<1x64x32xbf16>,
      %93 = vector.extract_strided_slice %70 {offsets = [0, 32], sizes = [64, 32], strides = [1, 1]} : vector<64x128xbf16> to vector<64x32xbf16>
      %94 = arith.index_cast %86 : i32 to index
      %95 = arith.index_cast %3 : i32 to index
      %c0_55 = arith.constant 0 : index
      %96 = vector.load %arg17[%94, %95, %c0_55] : memref<8x128x32xbf16, #tpu.memory_space<vmem>>, vector<1x64x32xbf16>
      %97 = vector.shape_cast %96 : vector<1x64x32xbf16> to vector<64x32xbf16>
      %98 = vector.shape_cast %93 : vector<64x32xbf16> to vector<1x64x32xbf16>
      tpu.vector_store %arg17[%94, %95, %c0_55], %98 {strides = array<i32>} : memref<8x128x32xbf16, #tpu.memory_space<vmem>>, vector<1x64x32xbf16>,
      %c4_i32_56 = arith.constant 4 : i32
      %99 = arith.muli %arg2, %c4_i32_56 : i32
      %c2_i32 = arith.constant 2 : i32
      %100 = arith.addi %99, %c2_i32 : i32
      %101 = vector.extract_strided_slice %65 {offsets = [0, 64], sizes = [64, 32], strides = [1, 1]} : vector<64x128xbf16> to vector<64x32xbf16>
      %102 = arith.index_cast %100 : i32 to index
      %103 = arith.index_cast %3 : i32 to index
      %c0_57 = arith.constant 0 : index
      %104 = vector.load %arg16[%102, %103, %c0_57] : memref<8x128x32xbf16, #tpu.memory_space<vmem>>, vector<1x64x32xbf16>
      %105 = vector.shape_cast %104 : vector<1x64x32xbf16> to vector<64x32xbf16>
      %106 = vector.shape_cast %101 : vector<64x32xbf16> to vector<1x64x32xbf16>
      tpu.vector_store %arg16[%102, %103, %c0_57], %106 {strides = array<i32>} : memref<8x128x32xbf16, #tpu.memory_space<vmem>>, vector<1x64x32xbf16>,
      %107 = vector.extract_strided_slice %70 {offsets = [0, 64], sizes = [64, 32], strides = [1, 1]} : vector<64x128xbf16> to vector<64x32xbf16>
      %108 = arith.index_cast %100 : i32 to index
      %109 = arith.index_cast %3 : i32 to index
      %c0_58 = arith.constant 0 : index
      %110 = vector.load %arg17[%108, %109, %c0_58] : memref<8x128x32xbf16, #tpu.memory_space<vmem>>, vector<1x64x32xbf16>
      %111 = vector.shape_cast %110 : vector<1x64x32xbf16> to vector<64x32xbf16>
      %112 = vector.shape_cast %107 : vector<64x32xbf16> to vector<1x64x32xbf16>
      tpu.vector_store %arg17[%108, %109, %c0_58], %112 {strides = array<i32>} : memref<8x128x32xbf16, #tpu.memory_space<vmem>>, vector<1x64x32xbf16>,
      %c4_i32_59 = arith.constant 4 : i32
      %113 = arith.muli %arg2, %c4_i32_59 : i32
      %c3_i32 = arith.constant 3 : i32
      %114 = arith.addi %113, %c3_i32 : i32
      %115 = vector.extract_strided_slice %65 {offsets = [0, 96], sizes = [64, 32], strides = [1, 1]} : vector<64x128xbf16> to vector<64x32xbf16>
      %116 = arith.index_cast %114 : i32 to index
      %117 = arith.index_cast %3 : i32 to index
      %c0_60 = arith.constant 0 : index
      %118 = vector.load %arg16[%116, %117, %c0_60] : memref<8x128x32xbf16, #tpu.memory_space<vmem>>, vector<1x64x32xbf16>
      %119 = vector.shape_cast %118 : vector<1x64x32xbf16> to vector<64x32xbf16>
      %120 = vector.shape_cast %115 : vector<64x32xbf16> to vector<1x64x32xbf16>
      tpu.vector_store %arg16[%116, %117, %c0_60], %120 {strides = array<i32>} : memref<8x128x32xbf16, #tpu.memory_space<vmem>>, vector<1x64x32xbf16>,
      %121 = vector.extract_strided_slice %70 {offsets = [0, 96], sizes = [64, 32], strides = [1, 1]} : vector<64x128xbf16> to vector<64x32xbf16>
      %122 = arith.index_cast %114 : i32 to index
      %123 = arith.index_cast %3 : i32 to index
      %c0_61 = arith.constant 0 : index
      %124 = vector.load %arg17[%122, %123, %c0_61] : memref<8x128x32xbf16, #tpu.memory_space<vmem>>, vector<1x64x32xbf16>
      %125 = vector.shape_cast %124 : vector<1x64x32xbf16> to vector<64x32xbf16>
      %126 = vector.shape_cast %121 : vector<64x32xbf16> to vector<1x64x32xbf16>
      tpu.vector_store %arg17[%122, %123, %c0_61], %126 {strides = array<i32>} : memref<8x128x32xbf16, #tpu.memory_space<vmem>>, vector<1x64x32xbf16>,
    } else {
    }
    %c0_i32_7 = arith.constant 0 : i32
    %12 = arith.cmpi eq, %arg3, %c0_i32_7 : i32
    %13 = arith.extui %12 : i1 to i32
    %c0_i32_8 = arith.constant 0 : i32
    %14 = arith.cmpi ne, %13, %c0_i32_8 : i32
    scf.if %14 {
      %c0_39 = arith.constant 0 : index
      %c0_40 = arith.constant 0 : index
      %56 = vector.load %arg14[%c0_39, %c0_40] : memref<64x128xbf16, #tpu.memory_space<vmem>>, vector<64x128xbf16>
      %57 = arith.index_cast %arg2 : i32 to index
      %c0_41 = arith.constant 0 : index
      %c0_42 = arith.constant 0 : index
      %58 = vector.load %arg8[%57, %c0_41, %c0_42] : memref<2x128x128xbf16, #tpu.memory_space<vmem>>, vector<1x128x128xbf16>
      %59 = vector.shape_cast %58 : vector<1x128x128xbf16> to vector<128x128xbf16>
      %cst_43 = arith.constant dense<0.000000e+00> : vector<64x128xf32>
      %60 = tpu.matmul %56, %59, %cst_43 {dimension_numbers = #tpu.dot_dimension_numbers<[1], [0], [0], [1], [0, 0, 1, 1], [], []>} : vector<64x128xbf16>, vector<128x128xbf16>, vector<64x128xf32> -> vector<64x128xf32>
      %cst_44 = arith.constant 0.176776692 : f32
      %61 = vector.broadcast %cst_44 : f32 to vector<64x128xf32>
      %62 = arith.mulf %60, %61 : vector<64x128xf32>
      %63 = arith.truncf %62 : vector<64x128xf32> to vector<64x128xbf16>
      %64 = vector.extract_strided_slice %63 {offsets = [0, 0], sizes = [64, 32], strides = [1, 1]} : vector<64x128xbf16> to vector<64x32xbf16>
      %c0_45 = arith.constant 0 : index
      %c0_46 = arith.constant 0 : index
      %c0_47 = arith.constant 0 : index
      %65 = vector.load %arg18[%c0_45, %c0_46, %c0_47] : memref<4x64x32xbf16, #tpu.memory_space<vmem>>, vector<1x64x32xbf16>
      %66 = vector.shape_cast %65 : vector<1x64x32xbf16> to vector<64x32xbf16>
      %67 = vector.shape_cast %64 : vector<64x32xbf16> to vector<1x64x32xbf16>
      tpu.vector_store %arg18[%c0_45, %c0_46, %c0_47], %67 {strides = array<i32>} : memref<4x64x32xbf16, #tpu.memory_space<vmem>>, vector<1x64x32xbf16>,
      %68 = vector.extract_strided_slice %63 {offsets = [0, 32], sizes = [64, 32], strides = [1, 1]} : vector<64x128xbf16> to vector<64x32xbf16>
      %c1 = arith.constant 1 : index
      %c0_48 = arith.constant 0 : index
      %c0_49 = arith.constant 0 : index
      %69 = vector.load %arg18[%c1, %c0_48, %c0_49] : memref<4x64x32xbf16, #tpu.memory_space<vmem>>, vector<1x64x32xbf16>
      %70 = vector.shape_cast %69 : vector<1x64x32xbf16> to vector<64x32xbf16>
      %71 = vector.shape_cast %68 : vector<64x32xbf16> to vector<1x64x32xbf16>
      tpu.vector_store %arg18[%c1, %c0_48, %c0_49], %71 {strides = array<i32>} : memref<4x64x32xbf16, #tpu.memory_space<vmem>>, vector<1x64x32xbf16>,
      %72 = vector.extract_strided_slice %63 {offsets = [0, 64], sizes = [64, 32], strides = [1, 1]} : vector<64x128xbf16> to vector<64x32xbf16>
      %c2 = arith.constant 2 : index
      %c0_50 = arith.constant 0 : index
      %c0_51 = arith.constant 0 : index
      %73 = vector.load %arg18[%c2, %c0_50, %c0_51] : memref<4x64x32xbf16, #tpu.memory_space<vmem>>, vector<1x64x32xbf16>
      %74 = vector.shape_cast %73 : vector<1x64x32xbf16> to vector<64x32xbf16>
      %75 = vector.shape_cast %72 : vector<64x32xbf16> to vector<1x64x32xbf16>
      tpu.vector_store %arg18[%c2, %c0_50, %c0_51], %75 {strides = array<i32>} : memref<4x64x32xbf16, #tpu.memory_space<vmem>>, vector<1x64x32xbf16>,
      %76 = vector.extract_strided_slice %63 {offsets = [0, 96], sizes = [64, 32], strides = [1, 1]} : vector<64x128xbf16> to vector<64x32xbf16>
      %c3 = arith.constant 3 : index
      %c0_52 = arith.constant 0 : index
      %c0_53 = arith.constant 0 : index
      %77 = vector.load %arg18[%c3, %c0_52, %c0_53] : memref<4x64x32xbf16, #tpu.memory_space<vmem>>, vector<1x64x32xbf16>
      %78 = vector.shape_cast %77 : vector<1x64x32xbf16> to vector<64x32xbf16>
      %79 = vector.shape_cast %76 : vector<64x32xbf16> to vector<1x64x32xbf16>
      tpu.vector_store %arg18[%c3, %c0_52, %c0_53], %79 {strides = array<i32>} : memref<4x64x32xbf16, #tpu.memory_space<vmem>>, vector<1x64x32xbf16>,
      %cst_54 = arith.constant 0xFF800000 : f32
      %80 = vector.broadcast %cst_54 : f32 to vector<4x64x1xf32>
      %c0_55 = arith.constant 0 : index
      %c0_56 = arith.constant 0 : index
      %c0_57 = arith.constant 0 : index
      %81 = vector.load %arg19[%c0_55, %c0_56, %c0_57] : memref<4x64x1xf32, #tpu.memory_space<vmem>>, vector<4x64x1xf32>
      tpu.vector_store %arg19[%c0_55, %c0_56, %c0_57], %80 {strides = array<i32>} : memref<4x64x1xf32, #tpu.memory_space<vmem>>, vector<4x64x1xf32>,
      %cst_58 = arith.constant 0.000000e+00 : f32
      %82 = vector.broadcast %cst_58 : f32 to vector<4x64x1xf32>
      %c0_59 = arith.constant 0 : index
      %c0_60 = arith.constant 0 : index
      %c0_61 = arith.constant 0 : index
      %83 = vector.load %arg20[%c0_59, %c0_60, %c0_61] : memref<4x64x1xf32, #tpu.memory_space<vmem>>, vector<4x64x1xf32>
      tpu.vector_store %arg20[%c0_59, %c0_60, %c0_61], %82 {strides = array<i32>} : memref<4x64x1xf32, #tpu.memory_space<vmem>>, vector<4x64x1xf32>,
      %cst_62 = arith.constant 0.000000e+00 : f32
      %84 = vector.broadcast %cst_62 : f32 to vector<4x64x32xf32>
      %c0_63 = arith.constant 0 : index
      %c0_64 = arith.constant 0 : index
      %c0_65 = arith.constant 0 : index
      %85 = vector.load %arg21[%c0_63, %c0_64, %c0_65] : memref<4x64x32xf32, #tpu.memory_space<vmem>>, vector<4x64x32xf32>
      tpu.vector_store %arg21[%c0_63, %c0_64, %c0_65], %84 {strides = array<i32>} : memref<4x64x32xf32, #tpu.memory_space<vmem>>, vector<4x64x32xf32>,
    } else {
    }
    %c4_i32 = arith.constant 4 : i32
    %15 = arith.muli %arg2, %c4_i32 : i32
    %16 = tpu.assume_multiple %15, 4 : i32
    %17 = arith.index_cast %16 : i32 to index
    %18 = arith.index_cast %3 : i32 to index
    %c0_9 = arith.constant 0 : index
    %19 = vector.load %arg16[%17, %18, %c0_9] : memref<8x128x32xbf16, #tpu.memory_space<vmem>>, vector<4x64x32xbf16>
    %20 = arith.index_cast %16 : i32 to index
    %21 = arith.index_cast %3 : i32 to index
    %c0_10 = arith.constant 0 : index
    %22 = vector.load %arg17[%20, %21, %c0_10] : memref<8x128x32xbf16, #tpu.memory_space<vmem>>, vector<4x64x32xbf16>
    %c0_11 = arith.constant 0 : index
    %c0_12 = arith.constant 0 : index
    %c0_13 = arith.constant 0 : index
    %23 = vector.load %arg18[%c0_11, %c0_12, %c0_13] : memref<4x64x32xbf16, #tpu.memory_space<vmem>>, vector<4x64x32xbf16>
    "tpu.trace_start"() <{level = 10 : i32, message = "gqd,gkd->gqk"}> : () -> ()
    %cst = arith.constant dense<0.000000e+00> : vector<4x64x64xf32>
    %24 = tpu.matmul %23, %19, %cst {dimension_numbers = #tpu.dot_dimension_numbers<[2], [2], [1], [1], [0, 0, 0, 1, 1, 1], [0], [0]>} : vector<4x64x32xbf16>, vector<4x64x32xbf16>, vector<4x64x64xf32> -> vector<4x64x64xf32>
    "tpu.trace_stop"() : () -> ()
    %c0_14 = arith.constant 0 : index
    %c0_15 = arith.constant 0 : index
    %c0_16 = arith.constant 0 : index
    %25 = vector.load %arg19[%c0_14, %c0_15, %c0_16] : memref<4x64x1xf32, #tpu.memory_space<vmem>>, vector<4x64x1xf32>
    %cst_17 = arith.constant dense<0xFF800000> : vector<4x64xf32>
    %26 = vector.multi_reduction <maximumf>, %24, %cst_17 [2] : vector<4x64x64xf32> to vector<4x64xf32>
    %27 = vector.shape_cast %26 : vector<4x64xf32> to vector<4x64x1xf32>
    %28 = arith.maximumf %25, %27 : vector<4x64x1xf32>
    %29 = arith.subf %25, %28 : vector<4x64x1xf32>
    %30 = math.exp %29 : vector<4x64x1xf32>
    %31 = vector.broadcast %28 : vector<4x64x1xf32> to vector<4x64x64xf32>
    %32 = arith.subf %24, %31 : vector<4x64x64xf32>
    %33 = math.exp %32 : vector<4x64x64xf32>
    %c0_18 = arith.constant 0 : index
    %c0_19 = arith.constant 0 : index
    %c0_20 = arith.constant 0 : index
    %34 = vector.load %arg20[%c0_18, %c0_19, %c0_20] : memref<4x64x1xf32, #tpu.memory_space<vmem>>, vector<4x64x1xf32>
    %35 = arith.mulf %30, %34 : vector<4x64x1xf32>
    %cst_21 = arith.constant dense<0.000000e+00> : vector<4x64xf32>
    %36 = vector.multi_reduction <add>, %33, %cst_21 [2] : vector<4x64x64xf32> to vector<4x64xf32>
    %37 = vector.shape_cast %36 : vector<4x64xf32> to vector<4x64x1xf32>
    %38 = arith.addf %35, %37 : vector<4x64x1xf32>
    %c0_22 = arith.constant 0 : index
    %c0_23 = arith.constant 0 : index
    %c0_24 = arith.constant 0 : index
    %39 = vector.load %arg20[%c0_22, %c0_23, %c0_24] : memref<4x64x1xf32, #tpu.memory_space<vmem>>, vector<4x64x1xf32>
    tpu.vector_store %arg20[%c0_22, %c0_23, %c0_24], %38 {strides = array<i32>} : memref<4x64x1xf32, #tpu.memory_space<vmem>>, vector<4x64x1xf32>,
    %c0_25 = arith.constant 0 : index
    %c0_26 = arith.constant 0 : index
    %c0_27 = arith.constant 0 : index
    %40 = vector.load %arg21[%c0_25, %c0_26, %c0_27] : memref<4x64x32xf32, #tpu.memory_space<vmem>>, vector<4x64x32xf32>
    %41 = vector.broadcast %30 : vector<4x64x1xf32> to vector<4x64x32xf32>
    %42 = arith.mulf %41, %40 : vector<4x64x32xf32>
    %43 = arith.truncf %33 : vector<4x64x64xf32> to vector<4x64x64xbf16>
    "tpu.trace_start"() <{level = 10 : i32, message = "gqk,gkd->gqd"}> : () -> ()
    %cst_28 = arith.constant dense<0.000000e+00> : vector<4x64x32xf32>
    %44 = tpu.matmul %43, %22, %cst_28 {dimension_numbers = #tpu.dot_dimension_numbers<[2], [1], [1], [2], [0, 0, 0, 1, 1, 2], [0], [0]>} : vector<4x64x64xbf16>, vector<4x64x32xbf16>, vector<4x64x32xf32> -> vector<4x64x32xf32>
    "tpu.trace_stop"() : () -> ()
    %45 = arith.addf %42, %44 : vector<4x64x32xf32>
    %c0_29 = arith.constant 0 : index
    %c0_30 = arith.constant 0 : index
    %c0_31 = arith.constant 0 : index
    %46 = vector.load %arg21[%c0_29, %c0_30, %c0_31] : memref<4x64x32xf32, #tpu.memory_space<vmem>>, vector<4x64x32xf32>
    tpu.vector_store %arg21[%c0_29, %c0_30, %c0_31], %45 {strides = array<i32>} : memref<4x64x32xf32, #tpu.memory_space<vmem>>, vector<4x64x32xf32>,
    %c0_32 = arith.constant 0 : index
    %c0_33 = arith.constant 0 : index
    %c0_34 = arith.constant 0 : index
    %47 = vector.load %arg19[%c0_32, %c0_33, %c0_34] : memref<4x64x1xf32, #tpu.memory_space<vmem>>, vector<4x64x1xf32>
    tpu.vector_store %arg19[%c0_32, %c0_33, %c0_34], %28 {strides = array<i32>} : memref<4x64x1xf32, #tpu.memory_space<vmem>>, vector<4x64x1xf32>,
    %c1_i32 = arith.constant 1 : i32
    %48 = arith.cmpi eq, %arg3, %c1_i32 : i32
    %49 = arith.extui %48 : i1 to i32
    %c0_i32_35 = arith.constant 0 : i32
    %50 = arith.cmpi ne, %49, %c0_i32_35 : i32
    scf.if %50 {
      %c0_39 = arith.constant 0 : index
      %c0_40 = arith.constant 0 : index
      %c0_41 = arith.constant 0 : index
      %56 = vector.load %arg21[%c0_39, %c0_40, %c0_41] : memref<4x64x32xf32, #tpu.memory_space<vmem>>, vector<4x64x32xf32>
      %c0_42 = arith.constant 0 : index
      %c0_43 = arith.constant 0 : index
      %c0_44 = arith.constant 0 : index
      %57 = vector.load %arg20[%c0_42, %c0_43, %c0_44] : memref<4x64x1xf32, #tpu.memory_space<vmem>>, vector<4x64x1xf32>
      %58 = tpu.reciprocal %57 {approx = true} : vector<4x64x1xf32> -> vector<4x64x1xf32>
      %59 = vector.broadcast %58 : vector<4x64x1xf32> to vector<4x64x32xf32>
      %60 = arith.mulf %56, %59 : vector<4x64x32xf32>
      %61 = vector.extract_strided_slice %60 {offsets = [0, 0, 0], sizes = [1, 64, 32], strides = [1, 1, 1]} : vector<4x64x32xf32> to vector<1x64x32xf32>
      %62 = vector.shape_cast %61 : vector<1x64x32xf32> to vector<64x32xf32>
      %63 = vector.extract_strided_slice %60 {offsets = [1, 0, 0], sizes = [1, 64, 32], strides = [1, 1, 1]} : vector<4x64x32xf32> to vector<1x64x32xf32>
      %64 = vector.shape_cast %63 : vector<1x64x32xf32> to vector<64x32xf32>
      %65 = vector.extract_strided_slice %60 {offsets = [2, 0, 0], sizes = [1, 64, 32], strides = [1, 1, 1]} : vector<4x64x32xf32> to vector<1x64x32xf32>
      %66 = vector.shape_cast %65 : vector<1x64x32xf32> to vector<64x32xf32>
      %67 = vector.extract_strided_slice %60 {offsets = [3, 0, 0], sizes = [1, 64, 32], strides = [1, 1, 1]} : vector<4x64x32xf32> to vector<1x64x32xf32>
      %68 = vector.shape_cast %67 : vector<1x64x32xf32> to vector<64x32xf32>
      %69 = tpu.concatenate %62, %64, %66, %68 in 1 : vector<64x32xf32>, vector<64x32xf32>, vector<64x32xf32>, vector<64x32xf32> -> vector<64x128xf32>
      %c0_45 = arith.constant 0 : index
      %c0_46 = arith.constant 0 : index
      %70 = vector.load %arg22[%c0_45, %c0_46] : memref<64x128xf32, #tpu.memory_space<vmem>>, vector<64x128xf32>
      %71 = arith.truncf %69 : vector<64x128xf32> to vector<64x128xbf16>
      %72 = arith.index_cast %arg2 : i32 to index
      %c0_47 = arith.constant 0 : index
      %c0_48 = arith.constant 0 : index
      %73 = vector.load %arg11[%72, %c0_47, %c0_48] : memref<2x128x128xbf16, #tpu.memory_space<vmem>>, vector<1x128x128xbf16>
      %74 = vector.shape_cast %73 : vector<1x128x128xbf16> to vector<128x128xbf16>
      %cst_49 = arith.constant dense<0.000000e+00> : vector<64x128xf32>
      %75 = tpu.matmul %71, %74, %cst_49 {dimension_numbers = #tpu.dot_dimension_numbers<[1], [0], [0], [1], [0, 0, 1, 1], [], []>} : vector<64x128xbf16>, vector<128x128xbf16>, vector<64x128xf32> -> vector<64x128xf32>
      %76 = arith.addf %70, %75 : vector<64x128xf32>
      %c0_50 = arith.constant 0 : index
      %c0_51 = arith.constant 0 : index
      %77 = vector.load %arg22[%c0_50, %c0_51] : memref<64x128xf32, #tpu.memory_space<vmem>>, vector<64x128xf32>
      tpu.vector_store %arg22[%c0_50, %c0_51], %76 {strides = array<i32>} : memref<64x128xf32, #tpu.memory_space<vmem>>, vector<64x128xf32>,
    } else {
    }
    %c1_i32_36 = arith.constant 1 : i32
    %51 = arith.cmpi eq, %arg2, %c1_i32_36 : i32
    %c1_i32_37 = arith.constant 1 : i32
    %52 = arith.cmpi eq, %arg3, %c1_i32_37 : i32
    %53 = arith.andi %51, %52 : i1
    %54 = arith.extui %53 : i1 to i32
    %c0_i32_38 = arith.constant 0 : i32
    %55 = arith.cmpi ne, %54, %c0_i32_38 : i32
    scf.if %55 {
      %c0_39 = arith.constant 0 : index
      %c0_40 = arith.constant 0 : index
      %56 = vector.load %arg22[%c0_39, %c0_40] : memref<64x128xf32, #tpu.memory_space<vmem>>, vector<64x128xf32>
      %c0_41 = arith.constant 0 : index
      %c0_42 = arith.constant 0 : index
      %57 = vector.load %arg12[%c0_41, %c0_42] : memref<1x128xf32, #tpu.memory_space<vmem>>, vector<1x128xf32>
      %58 = vector.broadcast %57 : vector<1x128xf32> to vector<64x128xf32>
      %59 = arith.addf %56, %58 : vector<64x128xf32>
      %c0_43 = arith.constant 0 : index
      %c0_44 = arith.constant 0 : index
      %c0_45 = arith.constant 0 : index
      %60 = vector.load %arg13[%c0_43, %c0_44, %c0_45] : memref<1x64x128xf32, #tpu.memory_space<vmem>>, vector<1x64x128xf32>
      %61 = vector.shape_cast %60 : vector<1x64x128xf32> to vector<64x128xf32>
      %62 = vector.shape_cast %59 : vector<64x128xf32> to vector<1x64x128xf32>
      tpu.vector_store %arg13[%c0_43, %c0_44, %c0_45], %62 {strides = array<i32>} : memref<1x64x128xf32, #tpu.memory_space<vmem>>, vector<1x64x128xf32>,
    } else {
    }
    return
  }
  func.func @transform_0(%arg0: i32, %arg1: i32, %arg2: i32, %arg3: i32) -> (i32, i32, i32) {
    %c0_i32 = arith.constant 0 : i32
    %c0_i32_0 = arith.constant 0 : i32
    return %arg0, %arg1, %c0_i32 : i32, i32, i32
  }
  func.func @transform_1(%arg0: i32, %arg1: i32, %arg2: i32, %arg3: i32) -> (i32, i32, i32) {
    %c0_i32 = arith.constant 0 : i32
    %0 = arith.cmpi eq, %arg1, %c0_i32 : i32
    %c0_i32_0 = arith.constant 0 : i32
    %1 = arith.cmpi eq, %arg2, %c0_i32_0 : i32
    %2 = arith.andi %0, %1 : i1
    %c1_i32 = arith.constant 1 : i32
    %3 = arith.select %2, %arg3, %c1_i32 : i32
    %c0_i32_1 = arith.constant 0 : i32
    %c0_i32_2 = arith.constant 0 : i32
    return %arg0, %3, %c0_i32_1 : i32, i32, i32
  }
  func.func @transform_2(%arg0: i32, %arg1: i32, %arg2: i32, %arg3: i32) -> (i32, i32) {
    %c0_i32 = arith.constant 0 : i32
    %c0_i32_0 = arith.constant 0 : i32
    %c0_i32_1 = arith.constant 0 : i32
    return %c0_i32, %c0_i32_0 : i32, i32
  }
  func.func @transform_3(%arg0: i32, %arg1: i32, %arg2: i32, %arg3: i32) -> (i32, i32) {
    %c0_i32 = arith.constant 0 : i32
    %c0_i32_0 = arith.constant 0 : i32
    %c0_i32_1 = arith.constant 0 : i32
    return %c0_i32, %c0_i32_0 : i32, i32
  }
  func.func @transform_4(%arg0: i32, %arg1: i32, %arg2: i32, %arg3: i32) -> (i32, i32, i32) {
    %c0_i32 = arith.constant 0 : i32
    %c0_i32_0 = arith.constant 0 : i32
    %c0_i32_1 = arith.constant 0 : i32
    %c0_i32_2 = arith.constant 0 : i32
    return %c0_i32, %c0_i32_0, %c0_i32_1 : i32, i32, i32
  }
  func.func @transform_5(%arg0: i32, %arg1: i32, %arg2: i32, %arg3: i32) -> (i32, i32, i32) {
    %c0_i32 = arith.constant 0 : i32
    %c0_i32_0 = arith.constant 0 : i32
    %c0_i32_1 = arith.constant 0 : i32
    %c0_i32_2 = arith.constant 0 : i32
    return %c0_i32, %c0_i32_0, %c0_i32_1 : i32, i32, i32
  }
  func.func @transform_6(%arg0: i32, %arg1: i32, %arg2: i32, %arg3: i32) -> (i32, i32, i32) {
    %c0_i32 = arith.constant 0 : i32
    %c0_i32_0 = arith.constant 0 : i32
    %c0_i32_1 = arith.constant 0 : i32
    %c0_i32_2 = arith.constant 0 : i32
    return %c0_i32, %c0_i32_0, %c0_i32_1 : i32, i32, i32
  }
  func.func @transform_7(%arg0: i32, %arg1: i32, %arg2: i32, %arg3: i32) -> (i32, i32, i32) {
    %c0_i32 = arith.constant 0 : i32
    %c0_i32_0 = arith.constant 0 : i32
    %c0_i32_1 = arith.constant 0 : i32
    %c0_i32_2 = arith.constant 0 : i32
    return %c0_i32, %c0_i32_0, %c0_i32_1 : i32, i32, i32
  }
  func.func @transform_8(%arg0: i32, %arg1: i32, %arg2: i32, %arg3: i32) -> (i32, i32) {
    %c0_i32 = arith.constant 0 : i32
    %c0_i32_0 = arith.constant 0 : i32
    %c0_i32_1 = arith.constant 0 : i32
    return %c0_i32, %c0_i32_0 : i32, i32
  }
  func.func @transform_9(%arg0: i32, %arg1: i32, %arg2: i32, %arg3: i32) -> (i32, i32, i32) {
    %c0_i32 = arith.constant 0 : i32
    %c0_i32_0 = arith.constant 0 : i32
    return %arg0, %arg1, %c0_i32 : i32, i32, i32
  }
}

</mosaic_0001>

<llo_original>
// kernel: tpu_custom_call.1
$region0: #{tpu_custom_call.1}
  #allocation0 [shape = 'u32[]', space=smem, size = 0x4, offset = 0x4, fixed_abs, tag = 'smem constant byte address 0x4 - core index']
  #allocation1 [shape = 'u32[144,128]{1,0:T(1,128)}', space=vmem, size = 0x12000, scoped, tag = 'internal scratch']
  #allocation2 [shape = 'bf16[64,128]{1,0:T(8,128)(2,1)}', space=vmem, size = 0x4000, scoped, tag = 'scratch operand']
  #allocation3 [shape = 'bf16[128,128]{1,0:T(8,128)(2,1)}', space=vmem, size = 0x8000, scoped, tag = 'scratch operand']
  #allocation4 [shape = 'bf16[8,128,32]{2,1,0:T(8,128)(2,1)}', space=vmem, size = 0x40000, scoped, tag = 'scratch operand']
  #allocation5 [shape = 'bf16[8,128,32]{2,1,0:T(8,128)(2,1)}', space=vmem, size = 0x40000, scoped, tag = 'scratch operand']
  #allocation6 [shape = 'bf16[4,64,32]{2,1,0:T(8,128)(2,1)}', space=vmem, size = 0x10000, scoped, tag = 'scratch operand']
  #allocation7 [shape = 'f32[4,64,1]{2,1,0:T(8,128)}', space=vmem, size = 0x20000, scoped, tag = 'scratch operand']
  #allocation8 [shape = 'f32[4,64,1]{2,1,0:T(8,128)}', space=vmem, size = 0x20000, scoped, tag = 'scratch operand']
  #allocation9 [shape = 'f32[4,64,32]{2,1,0:T(8,128)}', space=vmem, size = 0x20000, scoped, tag = 'scratch operand']
  #allocation10 [shape = 'f32[64,128]{1,0:T(8,128)}', space=vmem, size = 0x8000, scoped, tag = 'scratch operand']
  %s0 = inlined_call_operand.hbm [shape: f32[2,128,128], index: 0, kind: input, shape index: {}]
  %s1 = inlined_call_operand.hbm [shape: f32[2,128,128], index: 1, kind: input, shape index: {}]
  %s2 = inlined_call_operand.vmem [shape: f32[1,128], index: 2, kind: input, shape index: {}]
  %s3 = inlined_call_operand.vmem [shape: f32[1,128], index: 3, kind: input, shape index: {}]
  %s4 = inlined_call_operand.hbm [shape: bf16[2,128,128], index: 4, kind: input, shape index: {}]
  %s5 = inlined_call_operand.hbm [shape: bf16[2,128,128], index: 5, kind: input, shape index: {}]
  %s6 = inlined_call_operand.hbm [shape: bf16[2,128,128], index: 6, kind: input, shape index: {}]
  %s7 = inlined_call_operand.hbm [shape: bf16[2,128,128], index: 7, kind: input, shape index: {}]
  %s8 = inlined_call_operand.vmem [shape: f32[1,128], index: 8, kind: input, shape index: {}]
  %s9 = inlined_call_operand.hbm [shape: f32[2,128,128], index: 9, kind: output, shape index: {}]
  %s10 = sld [smem:[#allocation0]]
  $region117: #{tpu_custom_call.1} parent=0
    _
  %s12 = ssub.s32 1, %s10
  %s13 = scalar_select 0, %s12, %s10
  $region1: #{tpu_custom_call.1} parent=0
    #allocation11 [shape = 'u8[65536]{0}', space=vmem, size = 0x10000, scoped, tag = 'input window, operand 0']
    #allocation12 [shape = 's32[2]{0}', space=sflag, size = 0x8, scoped, tag = 'scoped memory for tpu_custom_call.1']
    #allocation13 [shape = 's32[2]{0}', space=sflag, size = 0x8, scoped, tag = 'scoped memory for tpu_custom_call.1']
    #allocation14 [shape = 'u8[65536]{0}', space=vmem, size = 0x10000, scoped, tag = 'input window, operand 1']
    #allocation15 [shape = 's32[2]{0}', space=sflag, size = 0x8, scoped, tag = 'scoped memory for tpu_custom_call.1']
    #allocation16 [shape = 'u8[65536]{0}', space=vmem, size = 0x10000, scoped, tag = 'input window, operand 4, single buffered']
    #allocation17 [shape = 'u8[65536]{0}', space=vmem, size = 0x10000, scoped, tag = 'input window, operand 5, single buffered']
    #allocation18 [shape = 's32[1]{0}', space=sflag, size = 0x4, scoped, tag = 'scoped memory for tpu_custom_call.1']
    #allocation19 [shape = 'u8[65536]{0}', space=vmem, size = 0x10000, scoped, tag = 'input window, operand 6, single buffered']
    #allocation20 [shape = 'u8[65536]{0}', space=vmem, size = 0x10000, scoped, tag = 'input window, operand 7, single buffered']
    #allocation21 [shape = 's32[1]{0}', space=sflag, size = 0x4, scoped, tag = 'scoped memory for tpu_custom_call.1']
    #allocation22 [shape = 'u8[65536]{0}', space=vmem, size = 0x10000, scoped, tag = 'output window, operand 0']
    %14 = vsyncpa [#allocation12], 0
    %s15 = scalar_lea.sflag [#allocation12], 1
    %16 = vsyncpa %s15, 0
    %17 = vsyncpa [#allocation15], 0
    %s18 = scalar_lea.sflag [#allocation15], 1
    %19 = vsyncpa %s18, 0
    %20 = vsyncpa [#allocation18], 0
    %21 = vsyncpa [#allocation21], 0
    %22 = vsyncpa [#allocation13], 0
    %s23 = scalar_lea.sflag [#allocation13], 1
    %24 = vsyncpa %s23, 0
    loop: start=0, step=1, limit=18
    $region2: #{tpu_custom_call.1} parent=1 // loop_pre_header
      _
    $region3: #{tpu_custom_call.1} parent=1 // loop_header
      %s26 = sphi 0, %s30
      %p27 = scmp.ge.s32.totalorder %s26, 18
      %s33 = sphi 0, %s59
      %s34 = sphi 0, %s55
      %s35 = sphi 0, %s51
      %s36 = sphi 0, %s47
      %s37 = sphi 0, %s33
      %s38 = sphi 0, %s34
      %s39 = sphi 0, %s35
      %s40 = sphi 0, %s36
      %s41 = sphi 0, %s37
      %s42 = sphi 0, %s38
      %s43 = sphi 0, %s39
      %s44 = sphi 0, %s40
      %s64 = sphi 0, %s66
      %s67 = sphi 0, %s64
      %s68 = sphi 0, %s67
      %s84 = sphi 0, %s68
      %s102 = sphi 0, %s104
      %s105 = sphi 0, %s102
      %s106 = sphi 0, %s105
      %s122 = sphi 0, %s106
      %s126 = sphi 0, %s126
      %s128 = sphi 0, %s126
      %s129 = sphi 0, %s128
      %s143 = sphi 0, %s129
      %s147 = sphi 0, %s147
      %s149 = sphi 0, %s147
      %s150 = sphi 0, %s149
      %s164 = sphi 0, %s150
      %s168 = sphi 0, %s168
      %s170 = sphi 0, %s168
      %s171 = sphi 0, %s170
      %s185 = sphi 0, %s171
      %s189 = sphi 0, %s189
      %s191 = sphi 0, %s189
      %s192 = sphi 0, %s191
      %s206 = sphi 0, %s192
      %s210 = sphi 0, %s210
      %s212 = sphi 0, %s210
      %s213 = sphi 0, %s212
      %s227 = sphi 0, %s213
      %s231 = sphi 0, %s231
      %s233 = sphi 0, %s231
      %s234 = sphi 0, %s233
      %s248 = sphi 0, %s234
      %s252 = sphi 0, %s252
      %s254 = sphi 0, %s252
      %s255 = sphi 0, %s254
      %s269 = sphi 0, %s255
      %s277 = sphi 0, %s279
      %s280 = sphi 0, %s277
      %s281 = sphi 0, %s280
      %s297 = sphi 0, %s281
    $region4: #{tpu_custom_call.1} parent=1 // loop_header_branch
      %29 = sbr.rel (%p27) target = $region8
    $region5: #{tpu_custom_call.1} parent=1 // loop_body
      %s31 = ssub.s32 %s26, 1
      %s32 = ssub.s32 %s26, 2
      %s45 = sadd.s32 1, %s36
      %p46 = scmp.ge.s32.totalorder %s45, 2
      %s47 = scalar_select %p46, 0, %s45
      %s48 = sadd.s32 1, %s35
      %s49 = scalar_select %p46, %s48, %s35
      %p50 = scmp.ge.s32.totalorder %s49, 2
      %s51 = scalar_select %p50, 0, %s49
      %s52 = sadd.s32 1, %s34
      %s53 = scalar_select %p50, %s52, %s34
      %p54 = scmp.ge.s32.totalorder %s53, 2
      %s55 = scalar_select %p54, 0, %s53
      %s56 = sadd.s32 1, %s33
      %s57 = scalar_select %p54, %s56, %s33
      %p58 = scmp.ge.s32.totalorder %s57, 2
      %s59 = scalar_select %p58, 0, %s57
      %s60 = ssub.s32 %s33, %s59
      %s61 = ssub.s32 %s34, %s55
      %s62 = sor.u32 %s60, %s61
      %p63 = scmp.eq.s32.totalorder %s62, 0
      %s65 = sadd.s32 %s64, 1
      %s66 = scalar_select %p63, %s64, %s65
      %p69 = pneg %p63
      %p70 = scmp.eq.s32.totalorder %s26, 15
      %p71 = por %p69, %p70
      %p72 = scmp.ne.s32.totalorder %s64, %s67
      %p73 = scmp.eq.s32.totalorder %s26, 0
      %p74 = por %p72, %p73
      %p75 = scmp.ne.s32.totalorder %s64, %s67
      %p76 = scmp.eq.s32.totalorder %s31, 15
      %p77 = por %p75, %p76
      %p78 = scmp.ne.s32.totalorder %s67, %s68
      %p79 = scmp.eq.s32.totalorder %s31, 0
      %p80 = por %p78, %p79
      %p81 = scmp.ne.s32.totalorder %s67, %s68
      %p82 = scmp.eq.s32.totalorder %s32, 15
      %p83 = por %p81, %p82
      %p85 = scmp.ne.s32.totalorder %s68, %s84
      %p86 = scmp.eq.s32.totalorder %s32, 0
      %p87 = por %p85, %p86
      %p88 = scmp.eq.s32.totalorder %s34, 0
      %p89 = scmp.eq.s32.totalorder %s35, 0
      %p90 = pnand %p88, %p89
      %p91 = pneg %p90
      %s92 = scalar_select %p91, %s36, 1
      %p93 = scmp.eq.s32.totalorder %s55, 0
      %p94 = scmp.eq.s32.totalorder %s51, 0
      %p95 = pnand %p93, %p94
      %p96 = pneg %p95
      %s97 = scalar_select %p96, %s47, 1
      %s98 = ssub.s32 %s33, %s59
      %s99 = ssub.s32 %s92, %s97
      %s100 = sor.u32 %s98, %s99
      %p101 = scmp.eq.s32.totalorder %s100, 0
      %s103 = sadd.s32 %s102, 1
      %s104 = scalar_select %p101, %s102, %s103
      %p107 = pneg %p101
      %p108 = scmp.eq.s32.totalorder %s26, 15
      %p109 = por %p107, %p108
      %p110 = scmp.ne.s32.totalorder %s102, %s105
      %p111 = scmp.eq.s32.totalorder %s26, 0
      %p112 = por %p110, %p111
      %p113 = scmp.ne.s32.totalorder %s102, %s105
      %p114 = scmp.eq.s32.totalorder %s31, 15
      %p115 = por %p113, %p114
      %p116 = scmp.ne.s32.totalorder %s105, %s106
      %p117 = scmp.eq.s32.totalorder %s31, 0
      %p118 = por %p116, %p117
      %p119 = scmp.ne.s32.totalorder %s105, %s106
      %p120 = scmp.eq.s32.totalorder %s32, 15
      %p121 = por %p119, %p120
      %p123 = scmp.ne.s32.totalorder %s106, %s122
      %p124 = scmp.eq.s32.totalorder %s32, 0
      %p125 = por %p123, %p124
      %s127 = sadd.s32 %s126, 1
      %p130 = scmp.eq.s32.totalorder %s26, 15
      %p131 = scmp.ne.s32.totalorder %s126, %s128
      %p132 = scmp.eq.s32.totalorder %s26, 0
      %p133 = por %p131, %p132
      %p134 = scmp.ne.s32.totalorder %s126, %s128
      %p135 = scmp.eq.s32.totalorder %s31, 15
      %p136 = por %p134, %p135
      %p137 = scmp.ne.s32.totalorder %s128, %s129
      %p138 = scmp.eq.s32.totalorder %s31, 0
      %p139 = por %p137, %p138
      %p140 = scmp.ne.s32.totalorder %s128, %s129
      %p141 = scmp.eq.s32.totalorder %s32, 15
      %p142 = por %p140, %p141
      %p144 = scmp.ne.s32.totalorder %s129, %s143
      %p145 = scmp.eq.s32.totalorder %s32, 0
      %p146 = por %p144, %p145
      %s148 = sadd.s32 %s147, 1
      %p151 = scmp.eq.s32.totalorder %s26, 15
      %p152 = scmp.ne.s32.totalorder %s147, %s149
      %p153 = scmp.eq.s32.totalorder %s26, 0
      %p154 = por %p152, %p153
      %p155 = scmp.ne.s32.totalorder %s147, %s149
      %p156 = scmp.eq.s32.totalorder %s31, 15
      %p157 = por %p155, %p156
      %p158 = scmp.ne.s32.totalorder %s149, %s150
      %p159 = scmp.eq.s32.totalorder %s31, 0
      %p160 = por %p158, %p159
      %p161 = scmp.ne.s32.totalorder %s149, %s150
      %p162 = scmp.eq.s32.totalorder %s32, 15
      %p163 = por %p161, %p162
      %p165 = scmp.ne.s32.totalorder %s150, %s164
      %p166 = scmp.eq.s32.totalorder %s32, 0
      %p167 = por %p165, %p166
      %s169 = sadd.s32 %s168, 1
      %p172 = scmp.eq.s32.totalorder %s26, 15
      %p173 = scmp.ne.s32.totalorder %s168, %s170
      %p174 = scmp.eq.s32.totalorder %s26, 0
      %p175 = por %p173, %p174
      %p176 = scmp.ne.s32.totalorder %s168, %s170
      %p177 = scmp.eq.s32.totalorder %s31, 15
      %p178 = por %p176, %p177
      %p179 = scmp.ne.s32.totalorder %s170, %s171
      %p180 = scmp.eq.s32.totalorder %s31, 0
      %p181 = por %p179, %p180
      %p182 = scmp.ne.s32.totalorder %s170, %s171
      %p183 = scmp.eq.s32.totalorder %s32, 15
      %p184 = por %p182, %p183
      %p186 = scmp.ne.s32.totalorder %s171, %s185
      %p187 = scmp.eq.s32.totalorder %s32, 0
      %p188 = por %p186, %p187
      %s190 = sadd.s32 %s189, 1
      %p193 = scmp.eq.s32.totalorder %s26, 15
      %p194 = scmp.ne.s32.totalorder %s189, %s191
      %p195 = scmp.eq.s32.totalorder %s26, 0
      %p196 = por %p194, %p195
      %p197 = scmp.ne.s32.totalorder %s189, %s191
      %p198 = scmp.eq.s32.totalorder %s31, 15
      %p199 = por %p197, %p198
      %p200 = scmp.ne.s32.totalorder %s191, %s192
      %p201 = scmp.eq.s32.totalorder %s31, 0
      %p202 = por %p200, %p201
      %p203 = scmp.ne.s32.totalorder %s191, %s192
      %p204 = scmp.eq.s32.totalorder %s32, 15
      %p205 = por %p203, %p204
      %p207 = scmp.ne.s32.totalorder %s192, %s206
      %p208 = scmp.eq.s32.totalorder %s32, 0
      %p209 = por %p207, %p208
      %s211 = sadd.s32 %s210, 1
      %p214 = scmp.eq.s32.totalorder %s26, 15
      %p215 = scmp.ne.s32.totalorder %s210, %s212
      %p216 = scmp.eq.s32.totalorder %s26, 0
      %p217 = por %p215, %p216
      %p218 = scmp.ne.s32.totalorder %s210, %s212
      %p219 = scmp.eq.s32.totalorder %s31, 15
      %p220 = por %p218, %p219
      %p221 = scmp.ne.s32.totalorder %s212, %s213
      %p222 = scmp.eq.s32.totalorder %s31, 0
      %p223 = por %p221, %p222
      %p224 = scmp.ne.s32.totalorder %s212, %s213
      %p225 = scmp.eq.s32.totalorder %s32, 15
      %p226 = por %p224, %p225
      %p228 = scmp.ne.s32.totalorder %s213, %s227
      %p229 = scmp.eq.s32.totalorder %s32, 0
      %p230 = por %p228, %p229
      %s232 = sadd.s32 %s231, 1
      %p235 = scmp.eq.s32.totalorder %s26, 15
      %p236 = scmp.ne.s32.totalorder %s231, %s233
      %p237 = scmp.eq.s32.totalorder %s26, 0
      %p238 = por %p236, %p237
      %p239 = scmp.ne.s32.totalorder %s231, %s233
      %p240 = scmp.eq.s32.totalorder %s31, 15
      %p241 = por %p239, %p240
      %p242 = scmp.ne.s32.totalorder %s233, %s234
      %p243 = scmp.eq.s32.totalorder %s31, 0
      %p244 = por %p242, %p243
      %p245 = scmp.ne.s32.totalorder %s233, %s234
      %p246 = scmp.eq.s32.totalorder %s32, 15
      %p247 = por %p245, %p246
      %p249 = scmp.ne.s32.totalorder %s234, %s248
      %p250 = scmp.eq.s32.totalorder %s32, 0
      %p251 = por %p249, %p250
      %s253 = sadd.s32 %s252, 1
      %p256 = scmp.eq.s32.totalorder %s26, 15
      %p257 = scmp.ne.s32.totalorder %s252, %s254
      %p258 = scmp.eq.s32.totalorder %s26, 0
      %p259 = por %p257, %p258
      %p260 = scmp.ne.s32.totalorder %s252, %s254
      %p261 = scmp.eq.s32.totalorder %s31, 15
      %p262 = por %p260, %p261
      %p263 = scmp.ne.s32.totalorder %s254, %s255
      %p264 = scmp.eq.s32.totalorder %s31, 0
      %p265 = por %p263, %p264
      %p266 = scmp.ne.s32.totalorder %s254, %s255
      %p267 = scmp.eq.s32.totalorder %s32, 15
      %p268 = por %p266, %p267
      %p270 = scmp.ne.s32.totalorder %s255, %s269
      %p271 = scmp.eq.s32.totalorder %s32, 0
      %p272 = por %p270, %p271
      %s273 = ssub.s32 %s33, %s59
      %s274 = ssub.s32 %s34, %s55
      %s275 = sor.u32 %s273, %s274
      %p276 = scmp.eq.s32.totalorder %s275, 0
      %s278 = sadd.s32 %s277, 1
      %s279 = scalar_select %p276, %s277, %s278
      %p282 = pneg %p276
      %p283 = scmp.eq.s32.totalorder %s26, 15
      %p284 = por %p282, %p283
      %p285 = scmp.ne.s32.totalorder %s277, %s280
      %p286 = scmp.eq.s32.totalorder %s26, 0
      %p287 = por %p285, %p286
      %p288 = scmp.ne.s32.totalorder %s277, %s280
      %p289 = scmp.eq.s32.totalorder %s31, 15
      %p290 = por %p288, %p289
      %p291 = scmp.ne.s32.totalorder %s280, %s281
      %p292 = scmp.eq.s32.totalorder %s31, 0
      %p293 = por %p291, %p292
      %p294 = scmp.ne.s32.totalorder %s280, %s281
      %p295 = scmp.eq.s32.totalorder %s32, 15
      %p296 = por %p294, %p295
      %p298 = scmp.ne.s32.totalorder %s281, %s297
      %p299 = scmp.eq.s32.totalorder %s32, 0
      %p300 = por %p298, %p299
      %p301 = scmp.le.s32.totalorder 1, %s26
      %p302 = scmp.lt.s32.totalorder %s26, 17
      %p303 = pnand %p301, %p302
      %p304 = pneg %p303
      // Predicated region
      $region9: #{tpu_custom_call.1} parent=5 // pred_check
        _
      $region10: #{tpu_custom_call.1} parent=5 // pred_check_branch
        %306 = sbr.rel (%p303) target = $region12
      $region11: #{tpu_custom_call.1} parent=5 // pred_region
        %s307 = ssub.s32 %s26, 1
        // Predicated region
        $region13: #{tpu_custom_call.1} parent=11 // pred_check
          %p308 = pneg %p139
        $region14: #{tpu_custom_call.1} parent=11 // pred_check_branch
          %310 = sbr.rel (%p308) target = $region16
        $region15: #{tpu_custom_call.1} parent=11 // pred_region
          _
        $region16: #{tpu_custom_call.1} parent=11 // pred_fallthru
          _
        // Predicated region
        $region17: #{tpu_custom_call.1} parent=11 // pred_check
          %p311 = pneg %p160
        $region18: #{tpu_custom_call.1} parent=11 // pred_check_branch
          %313 = sbr.rel (%p311) target = $region20
        $region19: #{tpu_custom_call.1} parent=11 // pred_region
          _
        $region20: #{tpu_custom_call.1} parent=11 // pred_fallthru
          _
        // Predicated region
        $region21: #{tpu_custom_call.1} parent=11 // pred_check
          %p314 = pneg %p181
        $region22: #{tpu_custom_call.1} parent=11 // pred_check_branch
          %316 = sbr.rel (%p314) target = $region24
        $region23: #{tpu_custom_call.1} parent=11 // pred_region
          %s318 = ssub.s32 2048, 2048
          %319 = vsyncadd [#allocation15], %s318
          %s320 = sshll.u32 [#allocation16], 4
          %s321 = int_to_ptr.vmem [resolvable:$true] %s320
          %326 = dma.hbm_to_vmem [thread:$0]  %s4, 2048, %s321, [#allocation15], 64, 64, 4
        $region24: #{tpu_custom_call.1} parent=11 // pred_fallthru
          _
        // Predicated region
        $region25: #{tpu_custom_call.1} parent=11 // pred_check
          %p327 = pneg %p202
        $region26: #{tpu_custom_call.1} parent=11 // pred_check_branch
          %329 = sbr.rel (%p327) target = $region28
        $region27: #{tpu_custom_call.1} parent=11 // pred_region
          %s331 = ssub.s32 2048, 2048
          %332 = vsyncadd [#allocation18], %s331
          %s333 = sshll.u32 [#allocation17], 4
          %s334 = int_to_ptr.vmem [resolvable:$true] %s333
          %339 = dma.hbm_to_vmem [thread:$0]  %s5, 2048, %s334, [#allocation18], 64, 64, 4
        $region28: #{tpu_custom_call.1} parent=11 // pred_fallthru
          _
        // Predicated region
        $region29: #{tpu_custom_call.1} parent=11 // pred_check
          %p340 = pneg %p223
        $region30: #{tpu_custom_call.1} parent=11 // pred_check_branch
          %342 = sbr.rel (%p340) target = $region32
        $region31: #{tpu_custom_call.1} parent=11 // pred_region
          %s344 = ssub.s32 2048, 2048
          %345 = vsyncadd [#allocation18], %s344
          %s346 = sshll.u32 [#allocation19], 4
          %s347 = int_to_ptr.vmem [resolvable:$true] %s346
          %352 = dma.hbm_to_vmem [thread:$0]  %s6, 2048, %s347, [#allocation18], 64, 64, 4
        $region32: #{tpu_custom_call.1} parent=11 // pred_fallthru
          _
        // Predicated region
        $region33: #{tpu_custom_call.1} parent=11 // pred_check
          %p353 = pneg %p244
        $region34: #{tpu_custom_call.1} parent=11 // pred_check_branch
          %355 = sbr.rel (%p353) target = $region36
        $region35: #{tpu_custom_call.1} parent=11 // pred_region
          %s357 = ssub.s32 2048, 2048
          %358 = vsyncadd [#allocation21], %s357
          %s359 = sshll.u32 [#allocation20], 4
          %s360 = int_to_ptr.vmem [resolvable:$true] %s359
          %365 = dma.hbm_to_vmem [thread:$0]  %s7, 2048, %s360, [#allocation21], 64, 64, 4
        $region36: #{tpu_custom_call.1} parent=11 // pred_fallthru
          _
        // Predicated region
        $region37: #{tpu_custom_call.1} parent=11 // pred_check
          %p366 = pneg %p265
        $region38: #{tpu_custom_call.1} parent=11 // pred_check_branch
          %368 = sbr.rel (%p366) target = $region40
        $region39: #{tpu_custom_call.1} parent=11 // pred_region
          _
        $region40: #{tpu_custom_call.1} parent=11 // pred_fallthru
          _
      $region12: #{tpu_custom_call.1} parent=5 // pred_fallthru
        _
      %p369 = scmp.lt.s32.totalorder %s26, 16
      // Predicated region
      $region41: #{tpu_custom_call.1} parent=5 // pred_check
        %p370 = pneg %p369
      $region42: #{tpu_custom_call.1} parent=5 // pred_check_branch
        %372 = sbr.rel (%p370) target = $region44
      $region43: #{tpu_custom_call.1} parent=5 // pred_region
        // Predicated region
        $region45: #{tpu_custom_call.1} parent=43 // pred_check
          %p373 = pneg %p74
        $region46: #{tpu_custom_call.1} parent=43 // pred_check_branch
          %375 = sbr.rel (%p373) target = $region48
        $region47: #{tpu_custom_call.1} parent=43 // pred_region
          %s376 = sand.u32 %s64, 1
          %s377 = scalar_lea.sflag [#allocation12], %s376
          %s378 = sand.u32 %s64, 1
          %s379 = smul.addr %s378, 64
          %s380 = scalar_lea.vmem [#allocation11], %s379
          %s381 = smul.u32 8, %s34
          %s383 = ssub.s32 1024, 1024
          %384 = vsyncadd %s377, %s383
          %s385 = smul.addr %s33, 16
          %s386 = sadd.s32 %s381, %s385
          %s387 = smul.addr %s386, 128
          %s388 = scalar_lea.hbm %s0, %s387
          %s389 = sshll.u32 %s380, 4
          %s390 = int_to_ptr.vmem [resolvable:$true] %s389
          %395 = dma.hbm_to_vmem [thread:$0]  %s388, 1024, %s390, %s377, 128, 128, 8
        $region48: #{tpu_custom_call.1} parent=43 // pred_fallthru
          _
        // Predicated region
        $region49: #{tpu_custom_call.1} parent=43 // pred_check
          %p396 = pneg %p112
        $region50: #{tpu_custom_call.1} parent=43 // pred_check_branch
          %398 = sbr.rel (%p396) target = $region52
        $region51: #{tpu_custom_call.1} parent=43 // pred_region
          %s399 = sand.u32 %s26, 1
          %s400 = scalar_lea.sflag [#allocation15], %s399
          %s401 = sand.u32 %s102, 1
          %s402 = smul.addr %s401, 64
          %s403 = scalar_lea.vmem [#allocation14], %s402
          %p404 = scmp.eq.s32.totalorder %s34, 0
          %p405 = scmp.eq.s32.totalorder %s35, 0
          %p406 = pnand %p404, %p405
          %p407 = pneg %p406
          %s408 = scalar_select %p407, %s36, 1
          %s409 = smul.u32 8, %s408
          %s411 = ssub.s32 1024, 1024
          %412 = vsyncadd %s400, %s411
          %s413 = smul.addr %s33, 16
          %s414 = sadd.s32 %s409, %s413
          %s415 = smul.addr %s414, 128
          %s416 = scalar_lea.hbm %s1, %s415
          %s417 = sshll.u32 %s403, 4
          %s418 = int_to_ptr.vmem [resolvable:$true] %s417
          %423 = dma.hbm_to_vmem [thread:$0]  %s416, 1024, %s418, %s400, 128, 128, 8
        $region52: #{tpu_custom_call.1} parent=43 // pred_fallthru
          _
      $region44: #{tpu_custom_call.1} parent=5 // pred_fallthru
        _
      %p424 = scmp.le.s32.totalorder 1, %s26
      %p425 = scmp.lt.s32.totalorder %s26, 17
      %p426 = pnand %p424, %p425
      %p427 = pneg %p426
      // Predicated region
      $region53: #{tpu_custom_call.1} parent=5 // pred_check
        _
      $region54: #{tpu_custom_call.1} parent=5 // pred_check_branch
        %429 = sbr.rel (%p426) target = $region56
      $region55: #{tpu_custom_call.1} parent=5 // pred_region
        %s430 = ssub.s32 %s26, 1
        %s431 = sand.u32 %s67, 1
        %s432 = scalar_lea.sflag [#allocation12], %s431
        %s433 = sand.u32 %s67, 1
        %s434 = smul.addr %s433, 64
        %s435 = scalar_lea.vmem [#allocation11], %s434
        // Predicated region
        $region57: #{tpu_custom_call.1} parent=55 // pred_check
          %p436 = pneg %p80
        $region58: #{tpu_custom_call.1} parent=55 // pred_check_branch
          %438 = sbr.rel (%p436) target = $region60
        $region59: #{tpu_custom_call.1} parent=55 // pred_region
          %439 = dma.done %s432, 1024
        $region60: #{tpu_custom_call.1} parent=55 // pred_fallthru
          _
        %s440 = sand.u32 %s31, 1
        %s441 = scalar_lea.sflag [#allocation15], %s440
        %s442 = sand.u32 %s105, 1
        %s443 = smul.addr %s442, 64
        %s444 = scalar_lea.vmem [#allocation14], %s443
        // Predicated region
        $region61: #{tpu_custom_call.1} parent=55 // pred_check
          %p445 = pneg %p118
        $region62: #{tpu_custom_call.1} parent=55 // pred_check_branch
          %447 = sbr.rel (%p445) target = $region64
        $region63: #{tpu_custom_call.1} parent=55 // pred_region
          %448 = dma.done %s441, 1024
        $region64: #{tpu_custom_call.1} parent=55 // pred_fallthru
          _
        // Predicated region
        $region65: #{tpu_custom_call.1} parent=55 // pred_check
          %p449 = pneg %p181
        $region66: #{tpu_custom_call.1} parent=55 // pred_check_branch
          %451 = sbr.rel (%p449) target = $region68
        $region67: #{tpu_custom_call.1} parent=55 // pred_region
          %452 = dma.done [#allocation15], 2048
        $region68: #{tpu_custom_call.1} parent=55 // pred_fallthru
          _
        // Predicated region
        $region69: #{tpu_custom_call.1} parent=55 // pred_check
          %p453 = pneg %p202
        $region70: #{tpu_custom_call.1} parent=55 // pred_check_branch
          %455 = sbr.rel (%p453) target = $region72
        $region71: #{tpu_custom_call.1} parent=55 // pred_region
          %456 = dma.done [#allocation18], 2048
        $region72: #{tpu_custom_call.1} parent=55 // pred_fallthru
          _
        // Predicated region
        $region73: #{tpu_custom_call.1} parent=55 // pred_check
          %p457 = pneg %p223
        $region74: #{tpu_custom_call.1} parent=55 // pred_check_branch
          %459 = sbr.rel (%p457) target = $region76
        $region75: #{tpu_custom_call.1} parent=55 // pred_region
          %460 = dma.done [#allocation18], 2048
        $region76: #{tpu_custom_call.1} parent=55 // pred_fallthru
          _
        // Predicated region
        $region77: #{tpu_custom_call.1} parent=55 // pred_check
          %p461 = pneg %p244
        $region78: #{tpu_custom_call.1} parent=55 // pred_check_branch
          %463 = sbr.rel (%p461) target = $region80
        $region79: #{tpu_custom_call.1} parent=55 // pred_region
          %464 = dma.done [#allocation21], 2048
        $region80: #{tpu_custom_call.1} parent=55 // pred_fallthru
          _
        %s465 = sand.u32 %s67, 1
        %s466 = scalar_lea.sflag [#allocation12], %s465
        %s467 = sand.u32 %s67, 1
        %s468 = smul.addr %s467, 64
        %s469 = scalar_lea.vmem [#allocation11], %s468
        %p470 = pneg %p80
        %p471 = pneg %p77
        %s472 = sand.u32 %s31, 1
        %s473 = scalar_lea.sflag [#allocation15], %s472
        %s474 = sand.u32 %s105, 1
        %s475 = smul.addr %s474, 64
        %s476 = scalar_lea.vmem [#allocation14], %s475
        %p477 = pneg %p118
        %p478 = pneg %p115
        %p479 = pneg %p139
        %p480 = pneg %p136
        %p481 = pneg %p160
        %p482 = pneg %p157
        %p483 = pneg %p181
        %p484 = pneg %p178
        %p485 = pneg %p202
        %p486 = pneg %p199
        %p487 = pneg %p223
        %p488 = pneg %p220
        %p489 = pneg %p244
        %p490 = pneg %p241
        %p491 = pneg %p265
        %p492 = pneg %p262
        %p493 = pneg %p293
        %p494 = pneg %p290
        %s495 = sand.u32 %s280, 1
        %s496 = scalar_lea.sflag [#allocation13], %s495
        %s497 = sand.u32 %s280, 1
        %s498 = smul.addr %s497, 64
        %s499 = scalar_lea.vmem [#allocation22], %s498
        %s500 = smul.u32 8, %s38
        %p501 = scmp.eq.s32.totalorder %s38, 0
        %p502 = scmp.eq.s32.totalorder %s39, 0
        %p503 = pnand %p501, %p502
        %p504 = pneg %p503
        %s505 = scalar_select %p504, %s40, 1
        %s506 = smul.u32 8, %s505
        %s507 = smul.u32 8, %s38
        %v509 = vld [vmem:[%s2] sm:$0x1]
        %v510 = vld [vmem:[%s3] sm:$0x1]
        %s511 = smul.u32 %s40, 64
        %p512 = scmp.eq.s32.totalorder %s39, 0
        %p513 = scmp.eq.s32.totalorder %s40, 0
        %p514 = pnand %p512, %p513
        %p515 = pneg %p514
        // Predicated region
        $region81: #{tpu_custom_call.1} parent=55 // pred_check
          _
        $region82: #{tpu_custom_call.1} parent=55 // pred_check_branch
          %517 = sbr.rel (%p514) target = $region84
        $region83: #{tpu_custom_call.1} parent=55 // pred_region
          %v518 = vld [vmem:[%s435] sm:$0xff]
          %v519 = vld [vmem:[%s435 + $0x8] sm:$0xff]
          %v520 = vld [vmem:[%s435 + $0x10] sm:$0xff]
          %v521 = vld [vmem:[%s435 + $0x18] sm:$0xff]
          %v522 = vld [vmem:[%s435 + $0x20] sm:$0xff]
          %v523 = vld [vmem:[%s435 + $0x28] sm:$0xff]
          %v524 = vld [vmem:[%s435 + $0x30] sm:$0xff]
          %v525 = vld [vmem:[%s435 + $0x38] sm:$0xff]
          %526 = vadd.xlane.f32.xlu0 %v518
          %v527 = vpop.xlane.xlu0 %526
          %528 = vadd.xlane.f32.xlu0 %v519
          %v529 = vpop.xlane.xlu0 %528
          %530 = vadd.xlane.f32.xlu0 %v520
          %v531 = vpop.xlane.xlu0 %530
          %532 = vadd.xlane.f32.xlu0 %v521
          %v533 = vpop.xlane.xlu0 %532
          %534 = vadd.xlane.f32.xlu0 %v522
          %v535 = vpop.xlane.xlu0 %534
          %536 = vadd.xlane.f32.xlu0 %v523
          %v537 = vpop.xlane.xlu0 %536
          %538 = vadd.xlane.f32.xlu0 %v524
          %v539 = vpop.xlane.xlu0 %538
          %540 = vadd.xlane.f32.xlu0 %v525
          %v541 = vpop.xlane.xlu0 %540
          %v542 = vrcp.pop 128.0
          %v543 = vmul.f32 %v527, %v542
          %v544 = vmul.f32 %v529, %v542
          %v545 = vmul.f32 %v531, %v542
          %v546 = vmul.f32 %v533, %v542
          %v547 = vmul.f32 %v535, %v542
          %v548 = vmul.f32 %v537, %v542
          %v549 = vmul.f32 %v539, %v542
          %v550 = vmul.f32 %v541, %v542
          %v551 = vsub.f32 %v518, %v543
          %v552 = vsub.f32 %v519, %v544
          %v553 = vsub.f32 %v520, %v545
          %v554 = vsub.f32 %v521, %v546
          %v555 = vsub.f32 %v522, %v547
          %v556 = vsub.f32 %v523, %v548
          %v557 = vsub.f32 %v524, %v549
          %v558 = vsub.f32 %v525, %v550
          %v559 = vmul.f32 %v551, %v551
          %v560 = vmul.f32 %v552, %v552
          %v561 = vmul.f32 %v553, %v553
          %v562 = vmul.f32 %v554, %v554
          %v563 = vmul.f32 %v555, %v555
          %v564 = vmul.f32 %v556, %v556
          %v565 = vmul.f32 %v557, %v557
          %v566 = vmul.f32 %v558, %v558
          %567 = vadd.xlane.f32.xlu0 %v559
          %v568 = vpop.xlane.xlu0 %567
          %569 = vadd.xlane.f32.xlu0 %v560
          %v570 = vpop.xlane.xlu0 %569
          %571 = vadd.xlane.f32.xlu0 %v561
          %v572 = vpop.xlane.xlu0 %571
          %573 = vadd.xlane.f32.xlu0 %v562
          %v574 = vpop.xlane.xlu0 %573
          %575 = vadd.xlane.f32.xlu0 %v563
          %v576 = vpop.xlane.xlu0 %575
          %577 = vadd.xlane.f32.xlu0 %v564
          %v578 = vpop.xlane.xlu0 %577
          %579 = vadd.xlane.f32.xlu0 %v565
          %v580 = vpop.xlane.xlu0 %579
          %581 = vadd.xlane.f32.xlu0 %v566
          %v582 = vpop.xlane.xlu0 %581
          %v583 = vmul.f32 %v568, %v542
          %v584 = vmul.f32 %v570, %v542
          %v585 = vmul.f32 %v572, %v542
          %v586 = vmul.f32 %v574, %v542
          %v587 = vmul.f32 %v576, %v542
          %v588 = vmul.f32 %v578, %v542
          %v589 = vmul.f32 %v580, %v542
          %v590 = vmul.f32 %v582, %v542
          %v591 = vadd.f32 %v583, 1e-05
          %v592 = vadd.f32 %v584, 1e-05
          %v593 = vadd.f32 %v585, 1e-05
          %v594 = vadd.f32 %v586, 1e-05
          %v595 = vadd.f32 %v587, 1e-05
          %v596 = vadd.f32 %v588, 1e-05
          %v597 = vadd.f32 %v589, 1e-05
          %v598 = vadd.f32 %v590, 1e-05
          %v599 = vrsqrt.pop %v591
          %v600 = vrsqrt.pop %v592
          %v601 = vrsqrt.pop %v593
          %v602 = vrsqrt.pop %v594
          %v603 = vrsqrt.pop %v595
          %v604 = vrsqrt.pop %v596
          %v605 = vrsqrt.pop %v597
          %v606 = vrsqrt.pop %v598
          %v607 = vmul.f32 %v551, %v599
          %v608 = vmul.f32 %v552, %v600
          %v609 = vmul.f32 %v553, %v601
          %v610 = vmul.f32 %v554, %v602
          %v611 = vmul.f32 %v555, %v603
          %v612 = vmul.f32 %v556, %v604
          %v613 = vmul.f32 %v557, %v605
          %v614 = vmul.f32 %v558, %v606
          %v616 = vlaneseq
          %v617 = vshrl.u32 %v616, 7
          %v618 = vsub.s32 0, %v617
          %v619 = vrot.slane %v509, %v618
          %v621 = vmul.f32 %v607, %v619
          %v622 = vmul.f32 %v608, %v619
          %v623 = vmul.f32 %v609, %v619
          %v624 = vmul.f32 %v610, %v619
          %v625 = vmul.f32 %v611, %v619
          %v626 = vmul.f32 %v612, %v619
          %v627 = vmul.f32 %v613, %v619
          %v628 = vmul.f32 %v614, %v619
          %v630 = vlaneseq
          %v631 = vshrl.u32 %v630, 7
          %v632 = vsub.s32 0, %v631
          %v633 = vrot.slane %v510, %v632
          %v635 = vadd.f32 %v621, %v633
          %v636 = vadd.f32 %v622, %v633
          %v637 = vadd.f32 %v623, %v633
          %v638 = vadd.f32 %v624, %v633
          %v639 = vadd.f32 %v625, %v633
          %v640 = vadd.f32 %v626, %v633
          %v641 = vadd.f32 %v627, %v633
          %v642 = vadd.f32 %v628, %v633
          %v643 = vpack.c.bf16 %v636, %v635
          %v644 = vpack.c.bf16 %v638, %v637
          %v645 = vpack.c.bf16 %v640, %v639
          %v646 = vpack.c.bf16 %v642, %v641
          %v651 = vunpack.c.l.b16 %v643
          %v652 = vunpack.c.h.b16 %v643
          %v653 = vunpack.c.l.b16 %v644
          %v654 = vunpack.c.h.b16 %v644
          %v655 = vunpack.c.l.b16 %v645
          %v656 = vunpack.c.h.b16 %v645
          %v657 = vunpack.c.l.b16 %v646
          %v658 = vunpack.c.h.b16 %v646
          %v659 = vpack.c.b16 %v651, %v651
          %v660 = vpack.c.b16 %v652, %v652
          %v661 = vpack.c.b16 %v653, %v653
          %v662 = vpack.c.b16 %v654, %v654
          %v663 = vpack.c.b16 %v655, %v655
          %v664 = vpack.c.b16 %v656, %v656
          %v665 = vpack.c.b16 %v657, %v657
          %v666 = vpack.c.b16 %v658, %v658
          %675 = vst [vmem:[#allocation2] sm:$0xf] %v659
          %676 = vst [vmem:[#allocation2 + $0x4] sm:$0xf] %v660
          %677 = vst [vmem:[#allocation2 + $0x8] sm:$0xf] %v661
          %678 = vst [vmem:[#allocation2 + $0xc] sm:$0xf] %v662
          %679 = vst [vmem:[#allocation2 + $0x10] sm:$0xf] %v663
          %680 = vst [vmem:[#allocation2 + $0x14] sm:$0xf] %v664
          %681 = vst [vmem:[#allocation2 + $0x18] sm:$0xf] %v665
          %682 = vst [vmem:[#allocation2 + $0x1c] sm:$0xf] %v666
          %683 = vst [vmem:[#allocation10] sm:$0xff] 0.0
          %684 = vst [vmem:[#allocation10 + $0x8] sm:$0xff] 0.0
          %685 = vst [vmem:[#allocation10 + $0x10] sm:$0xff] 0.0
          %686 = vst [vmem:[#allocation10 + $0x18] sm:$0xff] 0.0
          %687 = vst [vmem:[#allocation10 + $0x20] sm:$0xff] 0.0
          %688 = vst [vmem:[#allocation10 + $0x28] sm:$0xff] 0.0
          %689 = vst [vmem:[#allocation10 + $0x30] sm:$0xff] 0.0
          %690 = vst [vmem:[#allocation10 + $0x38] sm:$0xff] 0.0
        $region84: #{tpu_custom_call.1} parent=55 // pred_fallthru
          _
        %p691 = scmp.eq.s32.totalorder %s38, 0
        // Predicated region
        $region85: #{tpu_custom_call.1} parent=55 // pred_check
          %p692 = pneg %p691
        $region86: #{tpu_custom_call.1} parent=55 // pred_check_branch
          %694 = sbr.rel (%p692) target = $region88
        $region87: #{tpu_custom_call.1} parent=55 // pred_region
          // Predicated region
          $region89: #{tpu_custom_call.1} parent=87 // pred_check
            %p695 = pneg %p512
          $region90: #{tpu_custom_call.1} parent=87 // pred_check_branch
            %697 = sbr.rel (%p695) target = $region92
          $region91: #{tpu_custom_call.1} parent=87 // pred_region
            %v698 = vld [vmem:[%s444] sm:$0xff]
            %v699 = vld [vmem:[%s444 + $0x8] sm:$0xff]
            %v700 = vld [vmem:[%s444 + $0x10] sm:$0xff]
            %v701 = vld [vmem:[%s444 + $0x18] sm:$0xff]
            %v702 = vld [vmem:[%s444 + $0x20] sm:$0xff]
            %v703 = vld [vmem:[%s444 + $0x28] sm:$0xff]
            %v704 = vld [vmem:[%s444 + $0x30] sm:$0xff]
            %v705 = vld [vmem:[%s444 + $0x38] sm:$0xff]
            %706 = vadd.xlane.f32.xlu0 %v698
            %v707 = vpop.xlane.xlu0 %706
            %708 = vadd.xlane.f32.xlu0 %v699
            %v709 = vpop.xlane.xlu0 %708
            %710 = vadd.xlane.f32.xlu0 %v700
            %v711 = vpop.xlane.xlu0 %710
            %712 = vadd.xlane.f32.xlu0 %v701
            %v713 = vpop.xlane.xlu0 %712
            %714 = vadd.xlane.f32.xlu0 %v702
            %v715 = vpop.xlane.xlu0 %714
            %716 = vadd.xlane.f32.xlu0 %v703
            %v717 = vpop.xlane.xlu0 %716
            %718 = vadd.xlane.f32.xlu0 %v704
            %v719 = vpop.xlane.xlu0 %718
            %720 = vadd.xlane.f32.xlu0 %v705
            %v721 = vpop.xlane.xlu0 %720
            %v722 = vrcp.pop 128.0
            %v723 = vmul.f32 %v707, %v722
            %v724 = vmul.f32 %v709, %v722
            %v725 = vmul.f32 %v711, %v722
            %v726 = vmul.f32 %v713, %v722
            %v727 = vmul.f32 %v715, %v722
            %v728 = vmul.f32 %v717, %v722
            %v729 = vmul.f32 %v719, %v722
            %v730 = vmul.f32 %v721, %v722
            %v731 = vsub.f32 %v698, %v723
            %v732 = vsub.f32 %v699, %v724
            %v733 = vsub.f32 %v700, %v725
            %v734 = vsub.f32 %v701, %v726
            %v735 = vsub.f32 %v702, %v727
            %v736 = vsub.f32 %v703, %v728
            %v737 = vsub.f32 %v704, %v729
            %v738 = vsub.f32 %v705, %v730
            %v739 = vmul.f32 %v731, %v731
            %v740 = vmul.f32 %v732, %v732
            %v741 = vmul.f32 %v733, %v733
            %v742 = vmul.f32 %v734, %v734
            %v743 = vmul.f32 %v735, %v735
            %v744 = vmul.f32 %v736, %v736
            %v745 = vmul.f32 %v737, %v737
            %v746 = vmul.f32 %v738, %v738
            %747 = vadd.xlane.f32.xlu0 %v739
            %v748 = vpop.xlane.xlu0 %747
            %749 = vadd.xlane.f32.xlu0 %v740
            %v750 = vpop.xlane.xlu0 %749
            %751 = vadd.xlane.f32.xlu0 %v741
            %v752 = vpop.xlane.xlu0 %751
            %753 = vadd.xlane.f32.xlu0 %v742
            %v754 = vpop.xlane.xlu0 %753
            %755 = vadd.xlane.f32.xlu0 %v743
            %v756 = vpop.xlane.xlu0 %755
            %757 = vadd.xlane.f32.xlu0 %v744
            %v758 = vpop.xlane.xlu0 %757
            %759 = vadd.xlane.f32.xlu0 %v745
            %v760 = vpop.xlane.xlu0 %759
            %761 = vadd.xlane.f32.xlu0 %v746
            %v762 = vpop.xlane.xlu0 %761
            %v763 = vmul.f32 %v748, %v722
            %v764 = vmul.f32 %v750, %v722
            %v765 = vmul.f32 %v752, %v722
            %v766 = vmul.f32 %v754, %v722
            %v767 = vmul.f32 %v756, %v722
            %v768 = vmul.f32 %v758, %v722
            %v769 = vmul.f32 %v760, %v722
            %v770 = vmul.f32 %v762, %v722
            %v771 = vadd.f32 %v763, 1e-05
            %v772 = vadd.f32 %v764, 1e-05
            %v773 = vadd.f32 %v765, 1e-05
            %v774 = vadd.f32 %v766, 1e-05
            %v775 = vadd.f32 %v767, 1e-05
            %v776 = vadd.f32 %v768, 1e-05
            %v777 = vadd.f32 %v769, 1e-05
            %v778 = vadd.f32 %v770, 1e-05
            %v779 = vrsqrt.pop %v771
            %v780 = vrsqrt.pop %v772
            %v781 = vrsqrt.pop %v773
            %v782 = vrsqrt.pop %v774
            %v783 = vrsqrt.pop %v775
            %v784 = vrsqrt.pop %v776
            %v785 = vrsqrt.pop %v777
            %v786 = vrsqrt.pop %v778
            %v787 = vmul.f32 %v731, %v779
            %v788 = vmul.f32 %v732, %v780
            %v789 = vmul.f32 %v733, %v781
            %v790 = vmul.f32 %v734, %v782
            %v791 = vmul.f32 %v735, %v783
            %v792 = vmul.f32 %v736, %v784
            %v793 = vmul.f32 %v737, %v785
            %v794 = vmul.f32 %v738, %v786
            %v796 = vlaneseq
            %v797 = vshrl.u32 %v796, 7
            %v798 = vsub.s32 0, %v797
            %v799 = vrot.slane %v509, %v798
            %v801 = vmul.f32 %v787, %v799
            %v802 = vmul.f32 %v788, %v799
            %v803 = vmul.f32 %v789, %v799
            %v804 = vmul.f32 %v790, %v799
            %v805 = vmul.f32 %v791, %v799
            %v806 = vmul.f32 %v792, %v799
            %v807 = vmul.f32 %v793, %v799
            %v808 = vmul.f32 %v794, %v799
            %v810 = vlaneseq
            %v811 = vshrl.u32 %v810, 7
            %v812 = vsub.s32 0, %v811
            %v813 = vrot.slane %v510, %v812
            %v815 = vadd.f32 %v801, %v813
            %v816 = vadd.f32 %v802, %v813
            %v817 = vadd.f32 %v803, %v813
            %v818 = vadd.f32 %v804, %v813
            %v819 = vadd.f32 %v805, %v813
            %v820 = vadd.f32 %v806, %v813
            %v821 = vadd.f32 %v807, %v813
            %v822 = vadd.f32 %v808, %v813
            %v823 = vpack.c.bf16 %v816, %v815
            %v824 = vpack.c.bf16 %v818, %v817
            %v825 = vpack.c.bf16 %v820, %v819
            %v826 = vpack.c.bf16 %v822, %v821
            %v831 = vunpack.c.l.b16 %v823
            %v832 = vunpack.c.h.b16 %v823
            %v833 = vunpack.c.l.b16 %v824
            %v834 = vunpack.c.h.b16 %v824
            %v835 = vunpack.c.l.b16 %v825
            %v836 = vunpack.c.h.b16 %v825
            %v837 = vunpack.c.l.b16 %v826
            %v838 = vunpack.c.h.b16 %v826
            %v839 = vpack.c.b16 %v831, %v831
            %v840 = vpack.c.b16 %v832, %v832
            %v841 = vpack.c.b16 %v833, %v833
            %v842 = vpack.c.b16 %v834, %v834
            %v843 = vpack.c.b16 %v835, %v835
            %v844 = vpack.c.b16 %v836, %v836
            %v845 = vpack.c.b16 %v837, %v837
            %v846 = vpack.c.b16 %v838, %v838
            %s855 = sshra.s32 %s511, 3
            %s856 = sand.u32 %s511, 7
            %s857 = smul.addr %s855, 4
            %s858 = scalar_lea.vmem [#allocation3], %s857
            %859 = vst [vmem:[%s858] sm:$0xf] %v839
            %860 = vst [vmem:[%s858 + $0x4] sm:$0xf] %v840
            %861 = vst [vmem:[%s858 + $0x8] sm:$0xf] %v841
            %862 = vst [vmem:[%s858 + $0xc] sm:$0xf] %v842
            %863 = vst [vmem:[%s858 + $0x10] sm:$0xf] %v843
            %864 = vst [vmem:[%s858 + $0x14] sm:$0xf] %v844
            %865 = vst [vmem:[%s858 + $0x18] sm:$0xf] %v845
            %866 = vst [vmem:[%s858 + $0x1c] sm:$0xf] %v846
          $region92: #{tpu_custom_call.1} parent=87 // pred_fallthru
            _
          %s867 = sshra.s32 %s511, 3
          %s868 = sand.u32 %s511, 7
          %s869 = smul.addr %s867, 4
          %s870 = scalar_lea.vmem [#allocation3], %s869
          %v871 = vld [vmem:[%s870] sm:$0xf]
          %v872 = vld [vmem:[%s870 + $0x4] sm:$0xf]
          %v873 = vld [vmem:[%s870 + $0x8] sm:$0xf]
          %v874 = vld [vmem:[%s870 + $0xc] sm:$0xf]
          %v875 = vld [vmem:[%s870 + $0x10] sm:$0xf]
          %v876 = vld [vmem:[%s870 + $0x14] sm:$0xf]
          %v877 = vld [vmem:[%s870 + $0x18] sm:$0xf]
          %v878 = vld [vmem:[%s870 + $0x1c] sm:$0xf]
          %s879 = smul.u32 %s39, 16
          %s880 = smul.addr %s879, 4
          %s881 = scalar_lea.vmem [#allocation17], %s880
          %v882 = vld [vmem:[%s881] sm:$0xf]
          %v883 = vld [vmem:[%s881 + $0x4] sm:$0xf]
          %v884 = vld [vmem:[%s881 + $0x8] sm:$0xf]
          %v885 = vld [vmem:[%s881 + $0xc] sm:$0xf]
          %v886 = vld [vmem:[%s881 + $0x10] sm:$0xf]
          %v887 = vld [vmem:[%s881 + $0x14] sm:$0xf]
          %v888 = vld [vmem:[%s881 + $0x18] sm:$0xf]
          %v889 = vld [vmem:[%s881 + $0x1c] sm:$0xf]
          %v890 = vld [vmem:[%s881 + $0x20] sm:$0xf]
          %v891 = vld [vmem:[%s881 + $0x24] sm:$0xf]
          %v892 = vld [vmem:[%s881 + $0x28] sm:$0xf]
          %v893 = vld [vmem:[%s881 + $0x2c] sm:$0xf]
          %v894 = vld [vmem:[%s881 + $0x30] sm:$0xf]
          %v895 = vld [vmem:[%s881 + $0x34] sm:$0xf]
          %v896 = vld [vmem:[%s881 + $0x38] sm:$0xf]
          %v897 = vld [vmem:[%s881 + $0x3c] sm:$0xf]
          %v906 = vunpack.c.l.b16 %v871
          %v907 = vunpack.c.l.b16 %v872
          %v908 = vunpack.c.l.b16 %v873
          %v909 = vunpack.c.l.b16 %v874
          %v910 = vunpack.c.l.b16 %v875
          %v911 = vunpack.c.l.b16 %v876
          %v912 = vunpack.c.l.b16 %v877
          %v913 = vunpack.c.l.b16 %v878
          %v914 = vpack.c.b16 %v907, %v906
          %v915 = vpack.c.b16 %v909, %v908
          %v916 = vpack.c.b16 %v911, %v910
          %v917 = vpack.c.b16 %v913, %v912
          %v938 = vunpack.c.l.b16 %v882
          %v939 = vunpack.c.l.b16 %v883
          %v940 = vunpack.c.l.b16 %v884
          %v941 = vunpack.c.l.b16 %v885
          %v942 = vunpack.c.l.b16 %v886
          %v943 = vunpack.c.l.b16 %v887
          %v944 = vunpack.c.l.b16 %v888
          %v945 = vunpack.c.l.b16 %v889
          %v946 = vunpack.c.l.b16 %v890
          %v947 = vunpack.c.l.b16 %v891
          %v948 = vunpack.c.l.b16 %v892
          %v949 = vunpack.c.l.b16 %v893
          %v950 = vunpack.c.l.b16 %v894
          %v951 = vunpack.c.l.b16 %v895
          %v952 = vunpack.c.l.b16 %v896
          %v953 = vunpack.c.l.b16 %v897
          %v954 = vpack.c.b16 %v939, %v938
          %v955 = vpack.c.b16 %v941, %v940
          %v956 = vpack.c.b16 %v943, %v942
          %v957 = vpack.c.b16 %v945, %v944
          %v958 = vpack.c.b16 %v947, %v946
          %v959 = vpack.c.b16 %v949, %v948
          %v960 = vpack.c.b16 %v951, %v950
          %v961 = vpack.c.b16 %v953, %v952
          %970 = vmatprep.subr.bf16.mxu0 0
          %971 = vmatpush1.bf16.msra.mxu0 %v961
          %972 = vmatprep.subr.bf16.mxu0 0
          %973 = vmatpush1.bf16.msra.mxu0 %v960
          %974 = vmatprep.subr.bf16.mxu0 0
          %975 = vmatpush1.bf16.msra.mxu0 %v959
          %976 = vmatprep.subr.bf16.mxu0 0
          %977 = vmatpush1.bf16.msra.mxu0 %v958
          %978 = vmatprep.subr.bf16.mxu0 0
          %979 = vmatpush1.bf16.msra.mxu0 %v957
          %980 = vmatprep.subr.bf16.mxu0 0
          %981 = vmatpush1.bf16.msra.mxu0 %v956
          %982 = vmatprep.subr.bf16.mxu0 0
          %983 = vmatpush1.bf16.msra.mxu0 %v955
          %984 = vmatprep.subr.bf16.mxu0 0
          %985 = vmatpush1.bf16.msra.mxu0 %v954
          %986 = vmatprep.subr.bf16.mxu0 0
          %987 = vmatpush2.bf16.msra.mxu0 0
          %988 = vmatprep.subr.bf16.mxu0 0
          %989 = vmatpush2.bf16.msra.mxu0 0
          %990 = vmatprep.subr.bf16.mxu0 0
          %991 = vmatpush2.bf16.msra.mxu0 0
          %992 = vmatprep.subr.bf16.mxu0 0
          %993 = vmatpush2.bf16.msra.mxu0 0
          %994 = vmatprep.subr.bf16.mxu0 0
          %995 = vmatpush2.bf16.msra.mxu0 0
          %996 = vmatprep.subr.bf16.mxu0 0
          %997 = vmatpush2.bf16.msra.mxu0 0
          %998 = vmatprep.subr.bf16.mxu0 0
          %999 = vmatpush2.bf16.msra.mxu0 0
          %1000 = vmatprep.subr.bf16.mxu0 0
          %1001 = vmatpush2.bf16.msra.mxu0 0
          %1002 = vmatprep.mubr.bf16.mxu0 0
          %1003 = vmatmul.mubr.bf16.gmra.mxu0 %v914
          %v1004 = vpop.f32.mrf.mxu0
          %v1005 = vadd.f32 0.0, %v1004
          %v1006 = vpop.f32.mrf.mxu0
          %v1007 = vpop.f32.mrf.mxu0
          %v1008 = vadd.f32 0.0, %v1007
          %v1009 = vpop.f32.mrf.mxu0
          %1010 = vmatprep.mubr.bf16.mxu0 0
          %1011 = vmatmul.mubr.bf16.gmra.mxu0 %v915
          %v1012 = vpop.f32.mrf.mxu0
          %v1013 = vadd.f32 0.0, %v1012
          %v1014 = vpop.f32.mrf.mxu0
          %v1015 = vpop.f32.mrf.mxu0
          %v1016 = vadd.f32 0.0, %v1015
          %v1017 = vpop.f32.mrf.mxu0
          %1018 = vmatprep.mubr.bf16.mxu0 0
          %1019 = vmatmul.mubr.bf16.gmra.mxu0 %v916
          %v1020 = vpop.f32.mrf.mxu0
          %v1021 = vadd.f32 0.0, %v1020
          %v1022 = vpop.f32.mrf.mxu0
          %v1023 = vpop.f32.mrf.mxu0
          %v1024 = vadd.f32 0.0, %v1023
          %v1025 = vpop.f32.mrf.mxu0
          %1026 = vmatprep.mubr.bf16.mxu0 0
          %1027 = vmatmul.mubr.bf16.gmra.mxu0 %v917
          %v1028 = vpop.f32.mrf.mxu0
          %v1029 = vadd.f32 0.0, %v1028
          %v1030 = vpop.f32.mrf.mxu0
          %v1031 = vpop.f32.mrf.mxu0
          %v1032 = vadd.f32 0.0, %v1031
          %v1033 = vpop.f32.mrf.mxu0
          %1034 = vdwg.mxu0
          %v1035 = vpack.c.bf16 %v1008, %v1005
          %v1036 = vpack.c.bf16 %v1016, %v1013
          %v1037 = vpack.c.bf16 %v1024, %v1021
          %v1038 = vpack.c.bf16 %v1032, %v1029
          %s1039 = smul.addr %s879, 4
          %s1040 = scalar_lea.vmem [#allocation19], %s1039
          %v1041 = vld [vmem:[%s1040] sm:$0xf]
          %v1042 = vld [vmem:[%s1040 + $0x4] sm:$0xf]
          %v1043 = vld [vmem:[%s1040 + $0x8] sm:$0xf]
          %v1044 = vld [vmem:[%s1040 + $0xc] sm:$0xf]
          %v1045 = vld [vmem:[%s1040 + $0x10] sm:$0xf]
          %v1046 = vld [vmem:[%s1040 + $0x14] sm:$0xf]
          %v1047 = vld [vmem:[%s1040 + $0x18] sm:$0xf]
          %v1048 = vld [vmem:[%s1040 + $0x1c] sm:$0xf]
          %v1049 = vld [vmem:[%s1040 + $0x20] sm:$0xf]
          %v1050 = vld [vmem:[%s1040 + $0x24] sm:$0xf]
          %v1051 = vld [vmem:[%s1040 + $0x28] sm:$0xf]
          %v1052 = vld [vmem:[%s1040 + $0x2c] sm:$0xf]
          %v1053 = vld [vmem:[%s1040 + $0x30] sm:$0xf]
          %v1054 = vld [vmem:[%s1040 + $0x34] sm:$0xf]
          %v1055 = vld [vmem:[%s1040 + $0x38] sm:$0xf]
          %v1056 = vld [vmem:[%s1040 + $0x3c] sm:$0xf]
          %v1073 = vunpack.c.l.b16 %v1041
          %v1074 = vunpack.c.l.b16 %v1042
          %v1075 = vunpack.c.l.b16 %v1043
          %v1076 = vunpack.c.l.b16 %v1044
          %v1077 = vunpack.c.l.b16 %v1045
          %v1078 = vunpack.c.l.b16 %v1046
          %v1079 = vunpack.c.l.b16 %v1047
          %v1080 = vunpack.c.l.b16 %v1048
          %v1081 = vunpack.c.l.b16 %v1049
          %v1082 = vunpack.c.l.b16 %v1050
          %v1083 = vunpack.c.l.b16 %v1051
          %v1084 = vunpack.c.l.b16 %v1052
          %v1085 = vunpack.c.l.b16 %v1053
          %v1086 = vunpack.c.l.b16 %v1054
          %v1087 = vunpack.c.l.b16 %v1055
          %v1088 = vunpack.c.l.b16 %v1056
          %v1089 = vpack.c.b16 %v1074, %v1073
          %v1090 = vpack.c.b16 %v1076, %v1075
          %v1091 = vpack.c.b16 %v1078, %v1077
          %v1092 = vpack.c.b16 %v1080, %v1079
          %v1093 = vpack.c.b16 %v1082, %v1081
          %v1094 = vpack.c.b16 %v1084, %v1083
          %v1095 = vpack.c.b16 %v1086, %v1085
          %v1096 = vpack.c.b16 %v1088, %v1087
          %1105 = vmatprep.subr.bf16.mxu0 0
          %1106 = vmatpush1.bf16.msra.mxu0 %v1096
          %1107 = vmatprep.subr.bf16.mxu0 0
          %1108 = vmatpush1.bf16.msra.mxu0 %v1095
          %1109 = vmatprep.subr.bf16.mxu0 0
          %1110 = vmatpush1.bf16.msra.mxu0 %v1094
          %1111 = vmatprep.subr.bf16.mxu0 0
          %1112 = vmatpush1.bf16.msra.mxu0 %v1093
          %1113 = vmatprep.subr.bf16.mxu0 0
          %1114 = vmatpush1.bf16.msra.mxu0 %v1092
          %1115 = vmatprep.subr.bf16.mxu0 0
          %1116 = vmatpush1.bf16.msra.mxu0 %v1091
          %1117 = vmatprep.subr.bf16.mxu0 0
          %1118 = vmatpush1.bf16.msra.mxu0 %v1090
          %1119 = vmatprep.subr.bf16.mxu0 0
          %1120 = vmatpush1.bf16.msra.mxu0 %v1089
          %1121 = vmatprep.subr.bf16.mxu0 0
          %1122 = vmatpush2.bf16.msra.mxu0 0
          %1123 = vmatprep.subr.bf16.mxu0 0
          %1124 = vmatpush2.bf16.msra.mxu0 0
          %1125 = vmatprep.subr.bf16.mxu0 0
          %1126 = vmatpush2.bf16.msra.mxu0 0
          %1127 = vmatprep.subr.bf16.mxu0 0
          %1128 = vmatpush2.bf16.msra.mxu0 0
          %1129 = vmatprep.subr.bf16.mxu0 0
          %1130 = vmatpush2.bf16.msra.mxu0 0
          %1131 = vmatprep.subr.bf16.mxu0 0
          %1132 = vmatpush2.bf16.msra.mxu0 0
          %1133 = vmatprep.subr.bf16.mxu0 0
          %1134 = vmatpush2.bf16.msra.mxu0 0
          %1135 = vmatprep.subr.bf16.mxu0 0
          %1136 = vmatpush2.bf16.msra.mxu0 0
          %1137 = vmatprep.mubr.bf16.mxu0 0
          %1138 = vmatmul.mubr.bf16.gmra.mxu0 %v914
          %v1139 = vpop.f32.mrf.mxu0
          %v1140 = vadd.f32 0.0, %v1139
          %v1141 = vpop.f32.mrf.mxu0
          %v1142 = vpop.f32.mrf.mxu0
          %v1143 = vadd.f32 0.0, %v1142
          %v1144 = vpop.f32.mrf.mxu0
          %1145 = vmatprep.mubr.bf16.mxu0 0
          %1146 = vmatmul.mubr.bf16.gmra.mxu0 %v915
          %v1147 = vpop.f32.mrf.mxu0
          %v1148 = vadd.f32 0.0, %v1147
          %v1149 = vpop.f32.mrf.mxu0
          %v1150 = vpop.f32.mrf.mxu0
          %v1151 = vadd.f32 0.0, %v1150
          %v1152 = vpop.f32.mrf.mxu0
          %1153 = vmatprep.mubr.bf16.mxu0 0
          %1154 = vmatmul.mubr.bf16.gmra.mxu0 %v916
          %v1155 = vpop.f32.mrf.mxu0
          %v1156 = vadd.f32 0.0, %v1155
          %v1157 = vpop.f32.mrf.mxu0
          %v1158 = vpop.f32.mrf.mxu0
          %v1159 = vadd.f32 0.0, %v1158
          %v1160 = vpop.f32.mrf.mxu0
          %1161 = vmatprep.mubr.bf16.mxu0 0
          %1162 = vmatmul.mubr.bf16.gmra.mxu0 %v917
          %v1163 = vpop.f32.mrf.mxu0
          %v1164 = vadd.f32 0.0, %v1163
          %v1165 = vpop.f32.mrf.mxu0
          %v1166 = vpop.f32.mrf.mxu0
          %v1167 = vadd.f32 0.0, %v1166
          %v1168 = vpop.f32.mrf.mxu0
          %1169 = vdwg.mxu0
          %v1170 = vpack.c.bf16 %v1143, %v1140
          %v1171 = vpack.c.bf16 %v1151, %v1148
          %v1172 = vpack.c.bf16 %v1159, %v1156
          %v1173 = vpack.c.bf16 %v1167, %v1164
          %s1174 = smul.u32 %s39, 4
          %v1179 = vunpack.c.l.b16 %v1035
          %v1180 = vunpack.c.h.b16 %v1035
          %v1181 = vunpack.c.l.b16 %v1036
          %v1182 = vunpack.c.h.b16 %v1036
          %v1183 = vunpack.c.l.b16 %v1037
          %v1184 = vunpack.c.h.b16 %v1037
          %v1185 = vunpack.c.l.b16 %v1038
          %v1186 = vunpack.c.h.b16 %v1038
          %v1187 = vpack.c.b16 %v1179, %v1179
          %v1188 = vpack.c.b16 %v1180, %v1180
          %v1189 = vpack.c.b16 %v1181, %v1181
          %v1190 = vpack.c.b16 %v1182, %v1182
          %v1191 = vpack.c.b16 %v1183, %v1183
          %v1192 = vpack.c.b16 %v1184, %v1184
          %v1193 = vpack.c.b16 %v1185, %v1185
          %v1194 = vpack.c.b16 %v1186, %v1186
          %s1203 = smul.u32 %s1174, 16
          %s1204 = sadd.s32 %s867, %s1203
          %s1205 = smul.addr %s1204, 4
          %s1206 = scalar_lea.vmem [#allocation4], %s1205
          %vm1207 = vcmask 257024
          %1208 = vst.msk [vmem:[%s1206] sm:$0xf] %vm1207, %v1187
          %1209 = vst.msk [vmem:[%s1206 + $0x4] sm:$0xf] %vm1207, %v1188
          %1210 = vst.msk [vmem:[%s1206 + $0x8] sm:$0xf] %vm1207, %v1189
          %1211 = vst.msk [vmem:[%s1206 + $0xc] sm:$0xf] %vm1207, %v1190
          %1212 = vst.msk [vmem:[%s1206 + $0x10] sm:$0xf] %vm1207, %v1191
          %1213 = vst.msk [vmem:[%s1206 + $0x14] sm:$0xf] %vm1207, %v1192
          %1214 = vst.msk [vmem:[%s1206 + $0x18] sm:$0xf] %vm1207, %v1193
          %1215 = vst.msk [vmem:[%s1206 + $0x1c] sm:$0xf] %vm1207, %v1194
          %v1220 = vunpack.c.l.b16 %v1170
          %v1221 = vunpack.c.h.b16 %v1170
          %v1222 = vunpack.c.l.b16 %v1171
          %v1223 = vunpack.c.h.b16 %v1171
          %v1224 = vunpack.c.l.b16 %v1172
          %v1225 = vunpack.c.h.b16 %v1172
          %v1226 = vunpack.c.l.b16 %v1173
          %v1227 = vunpack.c.h.b16 %v1173
          %v1228 = vpack.c.b16 %v1220, %v1220
          %v1229 = vpack.c.b16 %v1221, %v1221
          %v1230 = vpack.c.b16 %v1222, %v1222
          %v1231 = vpack.c.b16 %v1223, %v1223
          %v1232 = vpack.c.b16 %v1224, %v1224
          %v1233 = vpack.c.b16 %v1225, %v1225
          %v1234 = vpack.c.b16 %v1226, %v1226
          %v1235 = vpack.c.b16 %v1227, %v1227
          %s1244 = smul.addr %s1204, 4
          %s1245 = scalar_lea.vmem [#allocation5], %s1244
          %1246 = vst.msk [vmem:[%s1245] sm:$0xf] %vm1207, %v1228
          %1247 = vst.msk [vmem:[%s1245 + $0x4] sm:$0xf] %vm1207, %v1229
          %1248 = vst.msk [vmem:[%s1245 + $0x8] sm:$0xf] %vm1207, %v1230
          %1249 = vst.msk [vmem:[%s1245 + $0xc] sm:$0xf] %vm1207, %v1231
          %1250 = vst.msk [vmem:[%s1245 + $0x10] sm:$0xf] %vm1207, %v1232
          %1251 = vst.msk [vmem:[%s1245 + $0x14] sm:$0xf] %vm1207, %v1233
          %1252 = vst.msk [vmem:[%s1245 + $0x18] sm:$0xf] %vm1207, %v1234
          %1253 = vst.msk [vmem:[%s1245 + $0x1c] sm:$0xf] %vm1207, %v1235
          %s1254 = sadd.s32 %s1174, 1
          %1255 = vrot.lane.b32.xlu0 %v1187, 96
          %v1256 = vpop.permute.xlu0 %1255
          %1257 = vrot.lane.b32.xlu0 %v1188, 96
          %v1258 = vpop.permute.xlu0 %1257
          %1259 = vrot.lane.b32.xlu0 %v1189, 96
          %v1260 = vpop.permute.xlu0 %1259
          %1261 = vrot.lane.b32.xlu0 %v1190, 96
          %v1262 = vpop.permute.xlu0 %1261
          %1263 = vrot.lane.b32.xlu0 %v1191, 96
          %v1264 = vpop.permute.xlu0 %1263
          %1265 = vrot.lane.b32.xlu0 %v1192, 96
          %v1266 = vpop.permute.xlu0 %1265
          %1267 = vrot.lane.b32.xlu0 %v1193, 96
          %v1268 = vpop.permute.xlu0 %1267
          %1269 = vrot.lane.b32.xlu0 %v1194, 96
          %v1270 = vpop.permute.xlu0 %1269
          %s1279 = smul.u32 %s1254, 16
          %s1280 = sadd.s32 %s867, %s1279
          %s1281 = smul.addr %s1280, 4
          %s1282 = scalar_lea.vmem [#allocation4], %s1281
          %1283 = vst.msk [vmem:[%s1282] sm:$0xf] %vm1207, %v1256
          %1284 = vst.msk [vmem:[%s1282 + $0x4] sm:$0xf] %vm1207, %v1258
          %1285 = vst.msk [vmem:[%s1282 + $0x8] sm:$0xf] %vm1207, %v1260
          %1286 = vst.msk [vmem:[%s1282 + $0xc] sm:$0xf] %vm1207, %v1262
          %1287 = vst.msk [vmem:[%s1282 + $0x10] sm:$0xf] %vm1207, %v1264
          %1288 = vst.msk [vmem:[%s1282 + $0x14] sm:$0xf] %vm1207, %v1266
          %1289 = vst.msk [vmem:[%s1282 + $0x18] sm:$0xf] %vm1207, %v1268
          %1290 = vst.msk [vmem:[%s1282 + $0x1c] sm:$0xf] %vm1207, %v1270
          %1291 = vrot.lane.b32.xlu0 %v1228, 96
          %v1292 = vpop.permute.xlu0 %1291
          %1293 = vrot.lane.b32.xlu0 %v1229, 96
          %v1294 = vpop.permute.xlu0 %1293
          %1295 = vrot.lane.b32.xlu0 %v1230, 96
          %v1296 = vpop.permute.xlu0 %1295
          %1297 = vrot.lane.b32.xlu0 %v1231, 96
          %v1298 = vpop.permute.xlu0 %1297
          %1299 = vrot.lane.b32.xlu0 %v1232, 96
          %v1300 = vpop.permute.xlu0 %1299
          %1301 = vrot.lane.b32.xlu0 %v1233, 96
          %v1302 = vpop.permute.xlu0 %1301
          %1303 = vrot.lane.b32.xlu0 %v1234, 96
          %v1304 = vpop.permute.xlu0 %1303
          %1305 = vrot.lane.b32.xlu0 %v1235, 96
          %v1306 = vpop.permute.xlu0 %1305
          %s1315 = smul.addr %s1280, 4
          %s1316 = scalar_lea.vmem [#allocation5], %s1315
          %1317 = vst.msk [vmem:[%s1316] sm:$0xf] %vm1207, %v1292
          %1318 = vst.msk [vmem:[%s1316 + $0x4] sm:$0xf] %vm1207, %v1294
          %1319 = vst.msk [vmem:[%s1316 + $0x8] sm:$0xf] %vm1207, %v1296
          %1320 = vst.msk [vmem:[%s1316 + $0xc] sm:$0xf] %vm1207, %v1298
          %1321 = vst.msk [vmem:[%s1316 + $0x10] sm:$0xf] %vm1207, %v1300
          %1322 = vst.msk [vmem:[%s1316 + $0x14] sm:$0xf] %vm1207, %v1302
          %1323 = vst.msk [vmem:[%s1316 + $0x18] sm:$0xf] %vm1207, %v1304
          %1324 = vst.msk [vmem:[%s1316 + $0x1c] sm:$0xf] %vm1207, %v1306
          %s1325 = sadd.s32 %s1174, 2
          %1326 = vrot.lane.b32.xlu0 %v1187, 64
          %v1327 = vpop.permute.xlu0 %1326
          %1328 = vrot.lane.b32.xlu0 %v1188, 64
          %v1329 = vpop.permute.xlu0 %1328
          %1330 = vrot.lane.b32.xlu0 %v1189, 64
          %v1331 = vpop.permute.xlu0 %1330
          %1332 = vrot.lane.b32.xlu0 %v1190, 64
          %v1333 = vpop.permute.xlu0 %1332
          %1334 = vrot.lane.b32.xlu0 %v1191, 64
          %v1335 = vpop.permute.xlu0 %1334
          %1336 = vrot.lane.b32.xlu0 %v1192, 64
          %v1337 = vpop.permute.xlu0 %1336
          %1338 = vrot.lane.b32.xlu0 %v1193, 64
          %v1339 = vpop.permute.xlu0 %1338
          %1340 = vrot.lane.b32.xlu0 %v1194, 64
          %v1341 = vpop.permute.xlu0 %1340
          %s1350 = smul.u32 %s1325, 16
          %s1351 = sadd.s32 %s867, %s1350
          %s1352 = smul.addr %s1351, 4
          %s1353 = scalar_lea.vmem [#allocation4], %s1352
          %1354 = vst.msk [vmem:[%s1353] sm:$0xf] %vm1207, %v1327
          %1355 = vst.msk [vmem:[%s1353 + $0x4] sm:$0xf] %vm1207, %v1329
          %1356 = vst.msk [vmem:[%s1353 + $0x8] sm:$0xf] %vm1207, %v1331
          %1357 = vst.msk [vmem:[%s1353 + $0xc] sm:$0xf] %vm1207, %v1333
          %1358 = vst.msk [vmem:[%s1353 + $0x10] sm:$0xf] %vm1207, %v1335
          %1359 = vst.msk [vmem:[%s1353 + $0x14] sm:$0xf] %vm1207, %v1337
          %1360 = vst.msk [vmem:[%s1353 + $0x18] sm:$0xf] %vm1207, %v1339
          %1361 = vst.msk [vmem:[%s1353 + $0x1c] sm:$0xf] %vm1207, %v1341
          %1362 = vrot.lane.b32.xlu0 %v1228, 64
          %v1363 = vpop.permute.xlu0 %1362
          %1364 = vrot.lane.b32.xlu0 %v1229, 64
          %v1365 = vpop.permute.xlu0 %1364
          %1366 = vrot.lane.b32.xlu0 %v1230, 64
          %v1367 = vpop.permute.xlu0 %1366
          %1368 = vrot.lane.b32.xlu0 %v1231, 64
          %v1369 = vpop.permute.xlu0 %1368
          %1370 = vrot.lane.b32.xlu0 %v1232, 64
          %v1371 = vpop.permute.xlu0 %1370
          %1372 = vrot.lane.b32.xlu0 %v1233, 64
          %v1373 = vpop.permute.xlu0 %1372
          %1374 = vrot.lane.b32.xlu0 %v1234, 64
          %v1375 = vpop.permute.xlu0 %1374
          %1376 = vrot.lane.b32.xlu0 %v1235, 64
          %v1377 = vpop.permute.xlu0 %1376
          %s1386 = smul.addr %s1351, 4
          %s1387 = scalar_lea.vmem [#allocation5], %s1386
          %1388 = vst.msk [vmem:[%s1387] sm:$0xf] %vm1207, %v1363
          %1389 = vst.msk [vmem:[%s1387 + $0x4] sm:$0xf] %vm1207, %v1365
          %1390 = vst.msk [vmem:[%s1387 + $0x8] sm:$0xf] %vm1207, %v1367
          %1391 = vst.msk [vmem:[%s1387 + $0xc] sm:$0xf] %vm1207, %v1369
          %1392 = vst.msk [vmem:[%s1387 + $0x10] sm:$0xf] %vm1207, %v1371
          %1393 = vst.msk [vmem:[%s1387 + $0x14] sm:$0xf] %vm1207, %v1373
          %1394 = vst.msk [vmem:[%s1387 + $0x18] sm:$0xf] %vm1207, %v1375
          %1395 = vst.msk [vmem:[%s1387 + $0x1c] sm:$0xf] %vm1207, %v1377
          %s1396 = sadd.s32 %s1174, 3
          %1397 = vrot.lane.b32.xlu0 %v1187, 32
          %v1398 = vpop.permute.xlu0 %1397
          %1399 = vrot.lane.b32.xlu0 %v1188, 32
          %v1400 = vpop.permute.xlu0 %1399
          %1401 = vrot.lane.b32.xlu0 %v1189, 32
          %v1402 = vpop.permute.xlu0 %1401
          %1403 = vrot.lane.b32.xlu0 %v1190, 32
          %v1404 = vpop.permute.xlu0 %1403
          %1405 = vrot.lane.b32.xlu0 %v1191, 32
          %v1406 = vpop.permute.xlu0 %1405
          %1407 = vrot.lane.b32.xlu0 %v1192, 32
          %v1408 = vpop.permute.xlu0 %1407
          %1409 = vrot.lane.b32.xlu0 %v1193, 32
          %v1410 = vpop.permute.xlu0 %1409
          %1411 = vrot.lane.b32.xlu0 %v1194, 32
          %v1412 = vpop.permute.xlu0 %1411
          %s1421 = smul.u32 %s1396, 16
          %s1422 = sadd.s32 %s867, %s1421
          %s1423 = smul.addr %s1422, 4
          %s1424 = scalar_lea.vmem [#allocation4], %s1423
          %1425 = vst.msk [vmem:[%s1424] sm:$0xf] %vm1207, %v1398
          %1426 = vst.msk [vmem:[%s1424 + $0x4] sm:$0xf] %vm1207, %v1400
          %1427 = vst.msk [vmem:[%s1424 + $0x8] sm:$0xf] %vm1207, %v1402
          %1428 = vst.msk [vmem:[%s1424 + $0xc] sm:$0xf] %vm1207, %v1404
          %1429 = vst.msk [vmem:[%s1424 + $0x10] sm:$0xf] %vm1207, %v1406
          %1430 = vst.msk [vmem:[%s1424 + $0x14] sm:$0xf] %vm1207, %v1408
          %1431 = vst.msk [vmem:[%s1424 + $0x18] sm:$0xf] %vm1207, %v1410
          %1432 = vst.msk [vmem:[%s1424 + $0x1c] sm:$0xf] %vm1207, %v1412
          %1433 = vrot.lane.b32.xlu0 %v1228, 32
          %v1434 = vpop.permute.xlu0 %1433
          %1435 = vrot.lane.b32.xlu0 %v1229, 32
          %v1436 = vpop.permute.xlu0 %1435
          %1437 = vrot.lane.b32.xlu0 %v1230, 32
          %v1438 = vpop.permute.xlu0 %1437
          %1439 = vrot.lane.b32.xlu0 %v1231, 32
          %v1440 = vpop.permute.xlu0 %1439
          %1441 = vrot.lane.b32.xlu0 %v1232, 32
          %v1442 = vpop.permute.xlu0 %1441
          %1443 = vrot.lane.b32.xlu0 %v1233, 32
          %v1444 = vpop.permute.xlu0 %1443
          %1445 = vrot.lane.b32.xlu0 %v1234, 32
          %v1446 = vpop.permute.xlu0 %1445
          %1447 = vrot.lane.b32.xlu0 %v1235, 32
          %v1448 = vpop.permute.xlu0 %1447
          %s1457 = smul.addr %s1422, 4
          %s1458 = scalar_lea.vmem [#allocation5], %s1457
          %1459 = vst.msk [vmem:[%s1458] sm:$0xf] %vm1207, %v1434
          %1460 = vst.msk [vmem:[%s1458 + $0x4] sm:$0xf] %vm1207, %v1436
          %1461 = vst.msk [vmem:[%s1458 + $0x8] sm:$0xf] %vm1207, %v1438
          %1462 = vst.msk [vmem:[%s1458 + $0xc] sm:$0xf] %vm1207, %v1440
          %1463 = vst.msk [vmem:[%s1458 + $0x10] sm:$0xf] %vm1207, %v1442
          %1464 = vst.msk [vmem:[%s1458 + $0x14] sm:$0xf] %vm1207, %v1444
          %1465 = vst.msk [vmem:[%s1458 + $0x18] sm:$0xf] %vm1207, %v1446
          %1466 = vst.msk [vmem:[%s1458 + $0x1c] sm:$0xf] %vm1207, %v1448
        $region88: #{tpu_custom_call.1} parent=55 // pred_fallthru
          _
        // Predicated region
        $region93: #{tpu_custom_call.1} parent=55 // pred_check
          %p1467 = pneg %p513
        $region94: #{tpu_custom_call.1} parent=55 // pred_check_branch
          %1469 = sbr.rel (%p1467) target = $region96
        $region95: #{tpu_custom_call.1} parent=55 // pred_region
          %v1470 = vld [vmem:[#allocation2] sm:$0xf]
          %v1471 = vld [vmem:[#allocation2 + $0x4] sm:$0xf]
          %v1472 = vld [vmem:[#allocation2 + $0x8] sm:$0xf]
          %v1473 = vld [vmem:[#allocation2 + $0xc] sm:$0xf]
          %v1474 = vld [vmem:[#allocation2 + $0x10] sm:$0xf]
          %v1475 = vld [vmem:[#allocation2 + $0x14] sm:$0xf]
          %v1476 = vld [vmem:[#allocation2 + $0x18] sm:$0xf]
          %v1477 = vld [vmem:[#allocation2 + $0x1c] sm:$0xf]
          %s1478 = smul.u32 %s39, 16
          %s1479 = smul.addr %s1478, 4
          %s1480 = scalar_lea.vmem [#allocation16], %s1479
          %v1481 = vld [vmem:[%s1480] sm:$0xf]
          %v1482 = vld [vmem:[%s1480 + $0x4] sm:$0xf]
          %v1483 = vld [vmem:[%s1480 + $0x8] sm:$0xf]
          %v1484 = vld [vmem:[%s1480 + $0xc] sm:$0xf]
          %v1485 = vld [vmem:[%s1480 + $0x10] sm:$0xf]
          %v1486 = vld [vmem:[%s1480 + $0x14] sm:$0xf]
          %v1487 = vld [vmem:[%s1480 + $0x18] sm:$0xf]
          %v1488 = vld [vmem:[%s1480 + $0x1c] sm:$0xf]
          %v1489 = vld [vmem:[%s1480 + $0x20] sm:$0xf]
          %v1490 = vld [vmem:[%s1480 + $0x24] sm:$0xf]
          %v1491 = vld [vmem:[%s1480 + $0x28] sm:$0xf]
          %v1492 = vld [vmem:[%s1480 + $0x2c] sm:$0xf]
          %v1493 = vld [vmem:[%s1480 + $0x30] sm:$0xf]
          %v1494 = vld [vmem:[%s1480 + $0x34] sm:$0xf]
          %v1495 = vld [vmem:[%s1480 + $0x38] sm:$0xf]
          %v1496 = vld [vmem:[%s1480 + $0x3c] sm:$0xf]
          %v1505 = vunpack.c.l.b16 %v1470
          %v1506 = vunpack.c.l.b16 %v1471
          %v1507 = vunpack.c.l.b16 %v1472
          %v1508 = vunpack.c.l.b16 %v1473
          %v1509 = vunpack.c.l.b16 %v1474
          %v1510 = vunpack.c.l.b16 %v1475
          %v1511 = vunpack.c.l.b16 %v1476
          %v1512 = vunpack.c.l.b16 %v1477
          %v1513 = vpack.c.b16 %v1506, %v1505
          %v1514 = vpack.c.b16 %v1508, %v1507
          %v1515 = vpack.c.b16 %v1510, %v1509
          %v1516 = vpack.c.b16 %v1512, %v1511
          %v1537 = vunpack.c.l.b16 %v1481
          %v1538 = vunpack.c.l.b16 %v1482
          %v1539 = vunpack.c.l.b16 %v1483
          %v1540 = vunpack.c.l.b16 %v1484
          %v1541 = vunpack.c.l.b16 %v1485
          %v1542 = vunpack.c.l.b16 %v1486
          %v1543 = vunpack.c.l.b16 %v1487
          %v1544 = vunpack.c.l.b16 %v1488
          %v1545 = vunpack.c.l.b16 %v1489
          %v1546 = vunpack.c.l.b16 %v1490
          %v1547 = vunpack.c.l.b16 %v1491
          %v1548 = vunpack.c.l.b16 %v1492
          %v1549 = vunpack.c.l.b16 %v1493
          %v1550 = vunpack.c.l.b16 %v1494
          %v1551 = vunpack.c.l.b16 %v1495
          %v1552 = vunpack.c.l.b16 %v1496
          %v1553 = vpack.c.b16 %v1538, %v1537
          %v1554 = vpack.c.b16 %v1540, %v1539
          %v1555 = vpack.c.b16 %v1542, %v1541
          %v1556 = vpack.c.b16 %v1544, %v1543
          %v1557 = vpack.c.b16 %v1546, %v1545
          %v1558 = vpack.c.b16 %v1548, %v1547
          %v1559 = vpack.c.b16 %v1550, %v1549
          %v1560 = vpack.c.b16 %v1552, %v1551
          %1569 = vmatprep.subr.bf16.mxu0 0
          %1570 = vmatpush1.bf16.msra.mxu0 %v1560
          %1571 = vmatprep.subr.bf16.mxu0 0
          %1572 = vmatpush1.bf16.msra.mxu0 %v1559
          %1573 = vmatprep.subr.bf16.mxu0 0
          %1574 = vmatpush1.bf16.msra.mxu0 %v1558
          %1575 = vmatprep.subr.bf16.mxu0 0
          %1576 = vmatpush1.bf16.msra.mxu0 %v1557
          %1577 = vmatprep.subr.bf16.mxu0 0
          %1578 = vmatpush1.bf16.msra.mxu0 %v1556
          %1579 = vmatprep.subr.bf16.mxu0 0
          %1580 = vmatpush1.bf16.msra.mxu0 %v1555
          %1581 = vmatprep.subr.bf16.mxu0 0
          %1582 = vmatpush1.bf16.msra.mxu0 %v1554
          %1583 = vmatprep.subr.bf16.mxu0 0
          %1584 = vmatpush1.bf16.msra.mxu0 %v1553
          %1585 = vmatprep.subr.bf16.mxu0 0
          %1586 = vmatpush2.bf16.msra.mxu0 0
          %1587 = vmatprep.subr.bf16.mxu0 0
          %1588 = vmatpush2.bf16.msra.mxu0 0
          %1589 = vmatprep.subr.bf16.mxu0 0
          %1590 = vmatpush2.bf16.msra.mxu0 0
          %1591 = vmatprep.subr.bf16.mxu0 0
          %1592 = vmatpush2.bf16.msra.mxu0 0
          %1593 = vmatprep.subr.bf16.mxu0 0
          %1594 = vmatpush2.bf16.msra.mxu0 0
          %1595 = vmatprep.subr.bf16.mxu0 0
          %1596 = vmatpush2.bf16.msra.mxu0 0
          %1597 = vmatprep.subr.bf16.mxu0 0
          %1598 = vmatpush2.bf16.msra.mxu0 0
          %1599 = vmatprep.subr.bf16.mxu0 0
          %1600 = vmatpush2.bf16.msra.mxu0 0
          %1601 = vmatprep.mubr.bf16.mxu0 0
          %1602 = vmatmul.mubr.bf16.gmra.mxu0 %v1513
          %v1603 = vpop.f32.mrf.mxu0
          %v1604 = vadd.f32 0.0, %v1603
          %v1605 = vpop.f32.mrf.mxu0
          %v1606 = vpop.f32.mrf.mxu0
          %v1607 = vadd.f32 0.0, %v1606
          %v1608 = vpop.f32.mrf.mxu0
          %1609 = vmatprep.mubr.bf16.mxu0 0
          %1610 = vmatmul.mubr.bf16.gmra.mxu0 %v1514
          %v1611 = vpop.f32.mrf.mxu0
          %v1612 = vadd.f32 0.0, %v1611
          %v1613 = vpop.f32.mrf.mxu0
          %v1614 = vpop.f32.mrf.mxu0
          %v1615 = vadd.f32 0.0, %v1614
          %v1616 = vpop.f32.mrf.mxu0
          %1617 = vmatprep.mubr.bf16.mxu0 0
          %1618 = vmatmul.mubr.bf16.gmra.mxu0 %v1515
          %v1619 = vpop.f32.mrf.mxu0
          %v1620 = vadd.f32 0.0, %v1619
          %v1621 = vpop.f32.mrf.mxu0
          %v1622 = vpop.f32.mrf.mxu0
          %v1623 = vadd.f32 0.0, %v1622
          %v1624 = vpop.f32.mrf.mxu0
          %1625 = vmatprep.mubr.bf16.mxu0 0
          %1626 = vmatmul.mubr.bf16.gmra.mxu0 %v1516
          %v1627 = vpop.f32.mrf.mxu0
          %v1628 = vadd.f32 0.0, %v1627
          %v1629 = vpop.f32.mrf.mxu0
          %v1630 = vpop.f32.mrf.mxu0
          %v1631 = vadd.f32 0.0, %v1630
          %v1632 = vpop.f32.mrf.mxu0
          %1633 = vdwg.mxu0
          %v1634 = vmul.f32 %v1604, 0.17677669
          %v1635 = vmul.f32 %v1607, 0.17677669
          %v1636 = vmul.f32 %v1612, 0.17677669
          %v1637 = vmul.f32 %v1615, 0.17677669
          %v1638 = vmul.f32 %v1620, 0.17677669
          %v1639 = vmul.f32 %v1623, 0.17677669
          %v1640 = vmul.f32 %v1628, 0.17677669
          %v1641 = vmul.f32 %v1631, 0.17677669
          %v1642 = vpack.c.bf16 %v1635, %v1634
          %v1643 = vpack.c.bf16 %v1637, %v1636
          %v1644 = vpack.c.bf16 %v1639, %v1638
          %v1645 = vpack.c.bf16 %v1641, %v1640
          %v1650 = vunpack.c.l.b16 %v1642
          %v1651 = vunpack.c.h.b16 %v1642
          %v1652 = vunpack.c.l.b16 %v1643
          %v1653 = vunpack.c.h.b16 %v1643
          %v1654 = vunpack.c.l.b16 %v1644
          %v1655 = vunpack.c.h.b16 %v1644
          %v1656 = vunpack.c.l.b16 %v1645
          %v1657 = vunpack.c.h.b16 %v1645
          %v1658 = vpack.c.b16 %v1650, %v1650
          %v1659 = vpack.c.b16 %v1651, %v1651
          %v1660 = vpack.c.b16 %v1652, %v1652
          %v1661 = vpack.c.b16 %v1653, %v1653
          %v1662 = vpack.c.b16 %v1654, %v1654
          %v1663 = vpack.c.b16 %v1655, %v1655
          %v1664 = vpack.c.b16 %v1656, %v1656
          %v1665 = vpack.c.b16 %v1657, %v1657
          %vm1674 = vcmask 257024
          %1675 = vst.msk [vmem:[#allocation6] sm:$0xf] %vm1674, %v1658
          %1676 = vst.msk [vmem:[#allocation6 + $0x4] sm:$0xf] %vm1674, %v1659
          %1677 = vst.msk [vmem:[#allocation6 + $0x8] sm:$0xf] %vm1674, %v1660
          %1678 = vst.msk [vmem:[#allocation6 + $0xc] sm:$0xf] %vm1674, %v1661
          %1679 = vst.msk [vmem:[#allocation6 + $0x10] sm:$0xf] %vm1674, %v1662
          %1680 = vst.msk [vmem:[#allocation6 + $0x14] sm:$0xf] %vm1674, %v1663
          %1681 = vst.msk [vmem:[#allocation6 + $0x18] sm:$0xf] %vm1674, %v1664
          %1682 = vst.msk [vmem:[#allocation6 + $0x1c] sm:$0xf] %vm1674, %v1665
          %1683 = vrot.lane.b32.xlu0 %v1658, 96
          %v1684 = vpop.permute.xlu0 %1683
          %1685 = vrot.lane.b32.xlu0 %v1659, 96
          %v1686 = vpop.permute.xlu0 %1685
          %1687 = vrot.lane.b32.xlu0 %v1660, 96
          %v1688 = vpop.permute.xlu0 %1687
          %1689 = vrot.lane.b32.xlu0 %v1661, 96
          %v1690 = vpop.permute.xlu0 %1689
          %1691 = vrot.lane.b32.xlu0 %v1662, 96
          %v1692 = vpop.permute.xlu0 %1691
          %1693 = vrot.lane.b32.xlu0 %v1663, 96
          %v1694 = vpop.permute.xlu0 %1693
          %1695 = vrot.lane.b32.xlu0 %v1664, 96
          %v1696 = vpop.permute.xlu0 %1695
          %1697 = vrot.lane.b32.xlu0 %v1665, 96
          %v1698 = vpop.permute.xlu0 %1697
          %s1707 = scalar_lea.vmem [#allocation6], 32
          %1708 = vst.msk [vmem:[%s1707] sm:$0xf] %vm1674, %v1684
          %1709 = vst.msk [vmem:[%s1707 + $0x4] sm:$0xf] %vm1674, %v1686
          %1710 = vst.msk [vmem:[%s1707 + $0x8] sm:$0xf] %vm1674, %v1688
          %1711 = vst.msk [vmem:[%s1707 + $0xc] sm:$0xf] %vm1674, %v1690
          %1712 = vst.msk [vmem:[%s1707 + $0x10] sm:$0xf] %vm1674, %v1692
          %1713 = vst.msk [vmem:[%s1707 + $0x14] sm:$0xf] %vm1674, %v1694
          %1714 = vst.msk [vmem:[%s1707 + $0x18] sm:$0xf] %vm1674, %v1696
          %1715 = vst.msk [vmem:[%s1707 + $0x1c] sm:$0xf] %vm1674, %v1698
          %1716 = vrot.lane.b32.xlu0 %v1658, 64
          %v1717 = vpop.permute.xlu0 %1716
          %1718 = vrot.lane.b32.xlu0 %v1659, 64
          %v1719 = vpop.permute.xlu0 %1718
          %1720 = vrot.lane.b32.xlu0 %v1660, 64
          %v1721 = vpop.permute.xlu0 %1720
          %1722 = vrot.lane.b32.xlu0 %v1661, 64
          %v1723 = vpop.permute.xlu0 %1722
          %1724 = vrot.lane.b32.xlu0 %v1662, 64
          %v1725 = vpop.permute.xlu0 %1724
          %1726 = vrot.lane.b32.xlu0 %v1663, 64
          %v1727 = vpop.permute.xlu0 %1726
          %1728 = vrot.lane.b32.xlu0 %v1664, 64
          %v1729 = vpop.permute.xlu0 %1728
          %1730 = vrot.lane.b32.xlu0 %v1665, 64
          %v1731 = vpop.permute.xlu0 %1730
          %s1740 = scalar_lea.vmem [#allocation6], 64
          %1741 = vst.msk [vmem:[%s1740] sm:$0xf] %vm1674, %v1717
          %1742 = vst.msk [vmem:[%s1740 + $0x4] sm:$0xf] %vm1674, %v1719
          %1743 = vst.msk [vmem:[%s1740 + $0x8] sm:$0xf] %vm1674, %v1721
          %1744 = vst.msk [vmem:[%s1740 + $0xc] sm:$0xf] %vm1674, %v1723
          %1745 = vst.msk [vmem:[%s1740 + $0x10] sm:$0xf] %vm1674, %v1725
          %1746 = vst.msk [vmem:[%s1740 + $0x14] sm:$0xf] %vm1674, %v1727
          %1747 = vst.msk [vmem:[%s1740 + $0x18] sm:$0xf] %vm1674, %v1729
          %1748 = vst.msk [vmem:[%s1740 + $0x1c] sm:$0xf] %vm1674, %v1731
          %1749 = vrot.lane.b32.xlu0 %v1658, 32
          %v1750 = vpop.permute.xlu0 %1749
          %1751 = vrot.lane.b32.xlu0 %v1659, 32
          %v1752 = vpop.permute.xlu0 %1751
          %1753 = vrot.lane.b32.xlu0 %v1660, 32
          %v1754 = vpop.permute.xlu0 %1753
          %1755 = vrot.lane.b32.xlu0 %v1661, 32
          %v1756 = vpop.permute.xlu0 %1755
          %1757 = vrot.lane.b32.xlu0 %v1662, 32
          %v1758 = vpop.permute.xlu0 %1757
          %1759 = vrot.lane.b32.xlu0 %v1663, 32
          %v1760 = vpop.permute.xlu0 %1759
          %1761 = vrot.lane.b32.xlu0 %v1664, 32
          %v1762 = vpop.permute.xlu0 %1761
          %1763 = vrot.lane.b32.xlu0 %v1665, 32
          %v1764 = vpop.permute.xlu0 %1763
          %s1773 = scalar_lea.vmem [#allocation6], 96
          %1774 = vst.msk [vmem:[%s1773] sm:$0xf] %vm1674, %v1750
          %1775 = vst.msk [vmem:[%s1773 + $0x4] sm:$0xf] %vm1674, %v1752
          %1776 = vst.msk [vmem:[%s1773 + $0x8] sm:$0xf] %vm1674, %v1754
          %1777 = vst.msk [vmem:[%s1773 + $0xc] sm:$0xf] %vm1674, %v1756
          %1778 = vst.msk [vmem:[%s1773 + $0x10] sm:$0xf] %vm1674, %v1758
          %1779 = vst.msk [vmem:[%s1773 + $0x14] sm:$0xf] %vm1674, %v1760
          %1780 = vst.msk [vmem:[%s1773 + $0x18] sm:$0xf] %vm1674, %v1762
          %1781 = vst.msk [vmem:[%s1773 + $0x1c] sm:$0xf] %vm1674, %v1764
          %vm1782 = vcmask 7168
          %1783 = vst.msk [vmem:[#allocation7] sm:$0xff] %vm1782, -inf
          %1784 = vst.msk [vmem:[#allocation7 + $0x8] sm:$0xff] %vm1782, -inf
          %1785 = vst.msk [vmem:[#allocation7 + $0x10] sm:$0xff] %vm1782, -inf
          %1786 = vst.msk [vmem:[#allocation7 + $0x18] sm:$0xff] %vm1782, -inf
          %1787 = vst.msk [vmem:[#allocation7 + $0x20] sm:$0xff] %vm1782, -inf
          %1788 = vst.msk [vmem:[#allocation7 + $0x28] sm:$0xff] %vm1782, -inf
          %1789 = vst.msk [vmem:[#allocation7 + $0x30] sm:$0xff] %vm1782, -inf
          %1790 = vst.msk [vmem:[#allocation7 + $0x38] sm:$0xff] %vm1782, -inf
          %1791 = vst.msk [vmem:[#allocation7 + $0x40] sm:$0xff] %vm1782, -inf
          %1792 = vst.msk [vmem:[#allocation7 + $0x48] sm:$0xff] %vm1782, -inf
          %1793 = vst.msk [vmem:[#allocation7 + $0x50] sm:$0xff] %vm1782, -inf
          %1794 = vst.msk [vmem:[#allocation7 + $0x58] sm:$0xff] %vm1782, -inf
          %1795 = vst.msk [vmem:[#allocation7 + $0x60] sm:$0xff] %vm1782, -inf
          %1796 = vst.msk [vmem:[#allocation7 + $0x68] sm:$0xff] %vm1782, -inf
          %1797 = vst.msk [vmem:[#allocation7 + $0x70] sm:$0xff] %vm1782, -inf
          %1798 = vst.msk [vmem:[#allocation7 + $0x78] sm:$0xff] %vm1782, -inf
          %1799 = vst.msk [vmem:[#allocation7 + $0x80] sm:$0xff] %vm1782, -inf
          %1800 = vst.msk [vmem:[#allocation7 + $0x88] sm:$0xff] %vm1782, -inf
          %1801 = vst.msk [vmem:[#allocation7 + $0x90] sm:$0xff] %vm1782, -inf
          %1802 = vst.msk [vmem:[#allocation7 + $0x98] sm:$0xff] %vm1782, -inf
          %1803 = vst.msk [vmem:[#allocation7 + $0xa0] sm:$0xff] %vm1782, -inf
          %1804 = vst.msk [vmem:[#allocation7 + $0xa8] sm:$0xff] %vm1782, -inf
          %1805 = vst.msk [vmem:[#allocation7 + $0xb0] sm:$0xff] %vm1782, -inf
          %1806 = vst.msk [vmem:[#allocation7 + $0xb8] sm:$0xff] %vm1782, -inf
          %1807 = vst.msk [vmem:[#allocation7 + $0xc0] sm:$0xff] %vm1782, -inf
          %1808 = vst.msk [vmem:[#allocation7 + $0xc8] sm:$0xff] %vm1782, -inf
          %1809 = vst.msk [vmem:[#allocation7 + $0xd0] sm:$0xff] %vm1782, -inf
          %1810 = vst.msk [vmem:[#allocation7 + $0xd8] sm:$0xff] %vm1782, -inf
          %1811 = vst.msk [vmem:[#allocation7 + $0xe0] sm:$0xff] %vm1782, -inf
          %1812 = vst.msk [vmem:[#allocation7 + $0xe8] sm:$0xff] %vm1782, -inf
          %1813 = vst.msk [vmem:[#allocation7 + $0xf0] sm:$0xff] %vm1782, -inf
          %1814 = vst.msk [vmem:[#allocation7 + $0xf8] sm:$0xff] %vm1782, -inf
          %1815 = vst.msk [vmem:[#allocation8] sm:$0xff] %vm1782, 0.0
          %1816 = vst.msk [vmem:[#allocation8 + $0x8] sm:$0xff] %vm1782, 0.0
          %1817 = vst.msk [vmem:[#allocation8 + $0x10] sm:$0xff] %vm1782, 0.0
          %1818 = vst.msk [vmem:[#allocation8 + $0x18] sm:$0xff] %vm1782, 0.0
          %1819 = vst.msk [vmem:[#allocation8 + $0x20] sm:$0xff] %vm1782, 0.0
          %1820 = vst.msk [vmem:[#allocation8 + $0x28] sm:$0xff] %vm1782, 0.0
          %1821 = vst.msk [vmem:[#allocation8 + $0x30] sm:$0xff] %vm1782, 0.0
          %1822 = vst.msk [vmem:[#allocation8 + $0x38] sm:$0xff] %vm1782, 0.0
          %1823 = vst.msk [vmem:[#allocation8 + $0x40] sm:$0xff] %vm1782, 0.0
          %1824 = vst.msk [vmem:[#allocation8 + $0x48] sm:$0xff] %vm1782, 0.0
          %1825 = vst.msk [vmem:[#allocation8 + $0x50] sm:$0xff] %vm1782, 0.0
          %1826 = vst.msk [vmem:[#allocation8 + $0x58] sm:$0xff] %vm1782, 0.0
          %1827 = vst.msk [vmem:[#allocation8 + $0x60] sm:$0xff] %vm1782, 0.0
          %1828 = vst.msk [vmem:[#allocation8 + $0x68] sm:$0xff] %vm1782, 0.0
          %1829 = vst.msk [vmem:[#allocation8 + $0x70] sm:$0xff] %vm1782, 0.0
          %1830 = vst.msk [vmem:[#allocation8 + $0x78] sm:$0xff] %vm1782, 0.0
          %1831 = vst.msk [vmem:[#allocation8 + $0x80] sm:$0xff] %vm1782, 0.0
          %1832 = vst.msk [vmem:[#allocation8 + $0x88] sm:$0xff] %vm1782, 0.0
          %1833 = vst.msk [vmem:[#allocation8 + $0x90] sm:$0xff] %vm1782, 0.0
          %1834 = vst.msk [vmem:[#allocation8 + $0x98] sm:$0xff] %vm1782, 0.0
          %1835 = vst.msk [vmem:[#allocation8 + $0xa0] sm:$0xff] %vm1782, 0.0
          %1836 = vst.msk [vmem:[#allocation8 + $0xa8] sm:$0xff] %vm1782, 0.0
          %1837 = vst.msk [vmem:[#allocation8 + $0xb0] sm:$0xff] %vm1782, 0.0
          %1838 = vst.msk [vmem:[#allocation8 + $0xb8] sm:$0xff] %vm1782, 0.0
          %1839 = vst.msk [vmem:[#allocation8 + $0xc0] sm:$0xff] %vm1782, 0.0
          %1840 = vst.msk [vmem:[#allocation8 + $0xc8] sm:$0xff] %vm1782, 0.0
          %1841 = vst.msk [vmem:[#allocation8 + $0xd0] sm:$0xff] %vm1782, 0.0
          %1842 = vst.msk [vmem:[#allocation8 + $0xd8] sm:$0xff] %vm1782, 0.0
          %1843 = vst.msk [vmem:[#allocation8 + $0xe0] sm:$0xff] %vm1782, 0.0
          %1844 = vst.msk [vmem:[#allocation8 + $0xe8] sm:$0xff] %vm1782, 0.0
          %1845 = vst.msk [vmem:[#allocation8 + $0xf0] sm:$0xff] %vm1782, 0.0
          %1846 = vst.msk [vmem:[#allocation8 + $0xf8] sm:$0xff] %vm1782, 0.0
          %vm1847 = vcmask 261120
          %1848 = vst.msk [vmem:[#allocation9] sm:$0xff] %vm1847, 0.0
          %1849 = vst.msk [vmem:[#allocation9 + $0x8] sm:$0xff] %vm1847, 0.0
          %1850 = vst.msk [vmem:[#allocation9 + $0x10] sm:$0xff] %vm1847, 0.0
          %1851 = vst.msk [vmem:[#allocation9 + $0x18] sm:$0xff] %vm1847, 0.0
          %1852 = vst.msk [vmem:[#allocation9 + $0x20] sm:$0xff] %vm1847, 0.0
          %1853 = vst.msk [vmem:[#allocation9 + $0x28] sm:$0xff] %vm1847, 0.0
          %1854 = vst.msk [vmem:[#allocation9 + $0x30] sm:$0xff] %vm1847, 0.0
          %1855 = vst.msk [vmem:[#allocation9 + $0x38] sm:$0xff] %vm1847, 0.0
          %1856 = vst.msk [vmem:[#allocation9 + $0x40] sm:$0xff] %vm1847, 0.0
          %1857 = vst.msk [vmem:[#allocation9 + $0x48] sm:$0xff] %vm1847, 0.0
          %1858 = vst.msk [vmem:[#allocation9 + $0x50] sm:$0xff] %vm1847, 0.0
          %1859 = vst.msk [vmem:[#allocation9 + $0x58] sm:$0xff] %vm1847, 0.0
          %1860 = vst.msk [vmem:[#allocation9 + $0x60] sm:$0xff] %vm1847, 0.0
          %1861 = vst.msk [vmem:[#allocation9 + $0x68] sm:$0xff] %vm1847, 0.0
          %1862 = vst.msk [vmem:[#allocation9 + $0x70] sm:$0xff] %vm1847, 0.0
          %1863 = vst.msk [vmem:[#allocation9 + $0x78] sm:$0xff] %vm1847, 0.0
          %1864 = vst.msk [vmem:[#allocation9 + $0x80] sm:$0xff] %vm1847, 0.0
          %1865 = vst.msk [vmem:[#allocation9 + $0x88] sm:$0xff] %vm1847, 0.0
          %1866 = vst.msk [vmem:[#allocation9 + $0x90] sm:$0xff] %vm1847, 0.0
          %1867 = vst.msk [vmem:[#allocation9 + $0x98] sm:$0xff] %vm1847, 0.0
          %1868 = vst.msk [vmem:[#allocation9 + $0xa0] sm:$0xff] %vm1847, 0.0
          %1869 = vst.msk [vmem:[#allocation9 + $0xa8] sm:$0xff] %vm1847, 0.0
          %1870 = vst.msk [vmem:[#allocation9 + $0xb0] sm:$0xff] %vm1847, 0.0
          %1871 = vst.msk [vmem:[#allocation9 + $0xb8] sm:$0xff] %vm1847, 0.0
          %1872 = vst.msk [vmem:[#allocation9 + $0xc0] sm:$0xff] %vm1847, 0.0
          %1873 = vst.msk [vmem:[#allocation9 + $0xc8] sm:$0xff] %vm1847, 0.0
          %1874 = vst.msk [vmem:[#allocation9 + $0xd0] sm:$0xff] %vm1847, 0.0
          %1875 = vst.msk [vmem:[#allocation9 + $0xd8] sm:$0xff] %vm1847, 0.0
          %1876 = vst.msk [vmem:[#allocation9 + $0xe0] sm:$0xff] %vm1847, 0.0
          %1877 = vst.msk [vmem:[#allocation9 + $0xe8] sm:$0xff] %vm1847, 0.0
          %1878 = vst.msk [vmem:[#allocation9 + $0xf0] sm:$0xff] %vm1847, 0.0
          %1879 = vst.msk [vmem:[#allocation9 + $0xf8] sm:$0xff] %vm1847, 0.0
        $region96: #{tpu_custom_call.1} parent=55 // pred_fallthru
          _
        %s1880 = smul.u32 %s39, 4
        %s1881 = sshra.s32 %s511, 3
        %s1882 = sand.u32 %s511, 7
        %s1883 = smul.u32 %s1880, 16
        %s1884 = sadd.s32 %s1881, %s1883
        %s1885 = smul.addr %s1884, 4
        %s1886 = scalar_lea.vmem [#allocation4], %s1885
        %v1887 = vld [vmem:[%s1886] sm:$0xf]
        %v1888 = vld [vmem:[%s1886 + $0x4] sm:$0xf]
        %v1889 = vld [vmem:[%s1886 + $0x8] sm:$0xf]
        %v1890 = vld [vmem:[%s1886 + $0xc] sm:$0xf]
        %v1891 = vld [vmem:[%s1886 + $0x10] sm:$0xf]
        %v1892 = vld [vmem:[%s1886 + $0x14] sm:$0xf]
        %v1893 = vld [vmem:[%s1886 + $0x18] sm:$0xf]
        %v1894 = vld [vmem:[%s1886 + $0x1c] sm:$0xf]
        %v1895 = vld [vmem:[%s1886 + $0x40] sm:$0xf]
        %v1896 = vld [vmem:[%s1886 + $0x44] sm:$0xf]
        %v1897 = vld [vmem:[%s1886 + $0x48] sm:$0xf]
        %v1898 = vld [vmem:[%s1886 + $0x4c] sm:$0xf]
        %v1899 = vld [vmem:[%s1886 + $0x50] sm:$0xf]
        %v1900 = vld [vmem:[%s1886 + $0x54] sm:$0xf]
        %v1901 = vld [vmem:[%s1886 + $0x58] sm:$0xf]
        %v1902 = vld [vmem:[%s1886 + $0x5c] sm:$0xf]
        %v1903 = vld [vmem:[%s1886 + $0x80] sm:$0xf]
        %v1904 = vld [vmem:[%s1886 + $0x84] sm:$0xf]
        %v1905 = vld [vmem:[%s1886 + $0x88] sm:$0xf]
        %v1906 = vld [vmem:[%s1886 + $0x8c] sm:$0xf]
        %v1907 = vld [vmem:[%s1886 + $0x90] sm:$0xf]
        %v1908 = vld [vmem:[%s1886 + $0x94] sm:$0xf]
        %v1909 = vld [vmem:[%s1886 + $0x98] sm:$0xf]
        %v1910 = vld [vmem:[%s1886 + $0x9c] sm:$0xf]
        %v1911 = vld [vmem:[%s1886 + $0xc0] sm:$0xf]
        %v1912 = vld [vmem:[%s1886 + $0xc4] sm:$0xf]
        %v1913 = vld [vmem:[%s1886 + $0xc8] sm:$0xf]
        %v1914 = vld [vmem:[%s1886 + $0xcc] sm:$0xf]
        %v1915 = vld [vmem:[%s1886 + $0xd0] sm:$0xf]
        %v1916 = vld [vmem:[%s1886 + $0xd4] sm:$0xf]
        %v1917 = vld [vmem:[%s1886 + $0xd8] sm:$0xf]
        %v1918 = vld [vmem:[%s1886 + $0xdc] sm:$0xf]
        %s1919 = smul.addr %s1884, 4
        %s1920 = scalar_lea.vmem [#allocation5], %s1919
        %v1921 = vld [vmem:[%s1920] sm:$0xf]
        %v1922 = vld [vmem:[%s1920 + $0x4] sm:$0xf]
        %v1923 = vld [vmem:[%s1920 + $0x8] sm:$0xf]
        %v1924 = vld [vmem:[%s1920 + $0xc] sm:$0xf]
        %v1925 = vld [vmem:[%s1920 + $0x10] sm:$0xf]
        %v1926 = vld [vmem:[%s1920 + $0x14] sm:$0xf]
        %v1927 = vld [vmem:[%s1920 + $0x18] sm:$0xf]
        %v1928 = vld [vmem:[%s1920 + $0x1c] sm:$0xf]
        %v1929 = vld [vmem:[%s1920 + $0x40] sm:$0xf]
        %v1930 = vld [vmem:[%s1920 + $0x44] sm:$0xf]
        %v1931 = vld [vmem:[%s1920 + $0x48] sm:$0xf]
        %v1932 = vld [vmem:[%s1920 + $0x4c] sm:$0xf]
        %v1933 = vld [vmem:[%s1920 + $0x50] sm:$0xf]
        %v1934 = vld [vmem:[%s1920 + $0x54] sm:$0xf]
        %v1935 = vld [vmem:[%s1920 + $0x58] sm:$0xf]
        %v1936 = vld [vmem:[%s1920 + $0x5c] sm:$0xf]
        %v1937 = vld [vmem:[%s1920 + $0x80] sm:$0xf]
        %v1938 = vld [vmem:[%s1920 + $0x84] sm:$0xf]
        %v1939 = vld [vmem:[%s1920 + $0x88] sm:$0xf]
        %v1940 = vld [vmem:[%s1920 + $0x8c] sm:$0xf]
        %v1941 = vld [vmem:[%s1920 + $0x90] sm:$0xf]
        %v1942 = vld [vmem:[%s1920 + $0x94] sm:$0xf]
        %v1943 = vld [vmem:[%s1920 + $0x98] sm:$0xf]
        %v1944 = vld [vmem:[%s1920 + $0x9c] sm:$0xf]
        %v1945 = vld [vmem:[%s1920 + $0xc0] sm:$0xf]
        %v1946 = vld [vmem:[%s1920 + $0xc4] sm:$0xf]
        %v1947 = vld [vmem:[%s1920 + $0xc8] sm:$0xf]
        %v1948 = vld [vmem:[%s1920 + $0xcc] sm:$0xf]
        %v1949 = vld [vmem:[%s1920 + $0xd0] sm:$0xf]
        %v1950 = vld [vmem:[%s1920 + $0xd4] sm:$0xf]
        %v1951 = vld [vmem:[%s1920 + $0xd8] sm:$0xf]
        %v1952 = vld [vmem:[%s1920 + $0xdc] sm:$0xf]
        %v1953 = vld [vmem:[#allocation6] sm:$0xf]
        %v1954 = vld [vmem:[#allocation6 + $0x4] sm:$0xf]
        %v1955 = vld [vmem:[#allocation6 + $0x8] sm:$0xf]
        %v1956 = vld [vmem:[#allocation6 + $0xc] sm:$0xf]
        %v1957 = vld [vmem:[#allocation6 + $0x10] sm:$0xf]
        %v1958 = vld [vmem:[#allocation6 + $0x14] sm:$0xf]
        %v1959 = vld [vmem:[#allocation6 + $0x18] sm:$0xf]
        %v1960 = vld [vmem:[#allocation6 + $0x1c] sm:$0xf]
        %v1961 = vld [vmem:[#allocation6 + $0x20] sm:$0xf]
        %v1962 = vld [vmem:[#allocation6 + $0x24] sm:$0xf]
        %v1963 = vld [vmem:[#allocation6 + $0x28] sm:$0xf]
        %v1964 = vld [vmem:[#allocation6 + $0x2c] sm:$0xf]
        %v1965 = vld [vmem:[#allocation6 + $0x30] sm:$0xf]
        %v1966 = vld [vmem:[#allocation6 + $0x34] sm:$0xf]
        %v1967 = vld [vmem:[#allocation6 + $0x38] sm:$0xf]
        %v1968 = vld [vmem:[#allocation6 + $0x3c] sm:$0xf]
        %v1969 = vld [vmem:[#allocation6 + $0x40] sm:$0xf]
        %v1970 = vld [vmem:[#allocation6 + $0x44] sm:$0xf]
        %v1971 = vld [vmem:[#allocation6 + $0x48] sm:$0xf]
        %v1972 = vld [vmem:[#allocation6 + $0x4c] sm:$0xf]
        %v1973 = vld [vmem:[#allocation6 + $0x50] sm:$0xf]
        %v1974 = vld [vmem:[#allocation6 + $0x54] sm:$0xf]
        %v1975 = vld [vmem:[#allocation6 + $0x58] sm:$0xf]
        %v1976 = vld [vmem:[#allocation6 + $0x5c] sm:$0xf]
        %v1977 = vld [vmem:[#allocation6 + $0x60] sm:$0xf]
        %v1978 = vld [vmem:[#allocation6 + $0x64] sm:$0xf]
        %v1979 = vld [vmem:[#allocation6 + $0x68] sm:$0xf]
        %v1980 = vld [vmem:[#allocation6 + $0x6c] sm:$0xf]
        %v1981 = vld [vmem:[#allocation6 + $0x70] sm:$0xf]
        %v1982 = vld [vmem:[#allocation6 + $0x74] sm:$0xf]
        %v1983 = vld [vmem:[#allocation6 + $0x78] sm:$0xf]
        %v1984 = vld [vmem:[#allocation6 + $0x7c] sm:$0xf]
        %v1993 = vunpack.c.l.b16 %v1953
        %v1994 = vunpack.c.l.b16 %v1954
        %v1995 = vunpack.c.l.b16 %v1955
        %v1996 = vunpack.c.l.b16 %v1956
        %v1997 = vunpack.c.l.b16 %v1957
        %v1998 = vunpack.c.l.b16 %v1958
        %v1999 = vunpack.c.l.b16 %v1959
        %v2000 = vunpack.c.l.b16 %v1960
        %v2001 = vpack.c.b16 %v1994, %v1993
        %v2002 = vpack.c.b16 %v1996, %v1995
        %v2003 = vpack.c.b16 %v1998, %v1997
        %v2004 = vpack.c.b16 %v2000, %v1999
        %v2013 = vunpack.c.l.b16 %v1887
        %v2014 = vunpack.c.l.b16 %v1888
        %v2015 = vunpack.c.l.b16 %v1889
        %v2016 = vunpack.c.l.b16 %v1890
        %v2017 = vunpack.c.l.b16 %v1891
        %v2018 = vunpack.c.l.b16 %v1892
        %v2019 = vunpack.c.l.b16 %v1893
        %v2020 = vunpack.c.l.b16 %v1894
        %v2021 = vpack.c.b16 %v2014, %v2013
        %v2022 = vpack.c.b16 %v2016, %v2015
        %v2023 = vpack.c.b16 %v2018, %v2017
        %v2024 = vpack.c.b16 %v2020, %v2019
        %vm2025 = vcmask 261120
        %v2027 = vsel %vm2025, %v2001, 0
        %v2030 = vsel %vm2025, %v2002, 0
        %v2033 = vsel %vm2025, %v2003, 0
        %v2036 = vsel %vm2025, %v2004, 0
        %v2039 = vsel %vm2025, %v2021, 0
        %v2042 = vsel %vm2025, %v2022, 0
        %v2045 = vsel %vm2025, %v2023, 0
        %v2048 = vsel %vm2025, %v2024, 0
        %2050 = vmatprep.subr.bf16.mxu0 0
        %2051 = vmatpush1.bf16.xpose.msra.mxu0 0
        %2052 = vmatprep.subr.bf16.mxu0 0
        %2053 = vmatpush1.bf16.xpose.msra.mxu0 0
        %2054 = vmatprep.subr.bf16.mxu0 0
        %2055 = vmatpush1.bf16.xpose.msra.mxu0 0
        %2056 = vmatprep.subr.bf16.mxu0 0
        %2057 = vmatpush1.bf16.xpose.msra.mxu0 0
        %2058 = vmatprep.subr.bf16.mxu0 0
        %2059 = vmatpush1.bf16.xpose.msra.mxu0 %v2048
        %2060 = vmatprep.subr.bf16.mxu0 0
        %2061 = vmatpush1.bf16.xpose.msra.mxu0 %v2045
        %2062 = vmatprep.subr.bf16.mxu0 0
        %2063 = vmatpush1.bf16.xpose.msra.mxu0 %v2042
        %2064 = vmatprep.subr.bf16.mxu0 0
        %2065 = vmatpush1.bf16.xpose.msra.mxu0 %v2039
        %2066 = vmatprep.subr.bf16.mxu0 0
        %2067 = vmatpush2.bf16.xpose.msra.mxu0 0
        %2068 = vmatprep.subr.bf16.mxu0 0
        %2069 = vmatpush2.bf16.xpose.msra.mxu0 0
        %2070 = vmatprep.subr.bf16.mxu0 0
        %2071 = vmatpush2.bf16.xpose.msra.mxu0 0
        %2072 = vmatprep.subr.bf16.mxu0 0
        %2073 = vmatpush2.bf16.xpose.msra.mxu0 0
        %2074 = vmatprep.subr.bf16.mxu0 0
        %2075 = vmatpush2.bf16.xpose.msra.mxu0 0
        %2076 = vmatprep.subr.bf16.mxu0 0
        %2077 = vmatpush2.bf16.xpose.msra.mxu0 0
        %2078 = vmatprep.subr.bf16.mxu0 0
        %2079 = vmatpush2.bf16.xpose.msra.mxu0 0
        %2080 = vmatprep.subr.bf16.mxu0 0
        %2081 = vmatpush2.bf16.xpose.msra.mxu0 0
        %2082 = vmatprep.mubr.bf16.mxu0 0
        %2083 = vmatmul.mubr.bf16.gmra.mxu0 %v2027
        %v2084 = vpop.f32.mrf.mxu0
        %v2085 = vadd.f32 0.0, %v2084
        %v2086 = vpop.f32.mrf.mxu0
        %v2087 = vpop.f32.mrf.mxu0
        %v2088 = vadd.f32 0.0, %v2087
        %v2089 = vpop.f32.mrf.mxu0
        %2090 = vmatprep.mubr.bf16.mxu0 0
        %2091 = vmatmul.mubr.bf16.gmra.mxu0 %v2030
        %v2092 = vpop.f32.mrf.mxu0
        %v2093 = vadd.f32 0.0, %v2092
        %v2094 = vpop.f32.mrf.mxu0
        %v2095 = vpop.f32.mrf.mxu0
        %v2096 = vadd.f32 0.0, %v2095
        %v2097 = vpop.f32.mrf.mxu0
        %2098 = vmatprep.mubr.bf16.mxu0 0
        %2099 = vmatmul.mubr.bf16.gmra.mxu0 %v2033
        %v2100 = vpop.f32.mrf.mxu0
        %v2101 = vadd.f32 0.0, %v2100
        %v2102 = vpop.f32.mrf.mxu0
        %v2103 = vpop.f32.mrf.mxu0
        %v2104 = vadd.f32 0.0, %v2103
        %v2105 = vpop.f32.mrf.mxu0
        %2106 = vmatprep.mubr.bf16.mxu0 0
        %2107 = vmatmul.mubr.bf16.gmra.mxu0 %v2036
        %v2108 = vpop.f32.mrf.mxu0
        %v2109 = vadd.f32 0.0, %v2108
        %v2110 = vpop.f32.mrf.mxu0
        %v2111 = vpop.f32.mrf.mxu0
        %v2112 = vadd.f32 0.0, %v2111
        %v2113 = vpop.f32.mrf.mxu0
        %2114 = vdwg.mxu0
        %v2123 = vunpack.c.l.b16 %v1961
        %v2124 = vunpack.c.l.b16 %v1962
        %v2125 = vunpack.c.l.b16 %v1963
        %v2126 = vunpack.c.l.b16 %v1964
        %v2127 = vunpack.c.l.b16 %v1965
        %v2128 = vunpack.c.l.b16 %v1966
        %v2129 = vunpack.c.l.b16 %v1967
        %v2130 = vunpack.c.l.b16 %v1968
        %v2131 = vpack.c.b16 %v2124, %v2123
        %v2132 = vpack.c.b16 %v2126, %v2125
        %v2133 = vpack.c.b16 %v2128, %v2127
        %v2134 = vpack.c.b16 %v2130, %v2129
        %v2143 = vunpack.c.l.b16 %v1895
        %v2144 = vunpack.c.l.b16 %v1896
        %v2145 = vunpack.c.l.b16 %v1897
        %v2146 = vunpack.c.l.b16 %v1898
        %v2147 = vunpack.c.l.b16 %v1899
        %v2148 = vunpack.c.l.b16 %v1900
        %v2149 = vunpack.c.l.b16 %v1901
        %v2150 = vunpack.c.l.b16 %v1902
        %v2151 = vpack.c.b16 %v2144, %v2143
        %v2152 = vpack.c.b16 %v2146, %v2145
        %v2153 = vpack.c.b16 %v2148, %v2147
        %v2154 = vpack.c.b16 %v2150, %v2149
        %v2156 = vsel %vm2025, %v2131, 0
        %v2159 = vsel %vm2025, %v2132, 0
        %v2162 = vsel %vm2025, %v2133, 0
        %v2165 = vsel %vm2025, %v2134, 0
        %v2168 = vsel %vm2025, %v2151, 0
        %v2171 = vsel %vm2025, %v2152, 0
        %v2174 = vsel %vm2025, %v2153, 0
        %v2177 = vsel %vm2025, %v2154, 0
        %2179 = vmatprep.subr.bf16.mxu0 0
        %2180 = vmatpush1.bf16.xpose.msra.mxu0 0
        %2181 = vmatprep.subr.bf16.mxu0 0
        %2182 = vmatpush1.bf16.xpose.msra.mxu0 0
        %2183 = vmatprep.subr.bf16.mxu0 0
        %2184 = vmatpush1.bf16.xpose.msra.mxu0 0
        %2185 = vmatprep.subr.bf16.mxu0 0
        %2186 = vmatpush1.bf16.xpose.msra.mxu0 0
        %2187 = vmatprep.subr.bf16.mxu0 0
        %2188 = vmatpush1.bf16.xpose.msra.mxu0 %v2177
        %2189 = vmatprep.subr.bf16.mxu0 0
        %2190 = vmatpush1.bf16.xpose.msra.mxu0 %v2174
        %2191 = vmatprep.subr.bf16.mxu0 0
        %2192 = vmatpush1.bf16.xpose.msra.mxu0 %v2171
        %2193 = vmatprep.subr.bf16.mxu0 0
        %2194 = vmatpush1.bf16.xpose.msra.mxu0 %v2168
        %2195 = vmatprep.subr.bf16.mxu0 0
        %2196 = vmatpush2.bf16.xpose.msra.mxu0 0
        %2197 = vmatprep.subr.bf16.mxu0 0
        %2198 = vmatpush2.bf16.xpose.msra.mxu0 0
        %2199 = vmatprep.subr.bf16.mxu0 0
        %2200 = vmatpush2.bf16.xpose.msra.mxu0 0
        %2201 = vmatprep.subr.bf16.mxu0 0
        %2202 = vmatpush2.bf16.xpose.msra.mxu0 0
        %2203 = vmatprep.subr.bf16.mxu0 0
        %2204 = vmatpush2.bf16.xpose.msra.mxu0 0
        %2205 = vmatprep.subr.bf16.mxu0 0
        %2206 = vmatpush2.bf16.xpose.msra.mxu0 0
        %2207 = vmatprep.subr.bf16.mxu0 0
        %2208 = vmatpush2.bf16.xpose.msra.mxu0 0
        %2209 = vmatprep.subr.bf16.mxu0 0
        %2210 = vmatpush2.bf16.xpose.msra.mxu0 0
        %2211 = vmatprep.mubr.bf16.mxu0 0
        %2212 = vmatmul.mubr.bf16.gmra.mxu0 %v2156
        %v2213 = vpop.f32.mrf.mxu0
        %v2214 = vadd.f32 0.0, %v2213
        %v2215 = vpop.f32.mrf.mxu0
        %v2216 = vpop.f32.mrf.mxu0
        %v2217 = vadd.f32 0.0, %v2216
        %v2218 = vpop.f32.mrf.mxu0
        %2219 = vmatprep.mubr.bf16.mxu0 0
        %2220 = vmatmul.mubr.bf16.gmra.mxu0 %v2159
        %v2221 = vpop.f32.mrf.mxu0
        %v2222 = vadd.f32 0.0, %v2221
        %v2223 = vpop.f32.mrf.mxu0
        %v2224 = vpop.f32.mrf.mxu0
        %v2225 = vadd.f32 0.0, %v2224
        %v2226 = vpop.f32.mrf.mxu0
        %2227 = vmatprep.mubr.bf16.mxu0 0
        %2228 = vmatmul.mubr.bf16.gmra.mxu0 %v2162
        %v2229 = vpop.f32.mrf.mxu0
        %v2230 = vadd.f32 0.0, %v2229
        %v2231 = vpop.f32.mrf.mxu0
        %v2232 = vpop.f32.mrf.mxu0
        %v2233 = vadd.f32 0.0, %v2232
        %v2234 = vpop.f32.mrf.mxu0
        %2235 = vmatprep.mubr.bf16.mxu0 0
        %2236 = vmatmul.mubr.bf16.gmra.mxu0 %v2165
        %v2237 = vpop.f32.mrf.mxu0
        %v2238 = vadd.f32 0.0, %v2237
        %v2239 = vpop.f32.mrf.mxu0
        %v2240 = vpop.f32.mrf.mxu0
        %v2241 = vadd.f32 0.0, %v2240
        %v2242 = vpop.f32.mrf.mxu0
        %2243 = vdwg.mxu0
        %v2252 = vunpack.c.l.b16 %v1969
        %v2253 = vunpack.c.l.b16 %v1970
        %v2254 = vunpack.c.l.b16 %v1971
        %v2255 = vunpack.c.l.b16 %v1972
        %v2256 = vunpack.c.l.b16 %v1973
        %v2257 = vunpack.c.l.b16 %v1974
        %v2258 = vunpack.c.l.b16 %v1975
        %v2259 = vunpack.c.l.b16 %v1976
        %v2260 = vpack.c.b16 %v2253, %v2252
        %v2261 = vpack.c.b16 %v2255, %v2254
        %v2262 = vpack.c.b16 %v2257, %v2256
        %v2263 = vpack.c.b16 %v2259, %v2258
        %v2272 = vunpack.c.l.b16 %v1903
        %v2273 = vunpack.c.l.b16 %v1904
        %v2274 = vunpack.c.l.b16 %v1905
        %v2275 = vunpack.c.l.b16 %v1906
        %v2276 = vunpack.c.l.b16 %v1907
        %v2277 = vunpack.c.l.b16 %v1908
        %v2278 = vunpack.c.l.b16 %v1909
        %v2279 = vunpack.c.l.b16 %v1910
        %v2280 = vpack.c.b16 %v2273, %v2272
        %v2281 = vpack.c.b16 %v2275, %v2274
        %v2282 = vpack.c.b16 %v2277, %v2276
        %v2283 = vpack.c.b16 %v2279, %v2278
        %v2285 = vsel %vm2025, %v2260, 0
        %v2288 = vsel %vm2025, %v2261, 0
        %v2291 = vsel %vm2025, %v2262, 0
        %v2294 = vsel %vm2025, %v2263, 0
        %v2297 = vsel %vm2025, %v2280, 0
        %v2300 = vsel %vm2025, %v2281, 0
        %v2303 = vsel %vm2025, %v2282, 0
        %v2306 = vsel %vm2025, %v2283, 0
        %2308 = vmatprep.subr.bf16.mxu0 0
        %2309 = vmatpush1.bf16.xpose.msra.mxu0 0
        %2310 = vmatprep.subr.bf16.mxu0 0
        %2311 = vmatpush1.bf16.xpose.msra.mxu0 0
        %2312 = vmatprep.subr.bf16.mxu0 0
        %2313 = vmatpush1.bf16.xpose.msra.mxu0 0
        %2314 = vmatprep.subr.bf16.mxu0 0
        %2315 = vmatpush1.bf16.xpose.msra.mxu0 0
        %2316 = vmatprep.subr.bf16.mxu0 0
        %2317 = vmatpush1.bf16.xpose.msra.mxu0 %v2306
        %2318 = vmatprep.subr.bf16.mxu0 0
        %2319 = vmatpush1.bf16.xpose.msra.mxu0 %v2303
        %2320 = vmatprep.subr.bf16.mxu0 0
        %2321 = vmatpush1.bf16.xpose.msra.mxu0 %v2300
        %2322 = vmatprep.subr.bf16.mxu0 0
        %2323 = vmatpush1.bf16.xpose.msra.mxu0 %v2297
        %2324 = vmatprep.subr.bf16.mxu0 0
        %2325 = vmatpush2.bf16.xpose.msra.mxu0 0
        %2326 = vmatprep.subr.bf16.mxu0 0
        %2327 = vmatpush2.bf16.xpose.msra.mxu0 0
        %2328 = vmatprep.subr.bf16.mxu0 0
        %2329 = vmatpush2.bf16.xpose.msra.mxu0 0
        %2330 = vmatprep.subr.bf16.mxu0 0
        %2331 = vmatpush2.bf16.xpose.msra.mxu0 0
        %2332 = vmatprep.subr.bf16.mxu0 0
        %2333 = vmatpush2.bf16.xpose.msra.mxu0 0
        %2334 = vmatprep.subr.bf16.mxu0 0
        %2335 = vmatpush2.bf16.xpose.msra.mxu0 0
        %2336 = vmatprep.subr.bf16.mxu0 0
        %2337 = vmatpush2.bf16.xpose.msra.mxu0 0
        %2338 = vmatprep.subr.bf16.mxu0 0
        %2339 = vmatpush2.bf16.xpose.msra.mxu0 0
        %2340 = vmatprep.mubr.bf16.mxu0 0
        %2341 = vmatmul.mubr.bf16.gmra.mxu0 %v2285
        %v2342 = vpop.f32.mrf.mxu0
        %v2343 = vadd.f32 0.0, %v2342
        %v2344 = vpop.f32.mrf.mxu0
        %v2345 = vpop.f32.mrf.mxu0
        %v2346 = vadd.f32 0.0, %v2345
        %v2347 = vpop.f32.mrf.mxu0
        %2348 = vmatprep.mubr.bf16.mxu0 0
        %2349 = vmatmul.mubr.bf16.gmra.mxu0 %v2288
        %v2350 = vpop.f32.mrf.mxu0
        %v2351 = vadd.f32 0.0, %v2350
        %v2352 = vpop.f32.mrf.mxu0
        %v2353 = vpop.f32.mrf.mxu0
        %v2354 = vadd.f32 0.0, %v2353
        %v2355 = vpop.f32.mrf.mxu0
        %2356 = vmatprep.mubr.bf16.mxu0 0
        %2357 = vmatmul.mubr.bf16.gmra.mxu0 %v2291
        %v2358 = vpop.f32.mrf.mxu0
        %v2359 = vadd.f32 0.0, %v2358
        %v2360 = vpop.f32.mrf.mxu0
        %v2361 = vpop.f32.mrf.mxu0
        %v2362 = vadd.f32 0.0, %v2361
        %v2363 = vpop.f32.mrf.mxu0
        %2364 = vmatprep.mubr.bf16.mxu0 0
        %2365 = vmatmul.mubr.bf16.gmra.mxu0 %v2294
        %v2366 = vpop.f32.mrf.mxu0
        %v2367 = vadd.f32 0.0, %v2366
        %v2368 = vpop.f32.mrf.mxu0
        %v2369 = vpop.f32.mrf.mxu0
        %v2370 = vadd.f32 0.0, %v2369
        %v2371 = vpop.f32.mrf.mxu0
        %2372 = vdwg.mxu0
        %v2381 = vunpack.c.l.b16 %v1977
        %v2382 = vunpack.c.l.b16 %v1978
        %v2383 = vunpack.c.l.b16 %v1979
        %v2384 = vunpack.c.l.b16 %v1980
        %v2385 = vunpack.c.l.b16 %v1981
        %v2386 = vunpack.c.l.b16 %v1982
        %v2387 = vunpack.c.l.b16 %v1983
        %v2388 = vunpack.c.l.b16 %v1984
        %v2389 = vpack.c.b16 %v2382, %v2381
        %v2390 = vpack.c.b16 %v2384, %v2383
        %v2391 = vpack.c.b16 %v2386, %v2385
        %v2392 = vpack.c.b16 %v2388, %v2387
        %v2401 = vunpack.c.l.b16 %v1911
        %v2402 = vunpack.c.l.b16 %v1912
        %v2403 = vunpack.c.l.b16 %v1913
        %v2404 = vunpack.c.l.b16 %v1914
        %v2405 = vunpack.c.l.b16 %v1915
        %v2406 = vunpack.c.l.b16 %v1916
        %v2407 = vunpack.c.l.b16 %v1917
        %v2408 = vunpack.c.l.b16 %v1918
        %v2409 = vpack.c.b16 %v2402, %v2401
        %v2410 = vpack.c.b16 %v2404, %v2403
        %v2411 = vpack.c.b16 %v2406, %v2405
        %v2412 = vpack.c.b16 %v2408, %v2407
        %v2414 = vsel %vm2025, %v2389, 0
        %v2417 = vsel %vm2025, %v2390, 0
        %v2420 = vsel %vm2025, %v2391, 0
        %v2423 = vsel %vm2025, %v2392, 0
        %v2426 = vsel %vm2025, %v2409, 0
        %v2429 = vsel %vm2025, %v2410, 0
        %v2432 = vsel %vm2025, %v2411, 0
        %v2435 = vsel %vm2025, %v2412, 0
        %2437 = vmatprep.subr.bf16.mxu0 0
        %2438 = vmatpush1.bf16.xpose.msra.mxu0 0
        %2439 = vmatprep.subr.bf16.mxu0 0
        %2440 = vmatpush1.bf16.xpose.msra.mxu0 0
        %2441 = vmatprep.subr.bf16.mxu0 0
        %2442 = vmatpush1.bf16.xpose.msra.mxu0 0
        %2443 = vmatprep.subr.bf16.mxu0 0
        %2444 = vmatpush1.bf16.xpose.msra.mxu0 0
        %2445 = vmatprep.subr.bf16.mxu0 0
        %2446 = vmatpush1.bf16.xpose.msra.mxu0 %v2435
        %2447 = vmatprep.subr.bf16.mxu0 0
        %2448 = vmatpush1.bf16.xpose.msra.mxu0 %v2432
        %2449 = vmatprep.subr.bf16.mxu0 0
        %2450 = vmatpush1.bf16.xpose.msra.mxu0 %v2429
        %2451 = vmatprep.subr.bf16.mxu0 0
        %2452 = vmatpush1.bf16.xpose.msra.mxu0 %v2426
        %2453 = vmatprep.subr.bf16.mxu0 0
        %2454 = vmatpush2.bf16.xpose.msra.mxu0 0
        %2455 = vmatprep.subr.bf16.mxu0 0
        %2456 = vmatpush2.bf16.xpose.msra.mxu0 0
        %2457 = vmatprep.subr.bf16.mxu0 0
        %2458 = vmatpush2.bf16.xpose.msra.mxu0 0
        %2459 = vmatprep.subr.bf16.mxu0 0
        %2460 = vmatpush2.bf16.xpose.msra.mxu0 0
        %2461 = vmatprep.subr.bf16.mxu0 0
        %2462 = vmatpush2.bf16.xpose.msra.mxu0 0
        %2463 = vmatprep.subr.bf16.mxu0 0
        %2464 = vmatpush2.bf16.xpose.msra.mxu0 0
        %2465 = vmatprep.subr.bf16.mxu0 0
        %2466 = vmatpush2.bf16.xpose.msra.mxu0 0
        %2467 = vmatprep.subr.bf16.mxu0 0
        %2468 = vmatpush2.bf16.xpose.msra.mxu0 0
        %2469 = vmatprep.mubr.bf16.mxu0 0
        %2470 = vmatmul.mubr.bf16.gmra.mxu0 %v2414
        %v2471 = vpop.f32.mrf.mxu0
        %v2472 = vadd.f32 0.0, %v2471
        %v2473 = vpop.f32.mrf.mxu0
        %v2474 = vpop.f32.mrf.mxu0
        %v2475 = vadd.f32 0.0, %v2474
        %v2476 = vpop.f32.mrf.mxu0
        %2477 = vmatprep.mubr.bf16.mxu0 0
        %2478 = vmatmul.mubr.bf16.gmra.mxu0 %v2417
        %v2479 = vpop.f32.mrf.mxu0
        %v2480 = vadd.f32 0.0, %v2479
        %v2481 = vpop.f32.mrf.mxu0
        %v2482 = vpop.f32.mrf.mxu0
        %v2483 = vadd.f32 0.0, %v2482
        %v2484 = vpop.f32.mrf.mxu0
        %2485 = vmatprep.mubr.bf16.mxu0 0
        %2486 = vmatmul.mubr.bf16.gmra.mxu0 %v2420
        %v2487 = vpop.f32.mrf.mxu0
        %v2488 = vadd.f32 0.0, %v2487
        %v2489 = vpop.f32.mrf.mxu0
        %v2490 = vpop.f32.mrf.mxu0
        %v2491 = vadd.f32 0.0, %v2490
        %v2492 = vpop.f32.mrf.mxu0
        %2493 = vmatprep.mubr.bf16.mxu0 0
        %2494 = vmatmul.mubr.bf16.gmra.mxu0 %v2423
        %v2495 = vpop.f32.mrf.mxu0
        %v2496 = vadd.f32 0.0, %v2495
        %v2497 = vpop.f32.mrf.mxu0
        %v2498 = vpop.f32.mrf.mxu0
        %v2499 = vadd.f32 0.0, %v2498
        %v2500 = vpop.f32.mrf.mxu0
        %2501 = vdwg.mxu0
        %v2502 = vld [vmem:[#allocation7] sm:$0xff]
        %v2503 = vld [vmem:[#allocation7 + $0x8] sm:$0xff]
        %v2504 = vld [vmem:[#allocation7 + $0x10] sm:$0xff]
        %v2505 = vld [vmem:[#allocation7 + $0x18] sm:$0xff]
        %v2506 = vld [vmem:[#allocation7 + $0x20] sm:$0xff]
        %v2507 = vld [vmem:[#allocation7 + $0x28] sm:$0xff]
        %v2508 = vld [vmem:[#allocation7 + $0x30] sm:$0xff]
        %v2509 = vld [vmem:[#allocation7 + $0x38] sm:$0xff]
        %v2510 = vld [vmem:[#allocation7 + $0x40] sm:$0xff]
        %v2511 = vld [vmem:[#allocation7 + $0x48] sm:$0xff]
        %v2512 = vld [vmem:[#allocation7 + $0x50] sm:$0xff]
        %v2513 = vld [vmem:[#allocation7 + $0x58] sm:$0xff]
        %v2514 = vld [vmem:[#allocation7 + $0x60] sm:$0xff]
        %v2515 = vld [vmem:[#allocation7 + $0x68] sm:$0xff]
        %v2516 = vld [vmem:[#allocation7 + $0x70] sm:$0xff]
        %v2517 = vld [vmem:[#allocation7 + $0x78] sm:$0xff]
        %v2518 = vld [vmem:[#allocation7 + $0x80] sm:$0xff]
        %v2519 = vld [vmem:[#allocation7 + $0x88] sm:$0xff]
        %v2520 = vld [vmem:[#allocation7 + $0x90] sm:$0xff]
        %v2521 = vld [vmem:[#allocation7 + $0x98] sm:$0xff]
        %v2522 = vld [vmem:[#allocation7 + $0xa0] sm:$0xff]
        %v2523 = vld [vmem:[#allocation7 + $0xa8] sm:$0xff]
        %v2524 = vld [vmem:[#allocation7 + $0xb0] sm:$0xff]
        %v2525 = vld [vmem:[#allocation7 + $0xb8] sm:$0xff]
        %v2526 = vld [vmem:[#allocation7 + $0xc0] sm:$0xff]
        %v2527 = vld [vmem:[#allocation7 + $0xc8] sm:$0xff]
        %v2528 = vld [vmem:[#allocation7 + $0xd0] sm:$0xff]
        %v2529 = vld [vmem:[#allocation7 + $0xd8] sm:$0xff]
        %v2530 = vld [vmem:[#allocation7 + $0xe0] sm:$0xff]
        %v2531 = vld [vmem:[#allocation7 + $0xe8] sm:$0xff]
        %v2532 = vld [vmem:[#allocation7 + $0xf0] sm:$0xff]
        %v2533 = vld [vmem:[#allocation7 + $0xf8] sm:$0xff]
        %vm2534 = vcmask 523264
        %v2535 = vsel %vm2534, %v2085, -inf
        %2536 = vmax.xlane.f32.xlu0 %v2535
        %v2537 = vpop.xlane.xlu0 %2536
        %v2538 = vsel %vm2534, %v2088, -inf
        %2539 = vmax.xlane.f32.xlu0 %v2538
        %v2540 = vpop.xlane.xlu0 %2539
        %v2541 = vsel %vm2534, %v2093, -inf
        %2542 = vmax.xlane.f32.xlu0 %v2541
        %v2543 = vpop.xlane.xlu0 %2542
        %v2544 = vsel %vm2534, %v2096, -inf
        %2545 = vmax.xlane.f32.xlu0 %v2544
        %v2546 = vpop.xlane.xlu0 %2545
        %v2547 = vsel %vm2534, %v2101, -inf
        %2548 = vmax.xlane.f32.xlu0 %v2547
        %v2549 = vpop.xlane.xlu0 %2548
        %v2550 = vsel %vm2534, %v2104, -inf
        %2551 = vmax.xlane.f32.xlu0 %v2550
        %v2552 = vpop.xlane.xlu0 %2551
        %v2553 = vsel %vm2534, %v2109, -inf
        %2554 = vmax.xlane.f32.xlu0 %v2553
        %v2555 = vpop.xlane.xlu0 %2554
        %v2556 = vsel %vm2534, %v2112, -inf
        %2557 = vmax.xlane.f32.xlu0 %v2556
        %v2558 = vpop.xlane.xlu0 %2557
        %v2559 = vsel %vm2534, %v2214, -inf
        %2560 = vmax.xlane.f32.xlu0 %v2559
        %v2561 = vpop.xlane.xlu0 %2560
        %v2562 = vsel %vm2534, %v2217, -inf
        %2563 = vmax.xlane.f32.xlu0 %v2562
        %v2564 = vpop.xlane.xlu0 %2563
        %v2565 = vsel %vm2534, %v2222, -inf
        %2566 = vmax.xlane.f32.xlu0 %v2565
        %v2567 = vpop.xlane.xlu0 %2566
        %v2568 = vsel %vm2534, %v2225, -inf
        %2569 = vmax.xlane.f32.xlu0 %v2568
        %v2570 = vpop.xlane.xlu0 %2569
        %v2571 = vsel %vm2534, %v2230, -inf
        %2572 = vmax.xlane.f32.xlu0 %v2571
        %v2573 = vpop.xlane.xlu0 %2572
        %v2574 = vsel %vm2534, %v2233, -inf
        %2575 = vmax.xlane.f32.xlu0 %v2574
        %v2576 = vpop.xlane.xlu0 %2575
        %v2577 = vsel %vm2534, %v2238, -inf
        %2578 = vmax.xlane.f32.xlu0 %v2577
        %v2579 = vpop.xlane.xlu0 %2578
        %v2580 = vsel %vm2534, %v2241, -inf
        %2581 = vmax.xlane.f32.xlu0 %v2580
        %v2582 = vpop.xlane.xlu0 %2581
        %v2583 = vsel %vm2534, %v2343, -inf
        %2584 = vmax.xlane.f32.xlu0 %v2583
        %v2585 = vpop.xlane.xlu0 %2584
        %v2586 = vsel %vm2534, %v2346, -inf
        %2587 = vmax.xlane.f32.xlu0 %v2586
        %v2588 = vpop.xlane.xlu0 %2587
        %v2589 = vsel %vm2534, %v2351, -inf
        %2590 = vmax.xlane.f32.xlu0 %v2589
        %v2591 = vpop.xlane.xlu0 %2590
        %v2592 = vsel %vm2534, %v2354, -inf
        %2593 = vmax.xlane.f32.xlu0 %v2592
        %v2594 = vpop.xlane.xlu0 %2593
        %v2595 = vsel %vm2534, %v2359, -inf
        %2596 = vmax.xlane.f32.xlu0 %v2595
        %v2597 = vpop.xlane.xlu0 %2596
        %v2598 = vsel %vm2534, %v2362, -inf
        %2599 = vmax.xlane.f32.xlu0 %v2598
        %v2600 = vpop.xlane.xlu0 %2599
        %v2601 = vsel %vm2534, %v2367, -inf
        %2602 = vmax.xlane.f32.xlu0 %v2601
        %v2603 = vpop.xlane.xlu0 %2602
        %v2604 = vsel %vm2534, %v2370, -inf
        %2605 = vmax.xlane.f32.xlu0 %v2604
        %v2606 = vpop.xlane.xlu0 %2605
        %v2607 = vsel %vm2534, %v2472, -inf
        %2608 = vmax.xlane.f32.xlu0 %v2607
        %v2609 = vpop.xlane.xlu0 %2608
        %v2610 = vsel %vm2534, %v2475, -inf
        %2611 = vmax.xlane.f32.xlu0 %v2610
        %v2612 = vpop.xlane.xlu0 %2611
        %v2613 = vsel %vm2534, %v2480, -inf
        %2614 = vmax.xlane.f32.xlu0 %v2613
        %v2615 = vpop.xlane.xlu0 %2614
        %v2616 = vsel %vm2534, %v2483, -inf
        %2617 = vmax.xlane.f32.xlu0 %v2616
        %v2618 = vpop.xlane.xlu0 %2617
        %v2619 = vsel %vm2534, %v2488, -inf
        %2620 = vmax.xlane.f32.xlu0 %v2619
        %v2621 = vpop.xlane.xlu0 %2620
        %v2622 = vsel %vm2534, %v2491, -inf
        %2623 = vmax.xlane.f32.xlu0 %v2622
        %v2624 = vpop.xlane.xlu0 %2623
        %v2625 = vsel %vm2534, %v2496, -inf
        %2626 = vmax.xlane.f32.xlu0 %v2625
        %v2627 = vpop.xlane.xlu0 %2626
        %v2628 = vsel %vm2534, %v2499, -inf
        %2629 = vmax.xlane.f32.xlu0 %v2628
        %v2630 = vpop.xlane.xlu0 %2629
        %v2631 = vmax.f32 %v2502, %v2537
        %v2632 = vmax.f32 %v2503, %v2540
        %v2633 = vmax.f32 %v2504, %v2543
        %v2634 = vmax.f32 %v2505, %v2546
        %v2635 = vmax.f32 %v2506, %v2549
        %v2636 = vmax.f32 %v2507, %v2552
        %v2637 = vmax.f32 %v2508, %v2555
        %v2638 = vmax.f32 %v2509, %v2558
        %v2639 = vmax.f32 %v2510, %v2561
        %v2640 = vmax.f32 %v2511, %v2564
        %v2641 = vmax.f32 %v2512, %v2567
        %v2642 = vmax.f32 %v2513, %v2570
        %v2643 = vmax.f32 %v2514, %v2573
        %v2644 = vmax.f32 %v2515, %v2576
        %v2645 = vmax.f32 %v2516, %v2579
        %v2646 = vmax.f32 %v2517, %v2582
        %v2647 = vmax.f32 %v2518, %v2585
        %v2648 = vmax.f32 %v2519, %v2588
        %v2649 = vmax.f32 %v2520, %v2591
        %v2650 = vmax.f32 %v2521, %v2594
        %v2651 = vmax.f32 %v2522, %v2597
        %v2652 = vmax.f32 %v2523, %v2600
        %v2653 = vmax.f32 %v2524, %v2603
        %v2654 = vmax.f32 %v2525, %v2606
        %v2655 = vmax.f32 %v2526, %v2609
        %v2656 = vmax.f32 %v2527, %v2612
        %v2657 = vmax.f32 %v2528, %v2615
        %v2658 = vmax.f32 %v2529, %v2618
        %v2659 = vmax.f32 %v2530, %v2621
        %v2660 = vmax.f32 %v2531, %v2624
        %v2661 = vmax.f32 %v2532, %v2627
        %v2662 = vmax.f32 %v2533, %v2630
        %v2663 = vsub.f32 %v2502, %v2631
        %v2664 = vsub.f32 %v2503, %v2632
        %v2665 = vsub.f32 %v2504, %v2633
        %v2666 = vsub.f32 %v2505, %v2634
        %v2667 = vsub.f32 %v2506, %v2635
        %v2668 = vsub.f32 %v2507, %v2636
        %v2669 = vsub.f32 %v2508, %v2637
        %v2670 = vsub.f32 %v2509, %v2638
        %v2671 = vsub.f32 %v2510, %v2639
        %v2672 = vsub.f32 %v2511, %v2640
        %v2673 = vsub.f32 %v2512, %v2641
        %v2674 = vsub.f32 %v2513, %v2642
        %v2675 = vsub.f32 %v2514, %v2643
        %v2676 = vsub.f32 %v2515, %v2644
        %v2677 = vsub.f32 %v2516, %v2645
        %v2678 = vsub.f32 %v2517, %v2646
        %v2679 = vsub.f32 %v2518, %v2647
        %v2680 = vsub.f32 %v2519, %v2648
        %v2681 = vsub.f32 %v2520, %v2649
        %v2682 = vsub.f32 %v2521, %v2650
        %v2683 = vsub.f32 %v2522, %v2651
        %v2684 = vsub.f32 %v2523, %v2652
        %v2685 = vsub.f32 %v2524, %v2653
        %v2686 = vsub.f32 %v2525, %v2654
        %v2687 = vsub.f32 %v2526, %v2655
        %v2688 = vsub.f32 %v2527, %v2656
        %v2689 = vsub.f32 %v2528, %v2657
        %v2690 = vsub.f32 %v2529, %v2658
        %v2691 = vsub.f32 %v2530, %v2659
        %v2692 = vsub.f32 %v2531, %v2660
        %v2693 = vsub.f32 %v2532, %v2661
        %v2694 = vsub.f32 %v2533, %v2662
        %v2695 = vmul.f32 %v2663, 1.442695
        %v2696 = vpow.pop %v2695
        %v2697 = vmul.f32 %v2664, 1.442695
        %v2698 = vpow.pop %v2697
        %v2699 = vmul.f32 %v2665, 1.442695
        %v2700 = vpow.pop %v2699
        %v2701 = vmul.f32 %v2666, 1.442695
        %v2702 = vpow.pop %v2701
        %v2703 = vmul.f32 %v2667, 1.442695
        %v2704 = vpow.pop %v2703
        %v2705 = vmul.f32 %v2668, 1.442695
        %v2706 = vpow.pop %v2705
        %v2707 = vmul.f32 %v2669, 1.442695
        %v2708 = vpow.pop %v2707
        %v2709 = vmul.f32 %v2670, 1.442695
        %v2710 = vpow.pop %v2709
        %v2711 = vmul.f32 %v2671, 1.442695
        %v2712 = vpow.pop %v2711
        %v2713 = vmul.f32 %v2672, 1.442695
        %v2714 = vpow.pop %v2713
        %v2715 = vmul.f32 %v2673, 1.442695
        %v2716 = vpow.pop %v2715
        %v2717 = vmul.f32 %v2674, 1.442695
        %v2718 = vpow.pop %v2717
        %v2719 = vmul.f32 %v2675, 1.442695
        %v2720 = vpow.pop %v2719
        %v2721 = vmul.f32 %v2676, 1.442695
        %v2722 = vpow.pop %v2721
        %v2723 = vmul.f32 %v2677, 1.442695
        %v2724 = vpow.pop %v2723
        %v2725 = vmul.f32 %v2678, 1.442695
        %v2726 = vpow.pop %v2725
        %v2727 = vmul.f32 %v2679, 1.442695
        %v2728 = vpow.pop %v2727
        %v2729 = vmul.f32 %v2680, 1.442695
        %v2730 = vpow.pop %v2729
        %v2731 = vmul.f32 %v2681, 1.442695
        %v2732 = vpow.pop %v2731
        %v2733 = vmul.f32 %v2682, 1.442695
        %v2734 = vpow.pop %v2733
        %v2735 = vmul.f32 %v2683, 1.442695
        %v2736 = vpow.pop %v2735
        %v2737 = vmul.f32 %v2684, 1.442695
        %v2738 = vpow.pop %v2737
        %v2739 = vmul.f32 %v2685, 1.442695
        %v2740 = vpow.pop %v2739
        %v2741 = vmul.f32 %v2686, 1.442695
        %v2742 = vpow.pop %v2741
        %v2743 = vmul.f32 %v2687, 1.442695
        %v2744 = vpow.pop %v2743
        %v2745 = vmul.f32 %v2688, 1.442695
        %v2746 = vpow.pop %v2745
        %v2747 = vmul.f32 %v2689, 1.442695
        %v2748 = vpow.pop %v2747
        %v2749 = vmul.f32 %v2690, 1.442695
        %v2750 = vpow.pop %v2749
        %v2751 = vmul.f32 %v2691, 1.442695
        %v2752 = vpow.pop %v2751
        %v2753 = vmul.f32 %v2692, 1.442695
        %v2754 = vpow.pop %v2753
        %v2755 = vmul.f32 %v2693, 1.442695
        %v2756 = vpow.pop %v2755
        %v2757 = vmul.f32 %v2694, 1.442695
        %v2758 = vpow.pop %v2757
        %2760 = vset.pattern.permute.xlu0 0
        %2761 = vperm.xlu0 %2760, %v2631
        %v2762 = vpop.permute.xlu0 %2761
        %2765 = vset.pattern.permute.xlu0 0
        %2766 = vperm.xlu0 %2765, %v2632
        %v2767 = vpop.permute.xlu0 %2766
        %2770 = vset.pattern.permute.xlu0 0
        %2771 = vperm.xlu0 %2770, %v2633
        %v2772 = vpop.permute.xlu0 %2771
        %2775 = vset.pattern.permute.xlu0 0
        %2776 = vperm.xlu0 %2775, %v2634
        %v2777 = vpop.permute.xlu0 %2776
        %2780 = vset.pattern.permute.xlu0 0
        %2781 = vperm.xlu0 %2780, %v2635
        %v2782 = vpop.permute.xlu0 %2781
        %2785 = vset.pattern.permute.xlu0 0
        %2786 = vperm.xlu0 %2785, %v2636
        %v2787 = vpop.permute.xlu0 %2786
        %2790 = vset.pattern.permute.xlu0 0
        %2791 = vperm.xlu0 %2790, %v2637
        %v2792 = vpop.permute.xlu0 %2791
        %2795 = vset.pattern.permute.xlu0 0
        %2796 = vperm.xlu0 %2795, %v2638
        %v2797 = vpop.permute.xlu0 %2796
        %2800 = vset.pattern.permute.xlu0 0
        %2801 = vperm.xlu0 %2800, %v2639
        %v2802 = vpop.permute.xlu0 %2801
        %2805 = vset.pattern.permute.xlu0 0
        %2806 = vperm.xlu0 %2805, %v2640
        %v2807 = vpop.permute.xlu0 %2806
        %2810 = vset.pattern.permute.xlu0 0
        %2811 = vperm.xlu0 %2810, %v2641
        %v2812 = vpop.permute.xlu0 %2811
        %2815 = vset.pattern.permute.xlu0 0
        %2816 = vperm.xlu0 %2815, %v2642
        %v2817 = vpop.permute.xlu0 %2816
        %2820 = vset.pattern.permute.xlu0 0
        %2821 = vperm.xlu0 %2820, %v2643
        %v2822 = vpop.permute.xlu0 %2821
        %2825 = vset.pattern.permute.xlu0 0
        %2826 = vperm.xlu0 %2825, %v2644
        %v2827 = vpop.permute.xlu0 %2826
        %2830 = vset.pattern.permute.xlu0 0
        %2831 = vperm.xlu0 %2830, %v2645
        %v2832 = vpop.permute.xlu0 %2831
        %2835 = vset.pattern.permute.xlu0 0
        %2836 = vperm.xlu0 %2835, %v2646
        %v2837 = vpop.permute.xlu0 %2836
        %2840 = vset.pattern.permute.xlu0 0
        %2841 = vperm.xlu0 %2840, %v2647
        %v2842 = vpop.permute.xlu0 %2841
        %2845 = vset.pattern.permute.xlu0 0
        %2846 = vperm.xlu0 %2845, %v2648
        %v2847 = vpop.permute.xlu0 %2846
        %2850 = vset.pattern.permute.xlu0 0
        %2851 = vperm.xlu0 %2850, %v2649
        %v2852 = vpop.permute.xlu0 %2851
        %2855 = vset.pattern.permute.xlu0 0
        %2856 = vperm.xlu0 %2855, %v2650
        %v2857 = vpop.permute.xlu0 %2856
        %2860 = vset.pattern.permute.xlu0 0
        %2861 = vperm.xlu0 %2860, %v2651
        %v2862 = vpop.permute.xlu0 %2861
        %2865 = vset.pattern.permute.xlu0 0
        %2866 = vperm.xlu0 %2865, %v2652
        %v2867 = vpop.permute.xlu0 %2866
        %2870 = vset.pattern.permute.xlu0 0
        %2871 = vperm.xlu0 %2870, %v2653
        %v2872 = vpop.permute.xlu0 %2871
        %2875 = vset.pattern.permute.xlu0 0
        %2876 = vperm.xlu0 %2875, %v2654
        %v2877 = vpop.permute.xlu0 %2876
        %2880 = vset.pattern.permute.xlu0 0
        %2881 = vperm.xlu0 %2880, %v2655
        %v2882 = vpop.permute.xlu0 %2881
        %2885 = vset.pattern.permute.xlu0 0
        %2886 = vperm.xlu0 %2885, %v2656
        %v2887 = vpop.permute.xlu0 %2886
        %2890 = vset.pattern.permute.xlu0 0
        %2891 = vperm.xlu0 %2890, %v2657
        %v2892 = vpop.permute.xlu0 %2891
        %2895 = vset.pattern.permute.xlu0 0
        %2896 = vperm.xlu0 %2895, %v2658
        %v2897 = vpop.permute.xlu0 %2896
        %2900 = vset.pattern.permute.xlu0 0
        %2901 = vperm.xlu0 %2900, %v2659
        %v2902 = vpop.permute.xlu0 %2901
        %2905 = vset.pattern.permute.xlu0 0
        %2906 = vperm.xlu0 %2905, %v2660
        %v2907 = vpop.permute.xlu0 %2906
        %2910 = vset.pattern.permute.xlu0 0
        %2911 = vperm.xlu0 %2910, %v2661
        %v2912 = vpop.permute.xlu0 %2911
        %2915 = vset.pattern.permute.xlu0 0
        %2916 = vperm.xlu0 %2915, %v2662
        %v2917 = vpop.permute.xlu0 %2916
        %v2919 = vsub.f32 %v2085, %v2762
        %v2920 = vsub.f32 %v2088, %v2767
        %v2921 = vsub.f32 %v2093, %v2772
        %v2922 = vsub.f32 %v2096, %v2777
        %v2923 = vsub.f32 %v2101, %v2782
        %v2924 = vsub.f32 %v2104, %v2787
        %v2925 = vsub.f32 %v2109, %v2792
        %v2926 = vsub.f32 %v2112, %v2797
        %v2927 = vsub.f32 %v2214, %v2802
        %v2928 = vsub.f32 %v2217, %v2807
        %v2929 = vsub.f32 %v2222, %v2812
        %v2930 = vsub.f32 %v2225, %v2817
        %v2931 = vsub.f32 %v2230, %v2822
        %v2932 = vsub.f32 %v2233, %v2827
        %v2933 = vsub.f32 %v2238, %v2832
        %v2934 = vsub.f32 %v2241, %v2837
        %v2935 = vsub.f32 %v2343, %v2842
        %v2936 = vsub.f32 %v2346, %v2847
        %v2937 = vsub.f32 %v2351, %v2852
        %v2938 = vsub.f32 %v2354, %v2857
        %v2939 = vsub.f32 %v2359, %v2862
        %v2940 = vsub.f32 %v2362, %v2867
        %v2941 = vsub.f32 %v2367, %v2872
        %v2942 = vsub.f32 %v2370, %v2877
        %v2943 = vsub.f32 %v2472, %v2882
        %v2944 = vsub.f32 %v2475, %v2887
        %v2945 = vsub.f32 %v2480, %v2892
        %v2946 = vsub.f32 %v2483, %v2897
        %v2947 = vsub.f32 %v2488, %v2902
        %v2948 = vsub.f32 %v2491, %v2907
        %v2949 = vsub.f32 %v2496, %v2912
        %v2950 = vsub.f32 %v2499, %v2917
        %v2951 = vmul.f32 %v2919, 1.442695
        %v2952 = vpow.pop %v2951
        %v2953 = vmul.f32 %v2920, 1.442695
        %v2954 = vpow.pop %v2953
        %v2955 = vmul.f32 %v2921, 1.442695
        %v2956 = vpow.pop %v2955
        %v2957 = vmul.f32 %v2922, 1.442695
        %v2958 = vpow.pop %v2957
        %v2959 = vmul.f32 %v2923, 1.442695
        %v2960 = vpow.pop %v2959
        %v2961 = vmul.f32 %v2924, 1.442695
        %v2962 = vpow.pop %v2961
        %v2963 = vmul.f32 %v2925, 1.442695
        %v2964 = vpow.pop %v2963
        %v2965 = vmul.f32 %v2926, 1.442695
        %v2966 = vpow.pop %v2965
        %v2967 = vmul.f32 %v2927, 1.442695
        %v2968 = vpow.pop %v2967
        %v2969 = vmul.f32 %v2928, 1.442695
        %v2970 = vpow.pop %v2969
        %v2971 = vmul.f32 %v2929, 1.442695
        %v2972 = vpow.pop %v2971
        %v2973 = vmul.f32 %v2930, 1.442695
        %v2974 = vpow.pop %v2973
        %v2975 = vmul.f32 %v2931, 1.442695
        %v2976 = vpow.pop %v2975
        %v2977 = vmul.f32 %v2932, 1.442695
        %v2978 = vpow.pop %v2977
        %v2979 = vmul.f32 %v2933, 1.442695
        %v2980 = vpow.pop %v2979
        %v2981 = vmul.f32 %v2934, 1.442695
        %v2982 = vpow.pop %v2981
        %v2983 = vmul.f32 %v2935, 1.442695
        %v2984 = vpow.pop %v2983
        %v2985 = vmul.f32 %v2936, 1.442695
        %v2986 = vpow.pop %v2985
        %v2987 = vmul.f32 %v2937, 1.442695
        %v2988 = vpow.pop %v2987
        %v2989 = vmul.f32 %v2938, 1.442695
        %v2990 = vpow.pop %v2989
        %v2991 = vmul.f32 %v2939, 1.442695
        %v2992 = vpow.pop %v2991
        %v2993 = vmul.f32 %v2940, 1.442695
        %v2994 = vpow.pop %v2993
        %v2995 = vmul.f32 %v2941, 1.442695
        %v2996 = vpow.pop %v2995
        %v2997 = vmul.f32 %v2942, 1.442695
        %v2998 = vpow.pop %v2997
        %v2999 = vmul.f32 %v2943, 1.442695
        %v3000 = vpow.pop %v2999
        %v3001 = vmul.f32 %v2944, 1.442695
        %v3002 = vpow.pop %v3001
        %v3003 = vmul.f32 %v2945, 1.442695
        %v3004 = vpow.pop %v3003
        %v3005 = vmul.f32 %v2946, 1.442695
        %v3006 = vpow.pop %v3005
        %v3007 = vmul.f32 %v2947, 1.442695
        %v3008 = vpow.pop %v3007
        %v3009 = vmul.f32 %v2948, 1.442695
        %v3010 = vpow.pop %v3009
        %v3011 = vmul.f32 %v2949, 1.442695
        %v3012 = vpow.pop %v3011
        %v3013 = vmul.f32 %v2950, 1.442695
        %v3014 = vpow.pop %v3013
        %v3015 = vld [vmem:[#allocation8] sm:$0xff]
        %v3016 = vld [vmem:[#allocation8 + $0x8] sm:$0xff]
        %v3017 = vld [vmem:[#allocation8 + $0x10] sm:$0xff]
        %v3018 = vld [vmem:[#allocation8 + $0x18] sm:$0xff]
        %v3019 = vld [vmem:[#allocation8 + $0x20] sm:$0xff]
        %v3020 = vld [vmem:[#allocation8 + $0x28] sm:$0xff]
        %v3021 = vld [vmem:[#allocation8 + $0x30] sm:$0xff]
        %v3022 = vld [vmem:[#allocation8 + $0x38] sm:$0xff]
        %v3023 = vld [vmem:[#allocation8 + $0x40] sm:$0xff]
        %v3024 = vld [vmem:[#allocation8 + $0x48] sm:$0xff]
        %v3025 = vld [vmem:[#allocation8 + $0x50] sm:$0xff]
        %v3026 = vld [vmem:[#allocation8 + $0x58] sm:$0xff]
        %v3027 = vld [vmem:[#allocation8 + $0x60] sm:$0xff]
        %v3028 = vld [vmem:[#allocation8 + $0x68] sm:$0xff]
        %v3029 = vld [vmem:[#allocation8 + $0x70] sm:$0xff]
        %v3030 = vld [vmem:[#allocation8 + $0x78] sm:$0xff]
        %v3031 = vld [vmem:[#allocation8 + $0x80] sm:$0xff]
        %v3032 = vld [vmem:[#allocation8 + $0x88] sm:$0xff]
        %v3033 = vld [vmem:[#allocation8 + $0x90] sm:$0xff]
        %v3034 = vld [vmem:[#allocation8 + $0x98] sm:$0xff]
        %v3035 = vld [vmem:[#allocation8 + $0xa0] sm:$0xff]
        %v3036 = vld [vmem:[#allocation8 + $0xa8] sm:$0xff]
        %v3037 = vld [vmem:[#allocation8 + $0xb0] sm:$0xff]
        %v3038 = vld [vmem:[#allocation8 + $0xb8] sm:$0xff]
        %v3039 = vld [vmem:[#allocation8 + $0xc0] sm:$0xff]
        %v3040 = vld [vmem:[#allocation8 + $0xc8] sm:$0xff]
        %v3041 = vld [vmem:[#allocation8 + $0xd0] sm:$0xff]
        %v3042 = vld [vmem:[#allocation8 + $0xd8] sm:$0xff]
        %v3043 = vld [vmem:[#allocation8 + $0xe0] sm:$0xff]
        %v3044 = vld [vmem:[#allocation8 + $0xe8] sm:$0xff]
        %v3045 = vld [vmem:[#allocation8 + $0xf0] sm:$0xff]
        %v3046 = vld [vmem:[#allocation8 + $0xf8] sm:$0xff]
        %v3047 = vmul.f32 %v2696, %v3015
        %v3048 = vmul.f32 %v2698, %v3016
        %v3049 = vmul.f32 %v2700, %v3017
        %v3050 = vmul.f32 %v2702, %v3018
        %v3051 = vmul.f32 %v2704, %v3019
        %v3052 = vmul.f32 %v2706, %v3020
        %v3053 = vmul.f32 %v2708, %v3021
        %v3054 = vmul.f32 %v2710, %v3022
        %v3055 = vmul.f32 %v2712, %v3023
        %v3056 = vmul.f32 %v2714, %v3024
        %v3057 = vmul.f32 %v2716, %v3025
        %v3058 = vmul.f32 %v2718, %v3026
        %v3059 = vmul.f32 %v2720, %v3027
        %v3060 = vmul.f32 %v2722, %v3028
        %v3061 = vmul.f32 %v2724, %v3029
        %v3062 = vmul.f32 %v2726, %v3030
        %v3063 = vmul.f32 %v2728, %v3031
        %v3064 = vmul.f32 %v2730, %v3032
        %v3065 = vmul.f32 %v2732, %v3033
        %v3066 = vmul.f32 %v2734, %v3034
        %v3067 = vmul.f32 %v2736, %v3035
        %v3068 = vmul.f32 %v2738, %v3036
        %v3069 = vmul.f32 %v2740, %v3037
        %v3070 = vmul.f32 %v2742, %v3038
        %v3071 = vmul.f32 %v2744, %v3039
        %v3072 = vmul.f32 %v2746, %v3040
        %v3073 = vmul.f32 %v2748, %v3041
        %v3074 = vmul.f32 %v2750, %v3042
        %v3075 = vmul.f32 %v2752, %v3043
        %v3076 = vmul.f32 %v2754, %v3044
        %v3077 = vmul.f32 %v2756, %v3045
        %v3078 = vmul.f32 %v2758, %v3046
        %v3079 = vsel %vm2534, %v2952, 0.0
        %3080 = vadd.xlane.f32.xlu0 %v3079
        %v3081 = vpop.xlane.xlu0 %3080
        %v3082 = vsel %vm2534, %v2954, 0.0
        %3083 = vadd.xlane.f32.xlu0 %v3082
        %v3084 = vpop.xlane.xlu0 %3083
        %v3085 = vsel %vm2534, %v2956, 0.0
        %3086 = vadd.xlane.f32.xlu0 %v3085
        %v3087 = vpop.xlane.xlu0 %3086
        %v3088 = vsel %vm2534, %v2958, 0.0
        %3089 = vadd.xlane.f32.xlu0 %v3088
        %v3090 = vpop.xlane.xlu0 %3089
        %v3091 = vsel %vm2534, %v2960, 0.0
        %3092 = vadd.xlane.f32.xlu0 %v3091
        %v3093 = vpop.xlane.xlu0 %3092
        %v3094 = vsel %vm2534, %v2962, 0.0
        %3095 = vadd.xlane.f32.xlu0 %v3094
        %v3096 = vpop.xlane.xlu0 %3095
        %v3097 = vsel %vm2534, %v2964, 0.0
        %3098 = vadd.xlane.f32.xlu0 %v3097
        %v3099 = vpop.xlane.xlu0 %3098
        %v3100 = vsel %vm2534, %v2966, 0.0
        %3101 = vadd.xlane.f32.xlu0 %v3100
        %v3102 = vpop.xlane.xlu0 %3101
        %v3103 = vsel %vm2534, %v2968, 0.0
        %3104 = vadd.xlane.f32.xlu0 %v3103
        %v3105 = vpop.xlane.xlu0 %3104
        %v3106 = vsel %vm2534, %v2970, 0.0
        %3107 = vadd.xlane.f32.xlu0 %v3106
        %v3108 = vpop.xlane.xlu0 %3107
        %v3109 = vsel %vm2534, %v2972, 0.0
        %3110 = vadd.xlane.f32.xlu0 %v3109
        %v3111 = vpop.xlane.xlu0 %3110
        %v3112 = vsel %vm2534, %v2974, 0.0
        %3113 = vadd.xlane.f32.xlu0 %v3112
        %v3114 = vpop.xlane.xlu0 %3113
        %v3115 = vsel %vm2534, %v2976, 0.0
        %3116 = vadd.xlane.f32.xlu0 %v3115
        %v3117 = vpop.xlane.xlu0 %3116
        %v3118 = vsel %vm2534, %v2978, 0.0
        %3119 = vadd.xlane.f32.xlu0 %v3118
        %v3120 = vpop.xlane.xlu0 %3119
        %v3121 = vsel %vm2534, %v2980, 0.0
        %3122 = vadd.xlane.f32.xlu0 %v3121
        %v3123 = vpop.xlane.xlu0 %3122
        %v3124 = vsel %vm2534, %v2982, 0.0
        %3125 = vadd.xlane.f32.xlu0 %v3124
        %v3126 = vpop.xlane.xlu0 %3125
        %v3127 = vsel %vm2534, %v2984, 0.0
        %3128 = vadd.xlane.f32.xlu0 %v3127
        %v3129 = vpop.xlane.xlu0 %3128
        %v3130 = vsel %vm2534, %v2986, 0.0
        %3131 = vadd.xlane.f32.xlu0 %v3130
        %v3132 = vpop.xlane.xlu0 %3131
        %v3133 = vsel %vm2534, %v2988, 0.0
        %3134 = vadd.xlane.f32.xlu0 %v3133
        %v3135 = vpop.xlane.xlu0 %3134
        %v3136 = vsel %vm2534, %v2990, 0.0
        %3137 = vadd.xlane.f32.xlu0 %v3136
        %v3138 = vpop.xlane.xlu0 %3137
        %v3139 = vsel %vm2534, %v2992, 0.0
        %3140 = vadd.xlane.f32.xlu0 %v3139
        %v3141 = vpop.xlane.xlu0 %3140
        %v3142 = vsel %vm2534, %v2994, 0.0
        %3143 = vadd.xlane.f32.xlu0 %v3142
        %v3144 = vpop.xlane.xlu0 %3143
        %v3145 = vsel %vm2534, %v2996, 0.0
        %3146 = vadd.xlane.f32.xlu0 %v3145
        %v3147 = vpop.xlane.xlu0 %3146
        %v3148 = vsel %vm2534, %v2998, 0.0
        %3149 = vadd.xlane.f32.xlu0 %v3148
        %v3150 = vpop.xlane.xlu0 %3149
        %v3151 = vsel %vm2534, %v3000, 0.0
        %3152 = vadd.xlane.f32.xlu0 %v3151
        %v3153 = vpop.xlane.xlu0 %3152
        %v3154 = vsel %vm2534, %v3002, 0.0
        %3155 = vadd.xlane.f32.xlu0 %v3154
        %v3156 = vpop.xlane.xlu0 %3155
        %v3157 = vsel %vm2534, %v3004, 0.0
        %3158 = vadd.xlane.f32.xlu0 %v3157
        %v3159 = vpop.xlane.xlu0 %3158
        %v3160 = vsel %vm2534, %v3006, 0.0
        %3161 = vadd.xlane.f32.xlu0 %v3160
        %v3162 = vpop.xlane.xlu0 %3161
        %v3163 = vsel %vm2534, %v3008, 0.0
        %3164 = vadd.xlane.f32.xlu0 %v3163
        %v3165 = vpop.xlane.xlu0 %3164
        %v3166 = vsel %vm2534, %v3010, 0.0
        %3167 = vadd.xlane.f32.xlu0 %v3166
        %v3168 = vpop.xlane.xlu0 %3167
        %v3169 = vsel %vm2534, %v3012, 0.0
        %3170 = vadd.xlane.f32.xlu0 %v3169
        %v3171 = vpop.xlane.xlu0 %3170
        %v3172 = vsel %vm2534, %v3014, 0.0
        %3173 = vadd.xlane.f32.xlu0 %v3172
        %v3174 = vpop.xlane.xlu0 %3173
        %v3175 = vadd.f32 %v3047, %v3081
        %v3176 = vadd.f32 %v3048, %v3084
        %v3177 = vadd.f32 %v3049, %v3087
        %v3178 = vadd.f32 %v3050, %v3090
        %v3179 = vadd.f32 %v3051, %v3093
        %v3180 = vadd.f32 %v3052, %v3096
        %v3181 = vadd.f32 %v3053, %v3099
        %v3182 = vadd.f32 %v3054, %v3102
        %v3183 = vadd.f32 %v3055, %v3105
        %v3184 = vadd.f32 %v3056, %v3108
        %v3185 = vadd.f32 %v3057, %v3111
        %v3186 = vadd.f32 %v3058, %v3114
        %v3187 = vadd.f32 %v3059, %v3117
        %v3188 = vadd.f32 %v3060, %v3120
        %v3189 = vadd.f32 %v3061, %v3123
        %v3190 = vadd.f32 %v3062, %v3126
        %v3191 = vadd.f32 %v3063, %v3129
        %v3192 = vadd.f32 %v3064, %v3132
        %v3193 = vadd.f32 %v3065, %v3135
        %v3194 = vadd.f32 %v3066, %v3138
        %v3195 = vadd.f32 %v3067, %v3141
        %v3196 = vadd.f32 %v3068, %v3144
        %v3197 = vadd.f32 %v3069, %v3147
        %v3198 = vadd.f32 %v3070, %v3150
        %v3199 = vadd.f32 %v3071, %v3153
        %v3200 = vadd.f32 %v3072, %v3156
        %v3201 = vadd.f32 %v3073, %v3159
        %v3202 = vadd.f32 %v3074, %v3162
        %v3203 = vadd.f32 %v3075, %v3165
        %v3204 = vadd.f32 %v3076, %v3168
        %v3205 = vadd.f32 %v3077, %v3171
        %v3206 = vadd.f32 %v3078, %v3174
        %vm3207 = vcmask 7168
        %3208 = vst.msk [vmem:[#allocation8] sm:$0xff] %vm3207, %v3175
        %3209 = vst.msk [vmem:[#allocation8 + $0x8] sm:$0xff] %vm3207, %v3176
        %3210 = vst.msk [vmem:[#allocation8 + $0x10] sm:$0xff] %vm3207, %v3177
        %3211 = vst.msk [vmem:[#allocation8 + $0x18] sm:$0xff] %vm3207, %v3178
        %3212 = vst.msk [vmem:[#allocation8 + $0x20] sm:$0xff] %vm3207, %v3179
        %3213 = vst.msk [vmem:[#allocation8 + $0x28] sm:$0xff] %vm3207, %v3180
        %3214 = vst.msk [vmem:[#allocation8 + $0x30] sm:$0xff] %vm3207, %v3181
        %3215 = vst.msk [vmem:[#allocation8 + $0x38] sm:$0xff] %vm3207, %v3182
        %3216 = vst.msk [vmem:[#allocation8 + $0x40] sm:$0xff] %vm3207, %v3183
        %3217 = vst.msk [vmem:[#allocation8 + $0x48] sm:$0xff] %vm3207, %v3184
        %3218 = vst.msk [vmem:[#allocation8 + $0x50] sm:$0xff] %vm3207, %v3185
        %3219 = vst.msk [vmem:[#allocation8 + $0x58] sm:$0xff] %vm3207, %v3186
        %3220 = vst.msk [vmem:[#allocation8 + $0x60] sm:$0xff] %vm3207, %v3187
        %3221 = vst.msk [vmem:[#allocation8 + $0x68] sm:$0xff] %vm3207, %v3188
        %3222 = vst.msk [vmem:[#allocation8 + $0x70] sm:$0xff] %vm3207, %v3189
        %3223 = vst.msk [vmem:[#allocation8 + $0x78] sm:$0xff] %vm3207, %v3190
        %3224 = vst.msk [vmem:[#allocation8 + $0x80] sm:$0xff] %vm3207, %v3191
        %3225 = vst.msk [vmem:[#allocation8 + $0x88] sm:$0xff] %vm3207, %v3192
        %3226 = vst.msk [vmem:[#allocation8 + $0x90] sm:$0xff] %vm3207, %v3193
        %3227 = vst.msk [vmem:[#allocation8 + $0x98] sm:$0xff] %vm3207, %v3194
        %3228 = vst.msk [vmem:[#allocation8 + $0xa0] sm:$0xff] %vm3207, %v3195
        %3229 = vst.msk [vmem:[#allocation8 + $0xa8] sm:$0xff] %vm3207, %v3196
        %3230 = vst.msk [vmem:[#allocation8 + $0xb0] sm:$0xff] %vm3207, %v3197
        %3231 = vst.msk [vmem:[#allocation8 + $0xb8] sm:$0xff] %vm3207, %v3198
        %3232 = vst.msk [vmem:[#allocation8 + $0xc0] sm:$0xff] %vm3207, %v3199
        %3233 = vst.msk [vmem:[#allocation8 + $0xc8] sm:$0xff] %vm3207, %v3200
        %3234 = vst.msk [vmem:[#allocation8 + $0xd0] sm:$0xff] %vm3207, %v3201
        %3235 = vst.msk [vmem:[#allocation8 + $0xd8] sm:$0xff] %vm3207, %v3202
        %3236 = vst.msk [vmem:[#allocation8 + $0xe0] sm:$0xff] %vm3207, %v3203
        %3237 = vst.msk [vmem:[#allocation8 + $0xe8] sm:$0xff] %vm3207, %v3204
        %3238 = vst.msk [vmem:[#allocation8 + $0xf0] sm:$0xff] %vm3207, %v3205
        %3239 = vst.msk [vmem:[#allocation8 + $0xf8] sm:$0xff] %vm3207, %v3206
        %v3240 = vld [vmem:[#allocation9] sm:$0xff]
        %v3241 = vld [vmem:[#allocation9 + $0x8] sm:$0xff]
        %v3242 = vld [vmem:[#allocation9 + $0x10] sm:$0xff]
        %v3243 = vld [vmem:[#allocation9 + $0x18] sm:$0xff]
        %v3244 = vld [vmem:[#allocation9 + $0x20] sm:$0xff]
        %v3245 = vld [vmem:[#allocation9 + $0x28] sm:$0xff]
        %v3246 = vld [vmem:[#allocation9 + $0x30] sm:$0xff]
        %v3247 = vld [vmem:[#allocation9 + $0x38] sm:$0xff]
        %v3248 = vld [vmem:[#allocation9 + $0x40] sm:$0xff]
        %v3249 = vld [vmem:[#allocation9 + $0x48] sm:$0xff]
        %v3250 = vld [vmem:[#allocation9 + $0x50] sm:$0xff]
        %v3251 = vld [vmem:[#allocation9 + $0x58] sm:$0xff]
        %v3252 = vld [vmem:[#allocation9 + $0x60] sm:$0xff]
        %v3253 = vld [vmem:[#allocation9 + $0x68] sm:$0xff]
        %v3254 = vld [vmem:[#allocation9 + $0x70] sm:$0xff]
        %v3255 = vld [vmem:[#allocation9 + $0x78] sm:$0xff]
        %v3256 = vld [vmem:[#allocation9 + $0x80] sm:$0xff]
        %v3257 = vld [vmem:[#allocation9 + $0x88] sm:$0xff]
        %v3258 = vld [vmem:[#allocation9 + $0x90] sm:$0xff]
        %v3259 = vld [vmem:[#allocation9 + $0x98] sm:$0xff]
        %v3260 = vld [vmem:[#allocation9 + $0xa0] sm:$0xff]
        %v3261 = vld [vmem:[#allocation9 + $0xa8] sm:$0xff]
        %v3262 = vld [vmem:[#allocation9 + $0xb0] sm:$0xff]
        %v3263 = vld [vmem:[#allocation9 + $0xb8] sm:$0xff]
        %v3264 = vld [vmem:[#allocation9 + $0xc0] sm:$0xff]
        %v3265 = vld [vmem:[#allocation9 + $0xc8] sm:$0xff]
        %v3266 = vld [vmem:[#allocation9 + $0xd0] sm:$0xff]
        %v3267 = vld [vmem:[#allocation9 + $0xd8] sm:$0xff]
        %v3268 = vld [vmem:[#allocation9 + $0xe0] sm:$0xff]
        %v3269 = vld [vmem:[#allocation9 + $0xe8] sm:$0xff]
        %v3270 = vld [vmem:[#allocation9 + $0xf0] sm:$0xff]
        %v3271 = vld [vmem:[#allocation9 + $0xf8] sm:$0xff]
        %3273 = vset.pattern.permute.xlu0 0
        %3274 = vperm.xlu0 %3273, %v2696
        %v3275 = vpop.permute.xlu0 %3274
        %3278 = vset.pattern.permute.xlu0 0
        %3279 = vperm.xlu0 %3278, %v2698
        %v3280 = vpop.permute.xlu0 %3279
        %3283 = vset.pattern.permute.xlu0 0
        %3284 = vperm.xlu0 %3283, %v2700
        %v3285 = vpop.permute.xlu0 %3284
        %3288 = vset.pattern.permute.xlu0 0
        %3289 = vperm.xlu0 %3288, %v2702
        %v3290 = vpop.permute.xlu0 %3289
        %3293 = vset.pattern.permute.xlu0 0
        %3294 = vperm.xlu0 %3293, %v2704
        %v3295 = vpop.permute.xlu0 %3294
        %3298 = vset.pattern.permute.xlu0 0
        %3299 = vperm.xlu0 %3298, %v2706
        %v3300 = vpop.permute.xlu0 %3299
        %3303 = vset.pattern.permute.xlu0 0
        %3304 = vperm.xlu0 %3303, %v2708
        %v3305 = vpop.permute.xlu0 %3304
        %3308 = vset.pattern.permute.xlu0 0
        %3309 = vperm.xlu0 %3308, %v2710
        %v3310 = vpop.permute.xlu0 %3309
        %3313 = vset.pattern.permute.xlu0 0
        %3314 = vperm.xlu0 %3313, %v2712
        %v3315 = vpop.permute.xlu0 %3314
        %3318 = vset.pattern.permute.xlu0 0
        %3319 = vperm.xlu0 %3318, %v2714
        %v3320 = vpop.permute.xlu0 %3319
        %3323 = vset.pattern.permute.xlu0 0
        %3324 = vperm.xlu0 %3323, %v2716
        %v3325 = vpop.permute.xlu0 %3324
        %3328 = vset.pattern.permute.xlu0 0
        %3329 = vperm.xlu0 %3328, %v2718
        %v3330 = vpop.permute.xlu0 %3329
        %3333 = vset.pattern.permute.xlu0 0
        %3334 = vperm.xlu0 %3333, %v2720
        %v3335 = vpop.permute.xlu0 %3334
        %3338 = vset.pattern.permute.xlu0 0
        %3339 = vperm.xlu0 %3338, %v2722
        %v3340 = vpop.permute.xlu0 %3339
        %3343 = vset.pattern.permute.xlu0 0
        %3344 = vperm.xlu0 %3343, %v2724
        %v3345 = vpop.permute.xlu0 %3344
        %3348 = vset.pattern.permute.xlu0 0
        %3349 = vperm.xlu0 %3348, %v2726
        %v3350 = vpop.permute.xlu0 %3349
        %3353 = vset.pattern.permute.xlu0 0
        %3354 = vperm.xlu0 %3353, %v2728
        %v3355 = vpop.permute.xlu0 %3354
        %3358 = vset.pattern.permute.xlu0 0
        %3359 = vperm.xlu0 %3358, %v2730
        %v3360 = vpop.permute.xlu0 %3359
        %3363 = vset.pattern.permute.xlu0 0
        %3364 = vperm.xlu0 %3363, %v2732
        %v3365 = vpop.permute.xlu0 %3364
        %3368 = vset.pattern.permute.xlu0 0
        %3369 = vperm.xlu0 %3368, %v2734
        %v3370 = vpop.permute.xlu0 %3369
        %3373 = vset.pattern.permute.xlu0 0
        %3374 = vperm.xlu0 %3373, %v2736
        %v3375 = vpop.permute.xlu0 %3374
        %3378 = vset.pattern.permute.xlu0 0
        %3379 = vperm.xlu0 %3378, %v2738
        %v3380 = vpop.permute.xlu0 %3379
        %3383 = vset.pattern.permute.xlu0 0
        %3384 = vperm.xlu0 %3383, %v2740
        %v3385 = vpop.permute.xlu0 %3384
        %3388 = vset.pattern.permute.xlu0 0
        %3389 = vperm.xlu0 %3388, %v2742
        %v3390 = vpop.permute.xlu0 %3389
        %3393 = vset.pattern.permute.xlu0 0
        %3394 = vperm.xlu0 %3393, %v2744
        %v3395 = vpop.permute.xlu0 %3394
        %3398 = vset.pattern.permute.xlu0 0
        %3399 = vperm.xlu0 %3398, %v2746
        %v3400 = vpop.permute.xlu0 %3399
        %3403 = vset.pattern.permute.xlu0 0
        %3404 = vperm.xlu0 %3403, %v2748
        %v3405 = vpop.permute.xlu0 %3404
        %3408 = vset.pattern.permute.xlu0 0
        %3409 = vperm.xlu0 %3408, %v2750
        %v3410 = vpop.permute.xlu0 %3409
        %3413 = vset.pattern.permute.xlu0 0
        %3414 = vperm.xlu0 %3413, %v2752
        %v3415 = vpop.permute.xlu0 %3414
        %3418 = vset.pattern.permute.xlu0 0
        %3419 = vperm.xlu0 %3418, %v2754
        %v3420 = vpop.permute.xlu0 %3419
        %3423 = vset.pattern.permute.xlu0 0
        %3424 = vperm.xlu0 %3423, %v2756
        %v3425 = vpop.permute.xlu0 %3424
        %3428 = vset.pattern.permute.xlu0 0
        %3429 = vperm.xlu0 %3428, %v2758
        %v3430 = vpop.permute.xlu0 %3429
        %v3432 = vmul.f32 %v3275, %v3240
        %v3433 = vmul.f32 %v3280, %v3241
        %v3434 = vmul.f32 %v3285, %v3242
        %v3435 = vmul.f32 %v3290, %v3243
        %v3436 = vmul.f32 %v3295, %v3244
        %v3437 = vmul.f32 %v3300, %v3245
        %v3438 = vmul.f32 %v3305, %v3246
        %v3439 = vmul.f32 %v3310, %v3247
        %v3440 = vmul.f32 %v3315, %v3248
        %v3441 = vmul.f32 %v3320, %v3249
        %v3442 = vmul.f32 %v3325, %v3250
        %v3443 = vmul.f32 %v3330, %v3251
        %v3444 = vmul.f32 %v3335, %v3252
        %v3445 = vmul.f32 %v3340, %v3253
        %v3446 = vmul.f32 %v3345, %v3254
        %v3447 = vmul.f32 %v3350, %v3255
        %v3448 = vmul.f32 %v3355, %v3256
        %v3449 = vmul.f32 %v3360, %v3257
        %v3450 = vmul.f32 %v3365, %v3258
        %v3451 = vmul.f32 %v3370, %v3259
        %v3452 = vmul.f32 %v3375, %v3260
        %v3453 = vmul.f32 %v3380, %v3261
        %v3454 = vmul.f32 %v3385, %v3262
        %v3455 = vmul.f32 %v3390, %v3263
        %v3456 = vmul.f32 %v3395, %v3264
        %v3457 = vmul.f32 %v3400, %v3265
        %v3458 = vmul.f32 %v3405, %v3266
        %v3459 = vmul.f32 %v3410, %v3267
        %v3460 = vmul.f32 %v3415, %v3268
        %v3461 = vmul.f32 %v3420, %v3269
        %v3462 = vmul.f32 %v3425, %v3270
        %v3463 = vmul.f32 %v3430, %v3271
        %v3464 = vpack.c.bf16 %v2954, %v2952
        %v3465 = vpack.c.bf16 %v2958, %v2956
        %v3466 = vpack.c.bf16 %v2962, %v2960
        %v3467 = vpack.c.bf16 %v2966, %v2964
        %v3468 = vpack.c.bf16 %v2970, %v2968
        %v3469 = vpack.c.bf16 %v2974, %v2972
        %v3470 = vpack.c.bf16 %v2978, %v2976
        %v3471 = vpack.c.bf16 %v2982, %v2980
        %v3472 = vpack.c.bf16 %v2986, %v2984
        %v3473 = vpack.c.bf16 %v2990, %v2988
        %v3474 = vpack.c.bf16 %v2994, %v2992
        %v3475 = vpack.c.bf16 %v2998, %v2996
        %v3476 = vpack.c.bf16 %v3002, %v3000
        %v3477 = vpack.c.bf16 %v3006, %v3004
        %v3478 = vpack.c.bf16 %v3010, %v3008
        %v3479 = vpack.c.bf16 %v3014, %v3012
        %v3488 = vunpack.c.l.b16 %v1921
        %v3489 = vunpack.c.l.b16 %v1922
        %v3490 = vunpack.c.l.b16 %v1923
        %v3491 = vunpack.c.l.b16 %v1924
        %v3492 = vunpack.c.l.b16 %v1925
        %v3493 = vunpack.c.l.b16 %v1926
        %v3494 = vunpack.c.l.b16 %v1927
        %v3495 = vunpack.c.l.b16 %v1928
        %v3496 = vpack.c.b16 %v3489, %v3488
        %v3497 = vpack.c.b16 %v3491, %v3490
        %v3498 = vpack.c.b16 %v3493, %v3492
        %v3499 = vpack.c.b16 %v3495, %v3494
        %v3505 = vsel %vm2534, %v3464, 0
        %v3508 = vsel %vm2534, %v3465, 0
        %v3511 = vsel %vm2534, %v3466, 0
        %v3514 = vsel %vm2534, %v3467, 0
        %3516 = vmatprep.subr.bf16.mxu0 0
        %3517 = vmatpush1.bf16.msra.mxu0 0
        %3518 = vmatprep.subr.bf16.mxu0 0
        %3519 = vmatpush1.bf16.msra.mxu0 0
        %3520 = vmatprep.subr.bf16.mxu0 0
        %3521 = vmatpush1.bf16.msra.mxu0 0
        %3522 = vmatprep.subr.bf16.mxu0 0
        %3523 = vmatpush1.bf16.msra.mxu0 0
        %3524 = vmatprep.subr.bf16.mxu0 0
        %3525 = vmatpush1.bf16.msra.mxu0 %v3499
        %3526 = vmatprep.subr.bf16.mxu0 0
        %3527 = vmatpush1.bf16.msra.mxu0 %v3498
        %3528 = vmatprep.subr.bf16.mxu0 0
        %3529 = vmatpush1.bf16.msra.mxu0 %v3497
        %3530 = vmatprep.subr.bf16.mxu0 0
        %3531 = vmatpush1.bf16.msra.mxu0 %v3496
        %3532 = vmatprep.subr.bf16.mxu0 0
        %3533 = vmatpush2.bf16.msra.mxu0 0
        %3534 = vmatprep.subr.bf16.mxu0 0
        %3535 = vmatpush2.bf16.msra.mxu0 0
        %3536 = vmatprep.subr.bf16.mxu0 0
        %3537 = vmatpush2.bf16.msra.mxu0 0
        %3538 = vmatprep.subr.bf16.mxu0 0
        %3539 = vmatpush2.bf16.msra.mxu0 0
        %3540 = vmatprep.subr.bf16.mxu0 0
        %3541 = vmatpush2.bf16.msra.mxu0 0
        %3542 = vmatprep.subr.bf16.mxu0 0
        %3543 = vmatpush2.bf16.msra.mxu0 0
        %3544 = vmatprep.subr.bf16.mxu0 0
        %3545 = vmatpush2.bf16.msra.mxu0 0
        %3546 = vmatprep.subr.bf16.mxu0 0
        %3547 = vmatpush2.bf16.msra.mxu0 0
        %3548 = vmatprep.mubr.bf16.mxu0 0
        %3549 = vmatmul.mubr.bf16.gmra.mxu0 %v3505
        %v3550 = vpop.f32.mrf.mxu0
        %v3551 = vadd.f32 0.0, %v3550
        %v3552 = vpop.f32.mrf.mxu0
        %v3553 = vpop.f32.mrf.mxu0
        %v3554 = vadd.f32 0.0, %v3553
        %v3555 = vpop.f32.mrf.mxu0
        %3556 = vmatprep.mubr.bf16.mxu0 0
        %3557 = vmatmul.mubr.bf16.gmra.mxu0 %v3508
        %v3558 = vpop.f32.mrf.mxu0
        %v3559 = vadd.f32 0.0, %v3558
        %v3560 = vpop.f32.mrf.mxu0
        %v3561 = vpop.f32.mrf.mxu0
        %v3562 = vadd.f32 0.0, %v3561
        %v3563 = vpop.f32.mrf.mxu0
        %3564 = vmatprep.mubr.bf16.mxu0 0
        %3565 = vmatmul.mubr.bf16.gmra.mxu0 %v3511
        %v3566 = vpop.f32.mrf.mxu0
        %v3567 = vadd.f32 0.0, %v3566
        %v3568 = vpop.f32.mrf.mxu0
        %v3569 = vpop.f32.mrf.mxu0
        %v3570 = vadd.f32 0.0, %v3569
        %v3571 = vpop.f32.mrf.mxu0
        %3572 = vmatprep.mubr.bf16.mxu0 0
        %3573 = vmatmul.mubr.bf16.gmra.mxu0 %v3514
        %v3574 = vpop.f32.mrf.mxu0
        %v3575 = vadd.f32 0.0, %v3574
        %v3576 = vpop.f32.mrf.mxu0
        %v3577 = vpop.f32.mrf.mxu0
        %v3578 = vadd.f32 0.0, %v3577
        %v3579 = vpop.f32.mrf.mxu0
        %3580 = vdwg.mxu0
        %v3589 = vunpack.c.l.b16 %v1929
        %v3590 = vunpack.c.l.b16 %v1930
        %v3591 = vunpack.c.l.b16 %v1931
        %v3592 = vunpack.c.l.b16 %v1932
        %v3593 = vunpack.c.l.b16 %v1933
        %v3594 = vunpack.c.l.b16 %v1934
        %v3595 = vunpack.c.l.b16 %v1935
        %v3596 = vunpack.c.l.b16 %v1936
        %v3597 = vpack.c.b16 %v3590, %v3589
        %v3598 = vpack.c.b16 %v3592, %v3591
        %v3599 = vpack.c.b16 %v3594, %v3593
        %v3600 = vpack.c.b16 %v3596, %v3595
        %v3606 = vsel %vm2534, %v3468, 0
        %v3609 = vsel %vm2534, %v3469, 0
        %v3612 = vsel %vm2534, %v3470, 0
        %v3615 = vsel %vm2534, %v3471, 0
        %3617 = vmatprep.subr.bf16.mxu0 0
        %3618 = vmatpush1.bf16.msra.mxu0 0
        %3619 = vmatprep.subr.bf16.mxu0 0
        %3620 = vmatpush1.bf16.msra.mxu0 0
        %3621 = vmatprep.subr.bf16.mxu0 0
        %3622 = vmatpush1.bf16.msra.mxu0 0
        %3623 = vmatprep.subr.bf16.mxu0 0
        %3624 = vmatpush1.bf16.msra.mxu0 0
        %3625 = vmatprep.subr.bf16.mxu0 0
        %3626 = vmatpush1.bf16.msra.mxu0 %v3600
        %3627 = vmatprep.subr.bf16.mxu0 0
        %3628 = vmatpush1.bf16.msra.mxu0 %v3599
        %3629 = vmatprep.subr.bf16.mxu0 0
        %3630 = vmatpush1.bf16.msra.mxu0 %v3598
        %3631 = vmatprep.subr.bf16.mxu0 0
        %3632 = vmatpush1.bf16.msra.mxu0 %v3597
        %3633 = vmatprep.subr.bf16.mxu0 0
        %3634 = vmatpush2.bf16.msra.mxu0 0
        %3635 = vmatprep.subr.bf16.mxu0 0
        %3636 = vmatpush2.bf16.msra.mxu0 0
        %3637 = vmatprep.subr.bf16.mxu0 0
        %3638 = vmatpush2.bf16.msra.mxu0 0
        %3639 = vmatprep.subr.bf16.mxu0 0
        %3640 = vmatpush2.bf16.msra.mxu0 0
        %3641 = vmatprep.subr.bf16.mxu0 0
        %3642 = vmatpush2.bf16.msra.mxu0 0
        %3643 = vmatprep.subr.bf16.mxu0 0
        %3644 = vmatpush2.bf16.msra.mxu0 0
        %3645 = vmatprep.subr.bf16.mxu0 0
        %3646 = vmatpush2.bf16.msra.mxu0 0
        %3647 = vmatprep.subr.bf16.mxu0 0
        %3648 = vmatpush2.bf16.msra.mxu0 0
        %3649 = vmatprep.mubr.bf16.mxu0 0
        %3650 = vmatmul.mubr.bf16.gmra.mxu0 %v3606
        %v3651 = vpop.f32.mrf.mxu0
        %v3652 = vadd.f32 0.0, %v3651
        %v3653 = vpop.f32.mrf.mxu0
        %v3654 = vpop.f32.mrf.mxu0
        %v3655 = vadd.f32 0.0, %v3654
        %v3656 = vpop.f32.mrf.mxu0
        %3657 = vmatprep.mubr.bf16.mxu0 0
        %3658 = vmatmul.mubr.bf16.gmra.mxu0 %v3609
        %v3659 = vpop.f32.mrf.mxu0
        %v3660 = vadd.f32 0.0, %v3659
        %v3661 = vpop.f32.mrf.mxu0
        %v3662 = vpop.f32.mrf.mxu0
        %v3663 = vadd.f32 0.0, %v3662
        %v3664 = vpop.f32.mrf.mxu0
        %3665 = vmatprep.mubr.bf16.mxu0 0
        %3666 = vmatmul.mubr.bf16.gmra.mxu0 %v3612
        %v3667 = vpop.f32.mrf.mxu0
        %v3668 = vadd.f32 0.0, %v3667
        %v3669 = vpop.f32.mrf.mxu0
        %v3670 = vpop.f32.mrf.mxu0
        %v3671 = vadd.f32 0.0, %v3670
        %v3672 = vpop.f32.mrf.mxu0
        %3673 = vmatprep.mubr.bf16.mxu0 0
        %3674 = vmatmul.mubr.bf16.gmra.mxu0 %v3615
        %v3675 = vpop.f32.mrf.mxu0
        %v3676 = vadd.f32 0.0, %v3675
        %v3677 = vpop.f32.mrf.mxu0
        %v3678 = vpop.f32.mrf.mxu0
        %v3679 = vadd.f32 0.0, %v3678
        %v3680 = vpop.f32.mrf.mxu0
        %3681 = vdwg.mxu0
        %v3690 = vunpack.c.l.b16 %v1937
        %v3691 = vunpack.c.l.b16 %v1938
        %v3692 = vunpack.c.l.b16 %v1939
        %v3693 = vunpack.c.l.b16 %v1940
        %v3694 = vunpack.c.l.b16 %v1941
        %v3695 = vunpack.c.l.b16 %v1942
        %v3696 = vunpack.c.l.b16 %v1943
        %v3697 = vunpack.c.l.b16 %v1944
        %v3698 = vpack.c.b16 %v3691, %v3690
        %v3699 = vpack.c.b16 %v3693, %v3692
        %v3700 = vpack.c.b16 %v3695, %v3694
        %v3701 = vpack.c.b16 %v3697, %v3696
        %v3707 = vsel %vm2534, %v3472, 0
        %v3710 = vsel %vm2534, %v3473, 0
        %v3713 = vsel %vm2534, %v3474, 0
        %v3716 = vsel %vm2534, %v3475, 0
        %3718 = vmatprep.subr.bf16.mxu0 0
        %3719 = vmatpush1.bf16.msra.mxu0 0
        %3720 = vmatprep.subr.bf16.mxu0 0
        %3721 = vmatpush1.bf16.msra.mxu0 0
        %3722 = vmatprep.subr.bf16.mxu0 0
        %3723 = vmatpush1.bf16.msra.mxu0 0
        %3724 = vmatprep.subr.bf16.mxu0 0
        %3725 = vmatpush1.bf16.msra.mxu0 0
        %3726 = vmatprep.subr.bf16.mxu0 0
        %3727 = vmatpush1.bf16.msra.mxu0 %v3701
        %3728 = vmatprep.subr.bf16.mxu0 0
        %3729 = vmatpush1.bf16.msra.mxu0 %v3700
        %3730 = vmatprep.subr.bf16.mxu0 0
        %3731 = vmatpush1.bf16.msra.mxu0 %v3699
        %3732 = vmatprep.subr.bf16.mxu0 0
        %3733 = vmatpush1.bf16.msra.mxu0 %v3698
        %3734 = vmatprep.subr.bf16.mxu0 0
        %3735 = vmatpush2.bf16.msra.mxu0 0
        %3736 = vmatprep.subr.bf16.mxu0 0
        %3737 = vmatpush2.bf16.msra.mxu0 0
        %3738 = vmatprep.subr.bf16.mxu0 0
        %3739 = vmatpush2.bf16.msra.mxu0 0
        %3740 = vmatprep.subr.bf16.mxu0 0
        %3741 = vmatpush2.bf16.msra.mxu0 0
        %3742 = vmatprep.subr.bf16.mxu0 0
        %3743 = vmatpush2.bf16.msra.mxu0 0
        %3744 = vmatprep.subr.bf16.mxu0 0
        %3745 = vmatpush2.bf16.msra.mxu0 0
        %3746 = vmatprep.subr.bf16.mxu0 0
        %3747 = vmatpush2.bf16.msra.mxu0 0
        %3748 = vmatprep.subr.bf16.mxu0 0
        %3749 = vmatpush2.bf16.msra.mxu0 0
        %3750 = vmatprep.mubr.bf16.mxu0 0
        %3751 = vmatmul.mubr.bf16.gmra.mxu0 %v3707
        %v3752 = vpop.f32.mrf.mxu0
        %v3753 = vadd.f32 0.0, %v3752
        %v3754 = vpop.f32.mrf.mxu0
        %v3755 = vpop.f32.mrf.mxu0
        %v3756 = vadd.f32 0.0, %v3755
        %v3757 = vpop.f32.mrf.mxu0
        %3758 = vmatprep.mubr.bf16.mxu0 0
        %3759 = vmatmul.mubr.bf16.gmra.mxu0 %v3710
        %v3760 = vpop.f32.mrf.mxu0
        %v3761 = vadd.f32 0.0, %v3760
        %v3762 = vpop.f32.mrf.mxu0
        %v3763 = vpop.f32.mrf.mxu0
        %v3764 = vadd.f32 0.0, %v3763
        %v3765 = vpop.f32.mrf.mxu0
        %3766 = vmatprep.mubr.bf16.mxu0 0
        %3767 = vmatmul.mubr.bf16.gmra.mxu0 %v3713
        %v3768 = vpop.f32.mrf.mxu0
        %v3769 = vadd.f32 0.0, %v3768
        %v3770 = vpop.f32.mrf.mxu0
        %v3771 = vpop.f32.mrf.mxu0
        %v3772 = vadd.f32 0.0, %v3771
        %v3773 = vpop.f32.mrf.mxu0
        %3774 = vmatprep.mubr.bf16.mxu0 0
        %3775 = vmatmul.mubr.bf16.gmra.mxu0 %v3716
        %v3776 = vpop.f32.mrf.mxu0
        %v3777 = vadd.f32 0.0, %v3776
        %v3778 = vpop.f32.mrf.mxu0
        %v3779 = vpop.f32.mrf.mxu0
        %v3780 = vadd.f32 0.0, %v3779
        %v3781 = vpop.f32.mrf.mxu0
        %3782 = vdwg.mxu0
        %v3791 = vunpack.c.l.b16 %v1945
        %v3792 = vunpack.c.l.b16 %v1946
        %v3793 = vunpack.c.l.b16 %v1947
        %v3794 = vunpack.c.l.b16 %v1948
        %v3795 = vunpack.c.l.b16 %v1949
        %v3796 = vunpack.c.l.b16 %v1950
        %v3797 = vunpack.c.l.b16 %v1951
        %v3798 = vunpack.c.l.b16 %v1952
        %v3799 = vpack.c.b16 %v3792, %v3791
        %v3800 = vpack.c.b16 %v3794, %v3793
        %v3801 = vpack.c.b16 %v3796, %v3795
        %v3802 = vpack.c.b16 %v3798, %v3797
        %v3808 = vsel %vm2534, %v3476, 0
        %v3811 = vsel %vm2534, %v3477, 0
        %v3814 = vsel %vm2534, %v3478, 0
        %v3817 = vsel %vm2534, %v3479, 0
        %3819 = vmatprep.subr.bf16.mxu0 0
        %3820 = vmatpush1.bf16.msra.mxu0 0
        %3821 = vmatprep.subr.bf16.mxu0 0
        %3822 = vmatpush1.bf16.msra.mxu0 0
        %3823 = vmatprep.subr.bf16.mxu0 0
        %3824 = vmatpush1.bf16.msra.mxu0 0
        %3825 = vmatprep.subr.bf16.mxu0 0
        %3826 = vmatpush1.bf16.msra.mxu0 0
        %3827 = vmatprep.subr.bf16.mxu0 0
        %3828 = vmatpush1.bf16.msra.mxu0 %v3802
        %3829 = vmatprep.subr.bf16.mxu0 0
        %3830 = vmatpush1.bf16.msra.mxu0 %v3801
        %3831 = vmatprep.subr.bf16.mxu0 0
        %3832 = vmatpush1.bf16.msra.mxu0 %v3800
        %3833 = vmatprep.subr.bf16.mxu0 0
        %3834 = vmatpush1.bf16.msra.mxu0 %v3799
        %3835 = vmatprep.subr.bf16.mxu0 0
        %3836 = vmatpush2.bf16.msra.mxu0 0
        %3837 = vmatprep.subr.bf16.mxu0 0
        %3838 = vmatpush2.bf16.msra.mxu0 0
        %3839 = vmatprep.subr.bf16.mxu0 0
        %3840 = vmatpush2.bf16.msra.mxu0 0
        %3841 = vmatprep.subr.bf16.mxu0 0
        %3842 = vmatpush2.bf16.msra.mxu0 0
        %3843 = vmatprep.subr.bf16.mxu0 0
        %3844 = vmatpush2.bf16.msra.mxu0 0
        %3845 = vmatprep.subr.bf16.mxu0 0
        %3846 = vmatpush2.bf16.msra.mxu0 0
        %3847 = vmatprep.subr.bf16.mxu0 0
        %3848 = vmatpush2.bf16.msra.mxu0 0
        %3849 = vmatprep.subr.bf16.mxu0 0
        %3850 = vmatpush2.bf16.msra.mxu0 0
        %3851 = vmatprep.mubr.bf16.mxu0 0
        %3852 = vmatmul.mubr.bf16.gmra.mxu0 %v3808
        %v3853 = vpop.f32.mrf.mxu0
        %v3854 = vadd.f32 0.0, %v3853
        %v3855 = vpop.f32.mrf.mxu0
        %v3856 = vpop.f32.mrf.mxu0
        %v3857 = vadd.f32 0.0, %v3856
        %v3858 = vpop.f32.mrf.mxu0
        %3859 = vmatprep.mubr.bf16.mxu0 0
        %3860 = vmatmul.mubr.bf16.gmra.mxu0 %v3811
        %v3861 = vpop.f32.mrf.mxu0
        %v3862 = vadd.f32 0.0, %v3861
        %v3863 = vpop.f32.mrf.mxu0
        %v3864 = vpop.f32.mrf.mxu0
        %v3865 = vadd.f32 0.0, %v3864
        %v3866 = vpop.f32.mrf.mxu0
        %3867 = vmatprep.mubr.bf16.mxu0 0
        %3868 = vmatmul.mubr.bf16.gmra.mxu0 %v3814
        %v3869 = vpop.f32.mrf.mxu0
        %v3870 = vadd.f32 0.0, %v3869
        %v3871 = vpop.f32.mrf.mxu0
        %v3872 = vpop.f32.mrf.mxu0
        %v3873 = vadd.f32 0.0, %v3872
        %v3874 = vpop.f32.mrf.mxu0
        %3875 = vmatprep.mubr.bf16.mxu0 0
        %3876 = vmatmul.mubr.bf16.gmra.mxu0 %v3817
        %v3877 = vpop.f32.mrf.mxu0
        %v3878 = vadd.f32 0.0, %v3877
        %v3879 = vpop.f32.mrf.mxu0
        %v3880 = vpop.f32.mrf.mxu0
        %v3881 = vadd.f32 0.0, %v3880
        %v3882 = vpop.f32.mrf.mxu0
        %3883 = vdwg.mxu0
        %v3884 = vadd.f32 %v3432, %v3551
        %v3885 = vadd.f32 %v3433, %v3554
        %v3886 = vadd.f32 %v3434, %v3559
        %v3887 = vadd.f32 %v3435, %v3562
        %v3888 = vadd.f32 %v3436, %v3567
        %v3889 = vadd.f32 %v3437, %v3570
        %v3890 = vadd.f32 %v3438, %v3575
        %v3891 = vadd.f32 %v3439, %v3578
        %v3892 = vadd.f32 %v3440, %v3652
        %v3893 = vadd.f32 %v3441, %v3655
        %v3894 = vadd.f32 %v3442, %v3660
        %v3895 = vadd.f32 %v3443, %v3663
        %v3896 = vadd.f32 %v3444, %v3668
        %v3897 = vadd.f32 %v3445, %v3671
        %v3898 = vadd.f32 %v3446, %v3676
        %v3899 = vadd.f32 %v3447, %v3679
        %v3900 = vadd.f32 %v3448, %v3753
        %v3901 = vadd.f32 %v3449, %v3756
        %v3902 = vadd.f32 %v3450, %v3761
        %v3903 = vadd.f32 %v3451, %v3764
        %v3904 = vadd.f32 %v3452, %v3769
        %v3905 = vadd.f32 %v3453, %v3772
        %v3906 = vadd.f32 %v3454, %v3777
        %v3907 = vadd.f32 %v3455, %v3780
        %v3908 = vadd.f32 %v3456, %v3854
        %v3909 = vadd.f32 %v3457, %v3857
        %v3910 = vadd.f32 %v3458, %v3862
        %v3911 = vadd.f32 %v3459, %v3865
        %v3912 = vadd.f32 %v3460, %v3870
        %v3913 = vadd.f32 %v3461, %v3873
        %v3914 = vadd.f32 %v3462, %v3878
        %v3915 = vadd.f32 %v3463, %v3881
        %3916 = vst.msk [vmem:[#allocation9] sm:$0xff] %vm2025, %v3884
        %3917 = vst.msk [vmem:[#allocation9 + $0x8] sm:$0xff] %vm2025, %v3885
        %3918 = vst.msk [vmem:[#allocation9 + $0x10] sm:$0xff] %vm2025, %v3886
        %3919 = vst.msk [vmem:[#allocation9 + $0x18] sm:$0xff] %vm2025, %v3887
        %3920 = vst.msk [vmem:[#allocation9 + $0x20] sm:$0xff] %vm2025, %v3888
        %3921 = vst.msk [vmem:[#allocation9 + $0x28] sm:$0xff] %vm2025, %v3889
        %3922 = vst.msk [vmem:[#allocation9 + $0x30] sm:$0xff] %vm2025, %v3890
        %3923 = vst.msk [vmem:[#allocation9 + $0x38] sm:$0xff] %vm2025, %v3891
        %3924 = vst.msk [vmem:[#allocation9 + $0x40] sm:$0xff] %vm2025, %v3892
        %3925 = vst.msk [vmem:[#allocation9 + $0x48] sm:$0xff] %vm2025, %v3893
        %3926 = vst.msk [vmem:[#allocation9 + $0x50] sm:$0xff] %vm2025, %v3894
        %3927 = vst.msk [vmem:[#allocation9 + $0x58] sm:$0xff] %vm2025, %v3895
        %3928 = vst.msk [vmem:[#allocation9 + $0x60] sm:$0xff] %vm2025, %v3896
        %3929 = vst.msk [vmem:[#allocation9 + $0x68] sm:$0xff] %vm2025, %v3897
        %3930 = vst.msk [vmem:[#allocation9 + $0x70] sm:$0xff] %vm2025, %v3898
        %3931 = vst.msk [vmem:[#allocation9 + $0x78] sm:$0xff] %vm2025, %v3899
        %3932 = vst.msk [vmem:[#allocation9 + $0x80] sm:$0xff] %vm2025, %v3900
        %3933 = vst.msk [vmem:[#allocation9 + $0x88] sm:$0xff] %vm2025, %v3901
        %3934 = vst.msk [vmem:[#allocation9 + $0x90] sm:$0xff] %vm2025, %v3902
        %3935 = vst.msk [vmem:[#allocation9 + $0x98] sm:$0xff] %vm2025, %v3903
        %3936 = vst.msk [vmem:[#allocation9 + $0xa0] sm:$0xff] %vm2025, %v3904
        %3937 = vst.msk [vmem:[#allocation9 + $0xa8] sm:$0xff] %vm2025, %v3905
        %3938 = vst.msk [vmem:[#allocation9 + $0xb0] sm:$0xff] %vm2025, %v3906
        %3939 = vst.msk [vmem:[#allocation9 + $0xb8] sm:$0xff] %vm2025, %v3907
        %3940 = vst.msk [vmem:[#allocation9 + $0xc0] sm:$0xff] %vm2025, %v3908
        %3941 = vst.msk [vmem:[#allocation9 + $0xc8] sm:$0xff] %vm2025, %v3909
        %3942 = vst.msk [vmem:[#allocation9 + $0xd0] sm:$0xff] %vm2025, %v3910
        %3943 = vst.msk [vmem:[#allocation9 + $0xd8] sm:$0xff] %vm2025, %v3911
        %3944 = vst.msk [vmem:[#allocation9 + $0xe0] sm:$0xff] %vm2025, %v3912
        %3945 = vst.msk [vmem:[#allocation9 + $0xe8] sm:$0xff] %vm2025, %v3913
        %3946 = vst.msk [vmem:[#allocation9 + $0xf0] sm:$0xff] %vm2025, %v3914
        %3947 = vst.msk [vmem:[#allocation9 + $0xf8] sm:$0xff] %vm2025, %v3915
        %3948 = vst.msk [vmem:[#allocation7] sm:$0xff] %vm3207, %v2631
        %3949 = vst.msk [vmem:[#allocation7 + $0x8] sm:$0xff] %vm3207, %v2632
        %3950 = vst.msk [vmem:[#allocation7 + $0x10] sm:$0xff] %vm3207, %v2633
        %3951 = vst.msk [vmem:[#allocation7 + $0x18] sm:$0xff] %vm3207, %v2634
        %3952 = vst.msk [vmem:[#allocation7 + $0x20] sm:$0xff] %vm3207, %v2635
        %3953 = vst.msk [vmem:[#allocation7 + $0x28] sm:$0xff] %vm3207, %v2636
        %3954 = vst.msk [vmem:[#allocation7 + $0x30] sm:$0xff] %vm3207, %v2637
        %3955 = vst.msk [vmem:[#allocation7 + $0x38] sm:$0xff] %vm3207, %v2638
        %3956 = vst.msk [vmem:[#allocation7 + $0x40] sm:$0xff] %vm3207, %v2639
        %3957 = vst.msk [vmem:[#allocation7 + $0x48] sm:$0xff] %vm3207, %v2640
        %3958 = vst.msk [vmem:[#allocation7 + $0x50] sm:$0xff] %vm3207, %v2641
        %3959 = vst.msk [vmem:[#allocation7 + $0x58] sm:$0xff] %vm3207, %v2642
        %3960 = vst.msk [vmem:[#allocation7 + $0x60] sm:$0xff] %vm3207, %v2643
        %3961 = vst.msk [vmem:[#allocation7 + $0x68] sm:$0xff] %vm3207, %v2644
        %3962 = vst.msk [vmem:[#allocation7 + $0x70] sm:$0xff] %vm3207, %v2645
        %3963 = vst.msk [vmem:[#allocation7 + $0x78] sm:$0xff] %vm3207, %v2646
        %3964 = vst.msk [vmem:[#allocation7 + $0x80] sm:$0xff] %vm3207, %v2647
        %3965 = vst.msk [vmem:[#allocation7 + $0x88] sm:$0xff] %vm3207, %v2648
        %3966 = vst.msk [vmem:[#allocation7 + $0x90] sm:$0xff] %vm3207, %v2649
        %3967 = vst.msk [vmem:[#allocation7 + $0x98] sm:$0xff] %vm3207, %v2650
        %3968 = vst.msk [vmem:[#allocation7 + $0xa0] sm:$0xff] %vm3207, %v2651
        %3969 = vst.msk [vmem:[#allocation7 + $0xa8] sm:$0xff] %vm3207, %v2652
        %3970 = vst.msk [vmem:[#allocation7 + $0xb0] sm:$0xff] %vm3207, %v2653
        %3971 = vst.msk [vmem:[#allocation7 + $0xb8] sm:$0xff] %vm3207, %v2654
        %3972 = vst.msk [vmem:[#allocation7 + $0xc0] sm:$0xff] %vm3207, %v2655
        %3973 = vst.msk [vmem:[#allocation7 + $0xc8] sm:$0xff] %vm3207, %v2656
        %3974 = vst.msk [vmem:[#allocation7 + $0xd0] sm:$0xff] %vm3207, %v2657
        %3975 = vst.msk [vmem:[#allocation7 + $0xd8] sm:$0xff] %vm3207, %v2658
        %3976 = vst.msk [vmem:[#allocation7 + $0xe0] sm:$0xff] %vm3207, %v2659
        %3977 = vst.msk [vmem:[#allocation7 + $0xe8] sm:$0xff] %vm3207, %v2660
        %3978 = vst.msk [vmem:[#allocation7 + $0xf0] sm:$0xff] %vm3207, %v2661
        %3979 = vst.msk [vmem:[#allocation7 + $0xf8] sm:$0xff] %vm3207, %v2662
        %p3980 = scmp.eq.s32.totalorder %s40, 1
        // Predicated region
        $region97: #{tpu_custom_call.1} parent=55 // pred_check
          %p3981 = pneg %p3980
        $region98: #{tpu_custom_call.1} parent=55 // pred_check_branch
          %3983 = sbr.rel (%p3981) target = $region100
        $region99: #{tpu_custom_call.1} parent=55 // pred_region
          %v3984 = vld [vmem:[#allocation9] sm:$0xff]
          %v3985 = vld [vmem:[#allocation9 + $0x8] sm:$0xff]
          %v3986 = vld [vmem:[#allocation9 + $0x10] sm:$0xff]
          %v3987 = vld [vmem:[#allocation9 + $0x18] sm:$0xff]
          %v3988 = vld [vmem:[#allocation9 + $0x20] sm:$0xff]
          %v3989 = vld [vmem:[#allocation9 + $0x28] sm:$0xff]
          %v3990 = vld [vmem:[#allocation9 + $0x30] sm:$0xff]
          %v3991 = vld [vmem:[#allocation9 + $0x38] sm:$0xff]
          %v3992 = vld [vmem:[#allocation9 + $0x40] sm:$0xff]
          %v3993 = vld [vmem:[#allocation9 + $0x48] sm:$0xff]
          %v3994 = vld [vmem:[#allocation9 + $0x50] sm:$0xff]
          %v3995 = vld [vmem:[#allocation9 + $0x58] sm:$0xff]
          %v3996 = vld [vmem:[#allocation9 + $0x60] sm:$0xff]
          %v3997 = vld [vmem:[#allocation9 + $0x68] sm:$0xff]
          %v3998 = vld [vmem:[#allocation9 + $0x70] sm:$0xff]
          %v3999 = vld [vmem:[#allocation9 + $0x78] sm:$0xff]
          %v4000 = vld [vmem:[#allocation9 + $0x80] sm:$0xff]
          %v4001 = vld [vmem:[#allocation9 + $0x88] sm:$0xff]
          %v4002 = vld [vmem:[#allocation9 + $0x90] sm:$0xff]
          %v4003 = vld [vmem:[#allocation9 + $0x98] sm:$0xff]
          %v4004 = vld [vmem:[#allocation9 + $0xa0] sm:$0xff]
          %v4005 = vld [vmem:[#allocation9 + $0xa8] sm:$0xff]
          %v4006 = vld [vmem:[#allocation9 + $0xb0] sm:$0xff]
          %v4007 = vld [vmem:[#allocation9 + $0xb8] sm:$0xff]
          %v4008 = vld [vmem:[#allocation9 + $0xc0] sm:$0xff]
          %v4009 = vld [vmem:[#allocation9 + $0xc8] sm:$0xff]
          %v4010 = vld [vmem:[#allocation9 + $0xd0] sm:$0xff]
          %v4011 = vld [vmem:[#allocation9 + $0xd8] sm:$0xff]
          %v4012 = vld [vmem:[#allocation9 + $0xe0] sm:$0xff]
          %v4013 = vld [vmem:[#allocation9 + $0xe8] sm:$0xff]
          %v4014 = vld [vmem:[#allocation9 + $0xf0] sm:$0xff]
          %v4015 = vld [vmem:[#allocation9 + $0xf8] sm:$0xff]
          %v4016 = vld [vmem:[#allocation8] sm:$0xff]
          %v4017 = vld [vmem:[#allocation8 + $0x8] sm:$0xff]
          %v4018 = vld [vmem:[#allocation8 + $0x10] sm:$0xff]
          %v4019 = vld [vmem:[#allocation8 + $0x18] sm:$0xff]
          %v4020 = vld [vmem:[#allocation8 + $0x20] sm:$0xff]
          %v4021 = vld [vmem:[#allocation8 + $0x28] sm:$0xff]
          %v4022 = vld [vmem:[#allocation8 + $0x30] sm:$0xff]
          %v4023 = vld [vmem:[#allocation8 + $0x38] sm:$0xff]
          %v4024 = vld [vmem:[#allocation8 + $0x40] sm:$0xff]
          %v4025 = vld [vmem:[#allocation8 + $0x48] sm:$0xff]
          %v4026 = vld [vmem:[#allocation8 + $0x50] sm:$0xff]
          %v4027 = vld [vmem:[#allocation8 + $0x58] sm:$0xff]
          %v4028 = vld [vmem:[#allocation8 + $0x60] sm:$0xff]
          %v4029 = vld [vmem:[#allocation8 + $0x68] sm:$0xff]
          %v4030 = vld [vmem:[#allocation8 + $0x70] sm:$0xff]
          %v4031 = vld [vmem:[#allocation8 + $0x78] sm:$0xff]
          %v4032 = vld [vmem:[#allocation8 + $0x80] sm:$0xff]
          %v4033 = vld [vmem:[#allocation8 + $0x88] sm:$0xff]
          %v4034 = vld [vmem:[#allocation8 + $0x90] sm:$0xff]
          %v4035 = vld [vmem:[#allocation8 + $0x98] sm:$0xff]
          %v4036 = vld [vmem:[#allocation8 + $0xa0] sm:$0xff]
          %v4037 = vld [vmem:[#allocation8 + $0xa8] sm:$0xff]
          %v4038 = vld [vmem:[#allocation8 + $0xb0] sm:$0xff]
          %v4039 = vld [vmem:[#allocation8 + $0xb8] sm:$0xff]
          %v4040 = vld [vmem:[#allocation8 + $0xc0] sm:$0xff]
          %v4041 = vld [vmem:[#allocation8 + $0xc8] sm:$0xff]
          %v4042 = vld [vmem:[#allocation8 + $0xd0] sm:$0xff]
          %v4043 = vld [vmem:[#allocation8 + $0xd8] sm:$0xff]
          %v4044 = vld [vmem:[#allocation8 + $0xe0] sm:$0xff]
          %v4045 = vld [vmem:[#allocation8 + $0xe8] sm:$0xff]
          %v4046 = vld [vmem:[#allocation8 + $0xf0] sm:$0xff]
          %v4047 = vld [vmem:[#allocation8 + $0xf8] sm:$0xff]
          %v4048 = vrcp.pop %v4016
          %v4049 = vrcp.pop %v4017
          %v4050 = vrcp.pop %v4018
          %v4051 = vrcp.pop %v4019
          %v4052 = vrcp.pop %v4020
          %v4053 = vrcp.pop %v4021
          %v4054 = vrcp.pop %v4022
          %v4055 = vrcp.pop %v4023
          %v4056 = vrcp.pop %v4024
          %v4057 = vrcp.pop %v4025
          %v4058 = vrcp.pop %v4026
          %v4059 = vrcp.pop %v4027
          %v4060 = vrcp.pop %v4028
          %v4061 = vrcp.pop %v4029
          %v4062 = vrcp.pop %v4030
          %v4063 = vrcp.pop %v4031
          %v4064 = vrcp.pop %v4032
          %v4065 = vrcp.pop %v4033
          %v4066 = vrcp.pop %v4034
          %v4067 = vrcp.pop %v4035
          %v4068 = vrcp.pop %v4036
          %v4069 = vrcp.pop %v4037
          %v4070 = vrcp.pop %v4038
          %v4071 = vrcp.pop %v4039
          %v4072 = vrcp.pop %v4040
          %v4073 = vrcp.pop %v4041
          %v4074 = vrcp.pop %v4042
          %v4075 = vrcp.pop %v4043
          %v4076 = vrcp.pop %v4044
          %v4077 = vrcp.pop %v4045
          %v4078 = vrcp.pop %v4046
          %v4079 = vrcp.pop %v4047
          %4081 = vset.pattern.permute.xlu0 0
          %4082 = vperm.xlu0 %4081, %v4048
          %v4083 = vpop.permute.xlu0 %4082
          %4086 = vset.pattern.permute.xlu0 0
          %4087 = vperm.xlu0 %4086, %v4049
          %v4088 = vpop.permute.xlu0 %4087
          %4091 = vset.pattern.permute.xlu0 0
          %4092 = vperm.xlu0 %4091, %v4050
          %v4093 = vpop.permute.xlu0 %4092
          %4096 = vset.pattern.permute.xlu0 0
          %4097 = vperm.xlu0 %4096, %v4051
          %v4098 = vpop.permute.xlu0 %4097
          %4101 = vset.pattern.permute.xlu0 0
          %4102 = vperm.xlu0 %4101, %v4052
          %v4103 = vpop.permute.xlu0 %4102
          %4106 = vset.pattern.permute.xlu0 0
          %4107 = vperm.xlu0 %4106, %v4053
          %v4108 = vpop.permute.xlu0 %4107
          %4111 = vset.pattern.permute.xlu0 0
          %4112 = vperm.xlu0 %4111, %v4054
          %v4113 = vpop.permute.xlu0 %4112
          %4116 = vset.pattern.permute.xlu0 0
          %4117 = vperm.xlu0 %4116, %v4055
          %v4118 = vpop.permute.xlu0 %4117
          %4121 = vset.pattern.permute.xlu0 0
          %4122 = vperm.xlu0 %4121, %v4056
          %v4123 = vpop.permute.xlu0 %4122
          %4126 = vset.pattern.permute.xlu0 0
          %4127 = vperm.xlu0 %4126, %v4057
          %v4128 = vpop.permute.xlu0 %4127
          %4131 = vset.pattern.permute.xlu0 0
          %4132 = vperm.xlu0 %4131, %v4058
          %v4133 = vpop.permute.xlu0 %4132
          %4136 = vset.pattern.permute.xlu0 0
          %4137 = vperm.xlu0 %4136, %v4059
          %v4138 = vpop.permute.xlu0 %4137
          %4141 = vset.pattern.permute.xlu0 0
          %4142 = vperm.xlu0 %4141, %v4060
          %v4143 = vpop.permute.xlu0 %4142
          %4146 = vset.pattern.permute.xlu0 0
          %4147 = vperm.xlu0 %4146, %v4061
          %v4148 = vpop.permute.xlu0 %4147
          %4151 = vset.pattern.permute.xlu0 0
          %4152 = vperm.xlu0 %4151, %v4062
          %v4153 = vpop.permute.xlu0 %4152
          %4156 = vset.pattern.permute.xlu0 0
          %4157 = vperm.xlu0 %4156, %v4063
          %v4158 = vpop.permute.xlu0 %4157
          %4161 = vset.pattern.permute.xlu0 0
          %4162 = vperm.xlu0 %4161, %v4064
          %v4163 = vpop.permute.xlu0 %4162
          %4166 = vset.pattern.permute.xlu0 0
          %4167 = vperm.xlu0 %4166, %v4065
          %v4168 = vpop.permute.xlu0 %4167
          %4171 = vset.pattern.permute.xlu0 0
          %4172 = vperm.xlu0 %4171, %v4066
          %v4173 = vpop.permute.xlu0 %4172
          %4176 = vset.pattern.permute.xlu0 0
          %4177 = vperm.xlu0 %4176, %v4067
          %v4178 = vpop.permute.xlu0 %4177
          %4181 = vset.pattern.permute.xlu0 0
          %4182 = vperm.xlu0 %4181, %v4068
          %v4183 = vpop.permute.xlu0 %4182
          %4186 = vset.pattern.permute.xlu0 0
          %4187 = vperm.xlu0 %4186, %v4069
          %v4188 = vpop.permute.xlu0 %4187
          %4191 = vset.pattern.permute.xlu0 0
          %4192 = vperm.xlu0 %4191, %v4070
          %v4193 = vpop.permute.xlu0 %4192
          %4196 = vset.pattern.permute.xlu0 0
          %4197 = vperm.xlu0 %4196, %v4071
          %v4198 = vpop.permute.xlu0 %4197
          %4201 = vset.pattern.permute.xlu0 0
          %4202 = vperm.xlu0 %4201, %v4072
          %v4203 = vpop.permute.xlu0 %4202
          %4206 = vset.pattern.permute.xlu0 0
          %4207 = vperm.xlu0 %4206, %v4073
          %v4208 = vpop.permute.xlu0 %4207
          %4211 = vset.pattern.permute.xlu0 0
          %4212 = vperm.xlu0 %4211, %v4074
          %v4213 = vpop.permute.xlu0 %4212
          %4216 = vset.pattern.permute.xlu0 0
          %4217 = vperm.xlu0 %4216, %v4075
          %v4218 = vpop.permute.xlu0 %4217
          %4221 = vset.pattern.permute.xlu0 0
          %4222 = vperm.xlu0 %4221, %v4076
          %v4223 = vpop.permute.xlu0 %4222
          %4226 = vset.pattern.permute.xlu0 0
          %4227 = vperm.xlu0 %4226, %v4077
          %v4228 = vpop.permute.xlu0 %4227
          %4231 = vset.pattern.permute.xlu0 0
          %4232 = vperm.xlu0 %4231, %v4078
          %v4233 = vpop.permute.xlu0 %4232
          %4236 = vset.pattern.permute.xlu0 0
          %4237 = vperm.xlu0 %4236, %v4079
          %v4238 = vpop.permute.xlu0 %4237
          %v4240 = vmul.f32 %v3984, %v4083
          %v4241 = vmul.f32 %v3985, %v4088
          %v4242 = vmul.f32 %v3986, %v4093
          %v4243 = vmul.f32 %v3987, %v4098
          %v4244 = vmul.f32 %v3988, %v4103
          %v4245 = vmul.f32 %v3989, %v4108
          %v4246 = vmul.f32 %v3990, %v4113
          %v4247 = vmul.f32 %v3991, %v4118
          %v4248 = vmul.f32 %v3992, %v4123
          %v4249 = vmul.f32 %v3993, %v4128
          %v4250 = vmul.f32 %v3994, %v4133
          %v4251 = vmul.f32 %v3995, %v4138
          %v4252 = vmul.f32 %v3996, %v4143
          %v4253 = vmul.f32 %v3997, %v4148
          %v4254 = vmul.f32 %v3998, %v4153
          %v4255 = vmul.f32 %v3999, %v4158
          %v4256 = vmul.f32 %v4000, %v4163
          %v4257 = vmul.f32 %v4001, %v4168
          %v4258 = vmul.f32 %v4002, %v4173
          %v4259 = vmul.f32 %v4003, %v4178
          %v4260 = vmul.f32 %v4004, %v4183
          %v4261 = vmul.f32 %v4005, %v4188
          %v4262 = vmul.f32 %v4006, %v4193
          %v4263 = vmul.f32 %v4007, %v4198
          %v4264 = vmul.f32 %v4008, %v4203
          %v4265 = vmul.f32 %v4009, %v4208
          %v4266 = vmul.f32 %v4010, %v4213
          %v4267 = vmul.f32 %v4011, %v4218
          %v4268 = vmul.f32 %v4012, %v4223
          %v4269 = vmul.f32 %v4013, %v4228
          %v4270 = vmul.f32 %v4014, %v4233
          %v4271 = vmul.f32 %v4015, %v4238
          %4280 = vrot.lane.b32.xlu0 %v4248, 32
          %v4281 = vpop.permute.xlu0 %4280
          %4282 = vrot.lane.b32.xlu0 %v4249, 32
          %v4283 = vpop.permute.xlu0 %4282
          %4284 = vrot.lane.b32.xlu0 %v4250, 32
          %v4285 = vpop.permute.xlu0 %4284
          %4286 = vrot.lane.b32.xlu0 %v4251, 32
          %v4287 = vpop.permute.xlu0 %4286
          %4288 = vrot.lane.b32.xlu0 %v4252, 32
          %v4289 = vpop.permute.xlu0 %4288
          %4290 = vrot.lane.b32.xlu0 %v4253, 32
          %v4291 = vpop.permute.xlu0 %4290
          %4292 = vrot.lane.b32.xlu0 %v4254, 32
          %v4293 = vpop.permute.xlu0 %4292
          %4294 = vrot.lane.b32.xlu0 %v4255, 32
          %v4295 = vpop.permute.xlu0 %4294
          %4312 = vrot.lane.b32.xlu0 %v4256, 64
          %v4313 = vpop.permute.xlu0 %4312
          %4314 = vrot.lane.b32.xlu0 %v4257, 64
          %v4315 = vpop.permute.xlu0 %4314
          %4316 = vrot.lane.b32.xlu0 %v4258, 64
          %v4317 = vpop.permute.xlu0 %4316
          %4318 = vrot.lane.b32.xlu0 %v4259, 64
          %v4319 = vpop.permute.xlu0 %4318
          %4320 = vrot.lane.b32.xlu0 %v4260, 64
          %v4321 = vpop.permute.xlu0 %4320
          %4322 = vrot.lane.b32.xlu0 %v4261, 64
          %v4323 = vpop.permute.xlu0 %4322
          %4324 = vrot.lane.b32.xlu0 %v4262, 64
          %v4325 = vpop.permute.xlu0 %4324
          %4326 = vrot.lane.b32.xlu0 %v4263, 64
          %v4327 = vpop.permute.xlu0 %4326
          %4344 = vrot.lane.b32.xlu0 %v4264, 96
          %v4345 = vpop.permute.xlu0 %4344
          %4346 = vrot.lane.b32.xlu0 %v4265, 96
          %v4347 = vpop.permute.xlu0 %4346
          %4348 = vrot.lane.b32.xlu0 %v4266, 96
          %v4349 = vpop.permute.xlu0 %4348
          %4350 = vrot.lane.b32.xlu0 %v4267, 96
          %v4351 = vpop.permute.xlu0 %4350
          %4352 = vrot.lane.b32.xlu0 %v4268, 96
          %v4353 = vpop.permute.xlu0 %4352
          %4354 = vrot.lane.b32.xlu0 %v4269, 96
          %v4355 = vpop.permute.xlu0 %4354
          %4356 = vrot.lane.b32.xlu0 %v4270, 96
          %v4357 = vpop.permute.xlu0 %4356
          %4358 = vrot.lane.b32.xlu0 %v4271, 96
          %v4359 = vpop.permute.xlu0 %4358
          %v4368 = vsel %vm2025, %v4240, %v4281
          %v4369 = vsel %vm2025, %v4241, %v4283
          %v4370 = vsel %vm2025, %v4242, %v4285
          %v4371 = vsel %vm2025, %v4243, %v4287
          %v4372 = vsel %vm2025, %v4244, %v4289
          %v4373 = vsel %vm2025, %v4245, %v4291
          %v4374 = vsel %vm2025, %v4246, %v4293
          %v4375 = vsel %vm2025, %v4247, %v4295
          %v4376 = vsel %vm2534, %v4368, %v4313
          %v4377 = vsel %vm2534, %v4369, %v4315
          %v4378 = vsel %vm2534, %v4370, %v4317
          %v4379 = vsel %vm2534, %v4371, %v4319
          %v4380 = vsel %vm2534, %v4372, %v4321
          %v4381 = vsel %vm2534, %v4373, %v4323
          %v4382 = vsel %vm2534, %v4374, %v4325
          %v4383 = vsel %vm2534, %v4375, %v4327
          %vm4384 = vcmask 785408
          %v4385 = vsel %vm4384, %v4376, %v4345
          %v4386 = vsel %vm4384, %v4377, %v4347
          %v4387 = vsel %vm4384, %v4378, %v4349
          %v4388 = vsel %vm4384, %v4379, %v4351
          %v4389 = vsel %vm4384, %v4380, %v4353
          %v4390 = vsel %vm4384, %v4381, %v4355
          %v4391 = vsel %vm4384, %v4382, %v4357
          %v4392 = vsel %vm4384, %v4383, %v4359
          %v4393 = vld [vmem:[#allocation10] sm:$0xff]
          %v4394 = vld [vmem:[#allocation10 + $0x8] sm:$0xff]
          %v4395 = vld [vmem:[#allocation10 + $0x10] sm:$0xff]
          %v4396 = vld [vmem:[#allocation10 + $0x18] sm:$0xff]
          %v4397 = vld [vmem:[#allocation10 + $0x20] sm:$0xff]
          %v4398 = vld [vmem:[#allocation10 + $0x28] sm:$0xff]
          %v4399 = vld [vmem:[#allocation10 + $0x30] sm:$0xff]
          %v4400 = vld [vmem:[#allocation10 + $0x38] sm:$0xff]
          %v4401 = vpack.c.bf16 %v4386, %v4385
          %v4402 = vpack.c.bf16 %v4388, %v4387
          %v4403 = vpack.c.bf16 %v4390, %v4389
          %v4404 = vpack.c.bf16 %v4392, %v4391
          %s4405 = smul.u32 %s39, 16
          %s4406 = smul.addr %s4405, 4
          %s4407 = scalar_lea.vmem [#allocation20], %s4406
          %v4408 = vld [vmem:[%s4407] sm:$0xf]
          %v4409 = vld [vmem:[%s4407 + $0x4] sm:$0xf]
          %v4410 = vld [vmem:[%s4407 + $0x8] sm:$0xf]
          %v4411 = vld [vmem:[%s4407 + $0xc] sm:$0xf]
          %v4412 = vld [vmem:[%s4407 + $0x10] sm:$0xf]
          %v4413 = vld [vmem:[%s4407 + $0x14] sm:$0xf]
          %v4414 = vld [vmem:[%s4407 + $0x18] sm:$0xf]
          %v4415 = vld [vmem:[%s4407 + $0x1c] sm:$0xf]
          %v4416 = vld [vmem:[%s4407 + $0x20] sm:$0xf]
          %v4417 = vld [vmem:[%s4407 + $0x24] sm:$0xf]
          %v4418 = vld [vmem:[%s4407 + $0x28] sm:$0xf]
          %v4419 = vld [vmem:[%s4407 + $0x2c] sm:$0xf]
          %v4420 = vld [vmem:[%s4407 + $0x30] sm:$0xf]
          %v4421 = vld [vmem:[%s4407 + $0x34] sm:$0xf]
          %v4422 = vld [vmem:[%s4407 + $0x38] sm:$0xf]
          %v4423 = vld [vmem:[%s4407 + $0x3c] sm:$0xf]
          %v4440 = vunpack.c.l.b16 %v4408
          %v4441 = vunpack.c.l.b16 %v4409
          %v4442 = vunpack.c.l.b16 %v4410
          %v4443 = vunpack.c.l.b16 %v4411
          %v4444 = vunpack.c.l.b16 %v4412
          %v4445 = vunpack.c.l.b16 %v4413
          %v4446 = vunpack.c.l.b16 %v4414
          %v4447 = vunpack.c.l.b16 %v4415
          %v4448 = vunpack.c.l.b16 %v4416
          %v4449 = vunpack.c.l.b16 %v4417
          %v4450 = vunpack.c.l.b16 %v4418
          %v4451 = vunpack.c.l.b16 %v4419
          %v4452 = vunpack.c.l.b16 %v4420
          %v4453 = vunpack.c.l.b16 %v4421
          %v4454 = vunpack.c.l.b16 %v4422
          %v4455 = vunpack.c.l.b16 %v4423
          %v4456 = vpack.c.b16 %v4441, %v4440
          %v4457 = vpack.c.b16 %v4443, %v4442
          %v4458 = vpack.c.b16 %v4445, %v4444
          %v4459 = vpack.c.b16 %v4447, %v4446
          %v4460 = vpack.c.b16 %v4449, %v4448
          %v4461 = vpack.c.b16 %v4451, %v4450
          %v4462 = vpack.c.b16 %v4453, %v4452
          %v4463 = vpack.c.b16 %v4455, %v4454
          %4472 = vmatprep.subr.bf16.mxu0 0
          %4473 = vmatpush1.bf16.msra.mxu0 %v4463
          %4474 = vmatprep.subr.bf16.mxu0 0
          %4475 = vmatpush1.bf16.msra.mxu0 %v4462
          %4476 = vmatprep.subr.bf16.mxu0 0
          %4477 = vmatpush1.bf16.msra.mxu0 %v4461
          %4478 = vmatprep.subr.bf16.mxu0 0
          %4479 = vmatpush1.bf16.msra.mxu0 %v4460
          %4480 = vmatprep.subr.bf16.mxu0 0
          %4481 = vmatpush1.bf16.msra.mxu0 %v4459
          %4482 = vmatprep.subr.bf16.mxu0 0
          %4483 = vmatpush1.bf16.msra.mxu0 %v4458
          %4484 = vmatprep.subr.bf16.mxu0 0
          %4485 = vmatpush1.bf16.msra.mxu0 %v4457
          %4486 = vmatprep.subr.bf16.mxu0 0
          %4487 = vmatpush1.bf16.msra.mxu0 %v4456
          %4488 = vmatprep.subr.bf16.mxu0 0
          %4489 = vmatpush2.bf16.msra.mxu0 0
          %4490 = vmatprep.subr.bf16.mxu0 0
          %4491 = vmatpush2.bf16.msra.mxu0 0
          %4492 = vmatprep.subr.bf16.mxu0 0
          %4493 = vmatpush2.bf16.msra.mxu0 0
          %4494 = vmatprep.subr.bf16.mxu0 0
          %4495 = vmatpush2.bf16.msra.mxu0 0
          %4496 = vmatprep.subr.bf16.mxu0 0
          %4497 = vmatpush2.bf16.msra.mxu0 0
          %4498 = vmatprep.subr.bf16.mxu0 0
          %4499 = vmatpush2.bf16.msra.mxu0 0
          %4500 = vmatprep.subr.bf16.mxu0 0
          %4501 = vmatpush2.bf16.msra.mxu0 0
          %4502 = vmatprep.subr.bf16.mxu0 0
          %4503 = vmatpush2.bf16.msra.mxu0 0
          %4504 = vmatprep.mubr.bf16.mxu0 0
          %4505 = vmatmul.mubr.bf16.gmra.mxu0 %v4401
          %v4506 = vpop.f32.mrf.mxu0
          %v4507 = vadd.f32 0.0, %v4506
          %v4508 = vpop.f32.mrf.mxu0
          %v4509 = vpop.f32.mrf.mxu0
          %v4510 = vadd.f32 0.0, %v4509
          %v4511 = vpop.f32.mrf.mxu0
          %4512 = vmatprep.mubr.bf16.mxu0 0
          %4513 = vmatmul.mubr.bf16.gmra.mxu0 %v4402
          %v4514 = vpop.f32.mrf.mxu0
          %v4515 = vadd.f32 0.0, %v4514
          %v4516 = vpop.f32.mrf.mxu0
          %v4517 = vpop.f32.mrf.mxu0
          %v4518 = vadd.f32 0.0, %v4517
          %v4519 = vpop.f32.mrf.mxu0
          %4520 = vmatprep.mubr.bf16.mxu0 0
          %4521 = vmatmul.mubr.bf16.gmra.mxu0 %v4403
          %v4522 = vpop.f32.mrf.mxu0
          %v4523 = vadd.f32 0.0, %v4522
          %v4524 = vpop.f32.mrf.mxu0
          %v4525 = vpop.f32.mrf.mxu0
          %v4526 = vadd.f32 0.0, %v4525
          %v4527 = vpop.f32.mrf.mxu0
          %4528 = vmatprep.mubr.bf16.mxu0 0
          %4529 = vmatmul.mubr.bf16.gmra.mxu0 %v4404
          %v4530 = vpop.f32.mrf.mxu0
          %v4531 = vadd.f32 0.0, %v4530
          %v4532 = vpop.f32.mrf.mxu0
          %v4533 = vpop.f32.mrf.mxu0
          %v4534 = vadd.f32 0.0, %v4533
          %v4535 = vpop.f32.mrf.mxu0
          %4536 = vdwg.mxu0
          %v4537 = vadd.f32 %v4393, %v4507
          %v4538 = vadd.f32 %v4394, %v4510
          %v4539 = vadd.f32 %v4395, %v4515
          %v4540 = vadd.f32 %v4396, %v4518
          %v4541 = vadd.f32 %v4397, %v4523
          %v4542 = vadd.f32 %v4398, %v4526
          %v4543 = vadd.f32 %v4399, %v4531
          %v4544 = vadd.f32 %v4400, %v4534
          %4545 = vst [vmem:[#allocation10] sm:$0xff] %v4537
          %4546 = vst [vmem:[#allocation10 + $0x8] sm:$0xff] %v4538
          %4547 = vst [vmem:[#allocation10 + $0x10] sm:$0xff] %v4539
          %4548 = vst [vmem:[#allocation10 + $0x18] sm:$0xff] %v4540
          %4549 = vst [vmem:[#allocation10 + $0x20] sm:$0xff] %v4541
          %4550 = vst [vmem:[#allocation10 + $0x28] sm:$0xff] %v4542
          %4551 = vst [vmem:[#allocation10 + $0x30] sm:$0xff] %v4543
          %4552 = vst [vmem:[#allocation10 + $0x38] sm:$0xff] %v4544
        $region100: #{tpu_custom_call.1} parent=55 // pred_fallthru
          _
        %p4553 = scmp.eq.s32.totalorder %s39, 1
        %p4554 = pnand %p4553, %p3980
        %p4555 = pneg %p4554
        // Predicated region
        $region101: #{tpu_custom_call.1} parent=55 // pred_check
          _
        $region102: #{tpu_custom_call.1} parent=55 // pred_check_branch
          %4557 = sbr.rel (%p4554) target = $region104
        $region103: #{tpu_custom_call.1} parent=55 // pred_region
          %v4558 = vld [vmem:[#allocation10] sm:$0xff]
          %v4559 = vld [vmem:[#allocation10 + $0x8] sm:$0xff]
          %v4560 = vld [vmem:[#allocation10 + $0x10] sm:$0xff]
          %v4561 = vld [vmem:[#allocation10 + $0x18] sm:$0xff]
          %v4562 = vld [vmem:[#allocation10 + $0x20] sm:$0xff]
          %v4563 = vld [vmem:[#allocation10 + $0x28] sm:$0xff]
          %v4564 = vld [vmem:[#allocation10 + $0x30] sm:$0xff]
          %v4565 = vld [vmem:[#allocation10 + $0x38] sm:$0xff]
          %v4566 = vld [vmem:[%s8] sm:$0x1]
          %v4568 = vlaneseq
          %v4569 = vshrl.u32 %v4568, 7
          %v4570 = vsub.s32 0, %v4569
          %v4571 = vrot.slane %v4566, %v4570
          %v4573 = vadd.f32 %v4558, %v4571
          %v4574 = vadd.f32 %v4559, %v4571
          %v4575 = vadd.f32 %v4560, %v4571
          %v4576 = vadd.f32 %v4561, %v4571
          %v4577 = vadd.f32 %v4562, %v4571
          %v4578 = vadd.f32 %v4563, %v4571
          %v4579 = vadd.f32 %v4564, %v4571
          %v4580 = vadd.f32 %v4565, %v4571
          %4581 = vst [vmem:[%s499] sm:$0xff] %v4573
          %4582 = vst [vmem:[%s499 + $0x8] sm:$0xff] %v4574
          %4583 = vst [vmem:[%s499 + $0x10] sm:$0xff] %v4575
          %4584 = vst [vmem:[%s499 + $0x18] sm:$0xff] %v4576
          %4585 = vst [vmem:[%s499 + $0x20] sm:$0xff] %v4577
          %4586 = vst [vmem:[%s499 + $0x28] sm:$0xff] %v4578
          %4587 = vst [vmem:[%s499 + $0x30] sm:$0xff] %v4579
          %4588 = vst [vmem:[%s499 + $0x38] sm:$0xff] %v4580
        $region104: #{tpu_custom_call.1} parent=55 // pred_fallthru
          _
        %s4589 = sand.u32 %s280, 1
        %s4590 = scalar_lea.sflag [#allocation13], %s4589
        %s4591 = sand.u32 %s280, 1
        %s4592 = smul.addr %s4591, 64
        %s4593 = scalar_lea.vmem [#allocation22], %s4592
        // Predicated region
        $region105: #{tpu_custom_call.1} parent=55 // pred_check
          %p4594 = pneg %p290
        $region106: #{tpu_custom_call.1} parent=55 // pred_check_branch
          %4596 = sbr.rel (%p4594) target = $region108
        $region107: #{tpu_custom_call.1} parent=55 // pred_region
          %s4597 = smul.u32 8, %s38
          %s4599 = ssub.s32 1024, 1024
          %4600 = vsyncadd %s4590, %s4599
          %s4601 = smul.addr %s37, 16
          %s4602 = sadd.s32 %s4597, %s4601
          %s4603 = smul.addr %s4602, 128
          %s4604 = scalar_lea.hbm %s9, %s4603
          %s4605 = sshll.u32 %s4593, 4
          %s4606 = int_to_ptr.vmem [resolvable:$true] %s4605
          %4611 = dma.vmem_to_hbm [thread:$0]  %s4606, 1024, %s4604, %s4590, 128, 128, 8
        $region108: #{tpu_custom_call.1} parent=55 // pred_fallthru
          _
      $region56: #{tpu_custom_call.1} parent=5 // pred_fallthru
        _
      %p4612 = scmp.le.s32.totalorder 2, %s26
      // Predicated region
      $region109: #{tpu_custom_call.1} parent=5 // pred_check
        %p4613 = pneg %p4612
      $region110: #{tpu_custom_call.1} parent=5 // pred_check_branch
        %4615 = sbr.rel (%p4613) target = $region112
      $region111: #{tpu_custom_call.1} parent=5 // pred_region
        %s4616 = ssub.s32 %s26, 2
        // Predicated region
        $region113: #{tpu_custom_call.1} parent=111 // pred_check
          %p4617 = pneg %p296
        $region114: #{tpu_custom_call.1} parent=111 // pred_check_branch
          %4619 = sbr.rel (%p4617) target = $region116
        $region115: #{tpu_custom_call.1} parent=111 // pred_region
          %s4620 = sand.u32 %s281, 1
          %s4621 = scalar_lea.sflag [#allocation13], %s4620
          %s4622 = sand.u32 %s281, 1
          %s4623 = smul.addr %s4622, 64
          %s4624 = scalar_lea.vmem [#allocation22], %s4623
          %4625 = dma.done %s4621, 1024
        $region116: #{tpu_custom_call.1} parent=111 // pred_fallthru
          _
      $region112: #{tpu_custom_call.1} parent=5 // pred_fallthru
        _
    $region6: #{tpu_custom_call.1} parent=1 // loop_footer
      %s30 = sadd.s32 1, %s26
    $region7: #{tpu_custom_call.1} parent=1 // loop_footer_branch
      %25 = sbr.rel target = $region3
    $region8: #{tpu_custom_call.1} parent=1 // loop_exit
      _
    %4626 = vsyncpa [#allocation12], 1
    %s4627 = scalar_lea.sflag [#allocation12], 1
    %4628 = vsyncpa %s4627, 1
    %4629 = vsyncpa [#allocation15], 1
    %s4630 = scalar_lea.sflag [#allocation15], 1
    %4631 = vsyncpa %s4630, 1
    %4632 = vsyncpa [#allocation18], 1
    %4633 = vsyncpa [#allocation21], 1
    %4634 = vsyncpa [#allocation13], 1
    %s4635 = scalar_lea.sflag [#allocation13], 1
    %4636 = vsyncpa %s4635, 1

</llo_original>
